<compile_context>
chip_gen: v6e
topology: v6e:2x2x1
jax: 0.10.0
libtpu: 0.0.40
codegen_flags: <defaults>
</compile_context>

<pallas_src>
import jax
import jax.numpy as jnp
from jax.experimental import pallas as pl
from jax.experimental.pallas import tpu as pltpu

HIDDEN = 500          # logical hidden width of fc1/fc2/fc3
HIDDEN_PAD = 512      # padded to a multiple of 128 lanes
HEAD = 24             # pi(8) | mu(8) | sigma(8)
HEAD_PAD = 128        # lane-dense combined head output slab
COV_SCALE = 0.2       # cov_scaling_factor


# ----------------------------- Pallas kernel ------------------------------- #

def mdnl_kernel(x_ref, w1_ref, b1_ref, w2_ref, b2_ref, w3_ref, b3_ref,
                wh_ref, bh_ref, out_ref):
    """One row-tile of the MDNL forward pass.

    x_ref  : (TILE_N, I)             input rows
    w1_ref : (I, HIDDEN_PAD)         fc1 weight, transposed, zero-padded 500->512
    w2/w3  : (HIDDEN_PAD, HIDDEN_PAD) fc2/fc3 weights, transposed, zero-padded
    wh_ref : (HIDDEN_PAD, HEAD_PAD)  [fc_pi | fc_mu | fc_sigma | 0-pad], transposed
    b*_ref : (1, ...)                biases, zero-padded
    out_ref: (TILE_N, HEAD_PAD)      raw head outputs (lane-dense store)
    """
    h = jnp.tanh(jnp.dot(x_ref[...], w1_ref[...],
                         preferred_element_type=jnp.float32) + b1_ref[...])
    h = jnp.tanh(jnp.dot(h, w2_ref[...],
                         preferred_element_type=jnp.float32) + b2_ref[...])
    h = jnp.tanh(jnp.dot(h, w3_ref[...],
                         preferred_element_type=jnp.float32) + b3_ref[...])
    out_ref[...] = (jnp.dot(h, wh_ref[...],
                            preferred_element_type=jnp.float32) + bh_ref[...])


# ------------------------------ host wrapper ------------------------------- #

def _resident_spec(shape):
    """Full-array block with a constant index_map: stays resident in VMEM."""
    nd = len(shape)
    return pl.BlockSpec(shape, lambda i, _nd=nd: (0,) * _nd)


def mdnl_forward(x, packed, *, tile_n=128, cov_scaling_factor=COV_SCALE):
    """Forward pass matching MDNL.forward.

    x: (N, input_dim) float32.
    Returns (pi, mu, sigma), each of shape (N, 2, 4).
    """
    N, I = x.shape
    n_pad = pl.cdiv(N, tile_n) * tile_n
    if n_pad != N:
        x = jnp.pad(x, ((0, n_pad - N), (0, 0)))

    ins = (x, packed["w1"], packed["b1"], packed["w2"], packed["b2"],
           packed["w3"], packed["b3"], packed["wh"], packed["bh"])
    in_specs = [pl.BlockSpec((tile_n, I), lambda i: (i, 0))]
    in_specs += [_resident_spec(a.shape) for a in ins[1:]]

    raw = pl.pallas_call(
        mdnl_kernel,
        grid=(n_pad // tile_n,),
        in_specs=in_specs,
        out_specs=pl.BlockSpec((tile_n, HEAD_PAD), lambda i: (i, 0)),
        out_shape=jax.ShapeDtypeStruct((n_pad, HEAD_PAD), jnp.float32),
        compiler_params=pltpu.CompilerParams(
            dimension_semantics=("parallel",),
            vmem_limit_bytes=32 * 1024 * 1024),
    )(*ins)

    raw = raw[:N]
    # Tiny finalization on the (N, 24) slab (kept out of the kernel so the
    # kernel output stays lane-dense; matches torch semantics exactly).
    pi = jax.nn.softmax(raw[:, 0:8].reshape(N, 2, 4), axis=-1)
    mu = raw[:, 8:16].reshape(N, 2, 4)
    sigma = (jax.nn.sigmoid(raw[:, 16:24]) * cov_scaling_factor).reshape(N, 2, 4)
    return pi, mu, sigma


# --------------------------- parameter construction ------------------------ #

def init_params(key, input_dim=40):
    """PyTorch-style Linear init: U(-1/sqrt(fan_in), 1/sqrt(fan_in))."""
    def linear(k, n_in, n_out):
        kw, kb = jax.random.split(k)
        bound = 1.0 / jnp.sqrt(float(n_in))
        w = jax.random.uniform(kw, (n_out, n_in), jnp.float32, -bound, bound)
        b = jax.random.uniform(kb, (n_out,), jnp.float32, -bound, bound)
        return w, b

    ks = jax.random.split(key, 6)
    return {
        "fc1": linear(ks[0], input_dim, HIDDEN),
        "fc2": linear(ks[1], HIDDEN, HIDDEN),
        "fc3": linear(ks[2], HIDDEN, HIDDEN),
        "fc_pi": linear(ks[3], HIDDEN, 8),
        "fc_mu": linear(ks[4], HIDDEN, 8),
        "fc_sigma": linear(ks[5], HIDDEN, 8),
    }


def pack_params(p, input_dim=40):
    """Transpose + zero-pad weights to (8,128)-aligned, MXU-friendly layouts."""
    def pad_t(w, b, rows_to, cols_to):
        wt = jnp.zeros((rows_to, cols_to), jnp.float32)
        wt = wt.at[:w.shape[1], :w.shape[0]].set(w.T)
        bb = jnp.zeros((1, cols_to), jnp.float32).at[0, :b.shape[0]].set(b)
        return wt, bb

    packed = {}
    packed["w1"], packed["b1"] = pad_t(*p["fc1"], input_dim, HIDDEN_PAD)
    packed["w2"], packed["b2"] = pad_t(*p["fc2"], HIDDEN_PAD, HIDDEN_PAD)
    packed["w3"], packed["b3"] = pad_t(*p["fc3"], HIDDEN_PAD, HIDDEN_PAD)

    # Combined head [pi | mu | sigma], zero-padded to 128 output lanes.
    wh = jnp.zeros((HIDDEN_PAD, HEAD_PAD), jnp.float32)
    bh = jnp.zeros((1, HEAD_PAD), jnp.float32)
    for off, name in ((0, "fc_pi"), (8, "fc_mu"), (16, "fc_sigma")):
        w, b = p[name]
        wh = wh.at[:HIDDEN, off:off + 8].set(w.T)
        bh = bh.at[0, off:off + 8].set(b)
    packed["wh"] = wh
    packed["bh"] = bh
    return packed


# ------------------------------ pure-JAX reference -------------------------- #

def reference_forward(x, p, cov_scaling_factor=COV_SCALE):
    def lin(z, wb):
        w, b = wb
        return z @ w.T + b

    h = jnp.tanh(lin(x, p["fc1"]))
    h = jnp.tanh(lin(h, p["fc2"]))
    h = jnp.tanh(lin(h, p["fc3"]))
    pi = jax.nn.softmax(lin(h, p["fc_pi"]).reshape(-1, 2, 4), axis=-1)
    mu = lin(h, p["fc_mu"]).reshape(-1, 2, 4)
    sigma = (jax.nn.sigmoid(lin(h, p["fc_sigma"])) * cov_scaling_factor
             ).reshape(-1, 2, 4)
    return pi, mu, sigma


# ----------------------------------- main ----------------------------------- #

if __name__ == "__main__":
    key = jax.random.PRNGKey(0)
    k_param, k_x = jax.random.split(key)

    INPUT_DIM = 40        # module default input_dim
    N = 256               # batch rows; TILE_N=128 -> grid of 2 row tiles

    params = init_params(k_param, input_dim=INPUT_DIM)
    packed = pack_params(params, input_dim=INPUT_DIM)
    x = jax.random.normal(k_x, (N, INPUT_DIM), jnp.float32)

    pi, mu, sigma = mdnl_forward(x, packed, tile_n=128)
    jax.block_until_ready((pi, mu, sigma))

    # sanity check against the pure-JAX reference (unpadded weights)
    r_pi, r_mu, r_sg = reference_forward(x, params)
    assert pi.shape == (N, 2, 4) and mu.shape == (N, 2, 4) and sigma.shape == (N, 2, 4)
    for a, b in ((pi, r_pi), (mu, r_mu), (sigma, r_sg)):
        assert jnp.allclose(a, b, rtol=1e-4, atol=1e-4), "mismatch vs reference"

    # TODO(synk): optional bf16 weights for W2/W3 (f32 accumulate) on v6e/v7x;
    # kept f32 here so the reference check stays tight.

    print("KERNEL_OK")
</pallas_src>

<mosaic_0001>
module attributes {stable_mosaic.version = 11 : i64} {
  func.func @mdnl_kernel(%arg0: i32, %arg1: memref<128x40xf32, #tpu.memory_space<vmem>>, %arg2: memref<40x512xf32, #tpu.memory_space<vmem>>, %arg3: memref<1x512xf32, #tpu.memory_space<vmem>>, %arg4: memref<512x512xf32, #tpu.memory_space<vmem>>, %arg5: memref<1x512xf32, #tpu.memory_space<vmem>>, %arg6: memref<512x512xf32, #tpu.memory_space<vmem>>, %arg7: memref<1x512xf32, #tpu.memory_space<vmem>>, %arg8: memref<512x128xf32, #tpu.memory_space<vmem>>, %arg9: memref<1x128xf32, #tpu.memory_space<vmem>>, %arg10: memref<128x128xf32, #tpu.memory_space<vmem>>) attributes {dimension_semantics = [#tpu.dimension_semantics<parallel>], iteration_bounds = array<i64: 2>, scalar_prefetch = 0 : i64, scratch_operands = 0 : i64, tpu.core_type = #tpu.core_type<tc>, window_params = [{transform_indices = @transform_0, window_bounds = array<i64: 128, 40>}, {pipeline_mode = #tpu.pipeline_mode<synchronous>, transform_indices = @transform_1, window_bounds = array<i64: 40, 512>}, {pipeline_mode = #tpu.pipeline_mode<synchronous>, transform_indices = @transform_2, window_bounds = array<i64: 1, 512>}, {pipeline_mode = #tpu.pipeline_mode<synchronous>, transform_indices = @transform_3, window_bounds = array<i64: 512, 512>}, {pipeline_mode = #tpu.pipeline_mode<synchronous>, transform_indices = @transform_4, window_bounds = array<i64: 1, 512>}, {pipeline_mode = #tpu.pipeline_mode<synchronous>, transform_indices = @transform_5, window_bounds = array<i64: 512, 512>}, {pipeline_mode = #tpu.pipeline_mode<synchronous>, transform_indices = @transform_6, window_bounds = array<i64: 1, 512>}, {pipeline_mode = #tpu.pipeline_mode<synchronous>, transform_indices = @transform_7, window_bounds = array<i64: 512, 128>}, {pipeline_mode = #tpu.pipeline_mode<synchronous>, transform_indices = @transform_8, window_bounds = array<i64: 1, 128>}, {transform_indices = @transform_9, window_bounds = array<i64: 128, 128>}]} {
    %c0 = arith.constant 0 : index
    %c0_0 = arith.constant 0 : index
    %0 = vector.load %arg1[%c0, %c0_0] : memref<128x40xf32, #tpu.memory_space<vmem>>, vector<128x40xf32>
    %c0_1 = arith.constant 0 : index
    %c0_2 = arith.constant 0 : index
    %1 = vector.load %arg2[%c0_1, %c0_2] : memref<40x512xf32, #tpu.memory_space<vmem>>, vector<40x512xf32>
    %cst = arith.constant dense<0.000000e+00> : vector<128x512xf32>
    %2 = tpu.matmul %0, %1, %cst {dimension_numbers = #tpu.dot_dimension_numbers<[1], [0], [0], [1], [0, 0, 1, 1], [], []>} : vector<128x40xf32>, vector<40x512xf32>, vector<128x512xf32> -> vector<128x512xf32>
    %c0_3 = arith.constant 0 : index
    %c0_4 = arith.constant 0 : index
    %3 = vector.load %arg3[%c0_3, %c0_4] : memref<1x512xf32, #tpu.memory_space<vmem>>, vector<1x512xf32>
    %4 = vector.broadcast %3 : vector<1x512xf32> to vector<128x512xf32>
    %5 = arith.addf %2, %4 : vector<128x512xf32>
    %6 = math.tanh %5 : vector<128x512xf32>
    %c0_5 = arith.constant 0 : index
    %c0_6 = arith.constant 0 : index
    %7 = vector.load %arg4[%c0_5, %c0_6] : memref<512x512xf32, #tpu.memory_space<vmem>>, vector<512x512xf32>
    %cst_7 = arith.constant dense<0.000000e+00> : vector<128x512xf32>
    %8 = tpu.matmul %6, %7, %cst_7 {dimension_numbers = #tpu.dot_dimension_numbers<[1], [0], [0], [1], [0, 0, 1, 1], [], []>} : vector<128x512xf32>, vector<512x512xf32>, vector<128x512xf32> -> vector<128x512xf32>
    %c0_8 = arith.constant 0 : index
    %c0_9 = arith.constant 0 : index
    %9 = vector.load %arg5[%c0_8, %c0_9] : memref<1x512xf32, #tpu.memory_space<vmem>>, vector<1x512xf32>
    %10 = vector.broadcast %9 : vector<1x512xf32> to vector<128x512xf32>
    %11 = arith.addf %8, %10 : vector<128x512xf32>
    %12 = math.tanh %11 : vector<128x512xf32>
    %c0_10 = arith.constant 0 : index
    %c0_11 = arith.constant 0 : index
    %13 = vector.load %arg6[%c0_10, %c0_11] : memref<512x512xf32, #tpu.memory_space<vmem>>, vector<512x512xf32>
    %cst_12 = arith.constant dense<0.000000e+00> : vector<128x512xf32>
    %14 = tpu.matmul %12, %13, %cst_12 {dimension_numbers = #tpu.dot_dimension_numbers<[1], [0], [0], [1], [0, 0, 1, 1], [], []>} : vector<128x512xf32>, vector<512x512xf32>, vector<128x512xf32> -> vector<128x512xf32>
    %c0_13 = arith.constant 0 : index
    %c0_14 = arith.constant 0 : index
    %15 = vector.load %arg7[%c0_13, %c0_14] : memref<1x512xf32, #tpu.memory_space<vmem>>, vector<1x512xf32>
    %16 = vector.broadcast %15 : vector<1x512xf32> to vector<128x512xf32>
    %17 = arith.addf %14, %16 : vector<128x512xf32>
    %18 = math.tanh %17 : vector<128x512xf32>
    %c0_15 = arith.constant 0 : index
    %c0_16 = arith.constant 0 : index
    %19 = vector.load %arg8[%c0_15, %c0_16] : memref<512x128xf32, #tpu.memory_space<vmem>>, vector<512x128xf32>
    %cst_17 = arith.constant dense<0.000000e+00> : vector<128x128xf32>
    %20 = tpu.matmul %18, %19, %cst_17 {dimension_numbers = #tpu.dot_dimension_numbers<[1], [0], [0], [1], [0, 0, 1, 1], [], []>} : vector<128x512xf32>, vector<512x128xf32>, vector<128x128xf32> -> vector<128x128xf32>
    %c0_18 = arith.constant 0 : index
    %c0_19 = arith.constant 0 : index
    %21 = vector.load %arg9[%c0_18, %c0_19] : memref<1x128xf32, #tpu.memory_space<vmem>>, vector<1x128xf32>
    %22 = vector.broadcast %21 : vector<1x128xf32> to vector<128x128xf32>
    %23 = arith.addf %20, %22 : vector<128x128xf32>
    %c0_20 = arith.constant 0 : index
    %c0_21 = arith.constant 0 : index
    %24 = vector.load %arg10[%c0_20, %c0_21] : memref<128x128xf32, #tpu.memory_space<vmem>>, vector<128x128xf32>
    tpu.vector_store %arg10[%c0_20, %c0_21], %23 {strides = array<i32>} : memref<128x128xf32, #tpu.memory_space<vmem>>, vector<128x128xf32>,
    return
  }
  func.func @transform_0(%arg0: i32) -> (i32, i32) {
    %c0_i32 = arith.constant 0 : i32
    %c0_i32_0 = arith.constant 0 : i32
    return %arg0, %c0_i32 : i32, i32
  }
  func.func @transform_1(%arg0: i32) -> (i32, i32) {
    %c0_i32 = arith.constant 0 : i32
    %c0_i32_0 = arith.constant 0 : i32
    %c0_i32_1 = arith.constant 0 : i32
    return %c0_i32, %c0_i32_0 : i32, i32
  }
  func.func @transform_2(%arg0: i32) -> (i32, i32) {
    %c0_i32 = arith.constant 0 : i32
    %c0_i32_0 = arith.constant 0 : i32
    %c0_i32_1 = arith.constant 0 : i32
    return %c0_i32, %c0_i32_0 : i32, i32
  }
  func.func @transform_3(%arg0: i32) -> (i32, i32) {
    %c0_i32 = arith.constant 0 : i32
    %c0_i32_0 = arith.constant 0 : i32
    %c0_i32_1 = arith.constant 0 : i32
    return %c0_i32, %c0_i32_0 : i32, i32
  }
  func.func @transform_4(%arg0: i32) -> (i32, i32) {
    %c0_i32 = arith.constant 0 : i32
    %c0_i32_0 = arith.constant 0 : i32
    %c0_i32_1 = arith.constant 0 : i32
    return %c0_i32, %c0_i32_0 : i32, i32
  }
  func.func @transform_5(%arg0: i32) -> (i32, i32) {
    %c0_i32 = arith.constant 0 : i32
    %c0_i32_0 = arith.constant 0 : i32
    %c0_i32_1 = arith.constant 0 : i32
    return %c0_i32, %c0_i32_0 : i32, i32
  }
  func.func @transform_6(%arg0: i32) -> (i32, i32) {
    %c0_i32 = arith.constant 0 : i32
    %c0_i32_0 = arith.constant 0 : i32
    %c0_i32_1 = arith.constant 0 : i32
    return %c0_i32, %c0_i32_0 : i32, i32
  }
  func.func @transform_7(%arg0: i32) -> (i32, i32) {
    %c0_i32 = arith.constant 0 : i32
    %c0_i32_0 = arith.constant 0 : i32
    %c0_i32_1 = arith.constant 0 : i32
    return %c0_i32, %c0_i32_0 : i32, i32
  }
  func.func @transform_8(%arg0: i32) -> (i32, i32) {
    %c0_i32 = arith.constant 0 : i32
    %c0_i32_0 = arith.constant 0 : i32
    %c0_i32_1 = arith.constant 0 : i32
    return %c0_i32, %c0_i32_0 : i32, i32
  }
  func.func @transform_9(%arg0: i32) -> (i32, i32) {
    %c0_i32 = arith.constant 0 : i32
    %c0_i32_0 = arith.constant 0 : i32
    return %arg0, %c0_i32 : i32, i32
  }
}

</mosaic_0001>

<llo_original>
// kernel: tpu_custom_call.1
$region0: #{tpu_custom_call.1}
  #allocation0 [shape = 'u32[]', space=smem, size = 0x4, offset = 0x4, fixed_abs, tag = 'smem constant byte address 0x4 - core index']
  #allocation1 [shape = 'u32[144,128]{1,0:T(1,128)}', space=vmem, size = 0x12000, scoped, tag = 'internal scratch']
  %s0 = inlined_call_operand.vmem [shape: f32[256,40], index: 0, kind: input, shape index: {}]
  %s1 = inlined_call_operand.vmem [shape: f32[40,512], index: 1, kind: input, shape index: {}]
  %s2 = inlined_call_operand.vmem [shape: f32[1,512], index: 2, kind: input, shape index: {}]
  %s3 = inlined_call_operand.hbm [shape: f32[512,512], index: 3, kind: input, shape index: {}]
  %s4 = inlined_call_operand.vmem [shape: f32[1,512], index: 4, kind: input, shape index: {}]
  %s5 = inlined_call_operand.hbm [shape: f32[512,512], index: 5, kind: input, shape index: {}]
  %s6 = inlined_call_operand.vmem [shape: f32[1,512], index: 6, kind: input, shape index: {}]
  %s7 = inlined_call_operand.hbm [shape: f32[512,128], index: 7, kind: input, shape index: {}]
  %s8 = inlined_call_operand.vmem [shape: f32[1,128], index: 8, kind: input, shape index: {}]
  %s9 = inlined_call_operand.hbm [shape: f32[256,128], index: 9, kind: output, shape index: {}]
  %s10 = sld [smem:[#allocation0]]
  $region81: #{tpu_custom_call.1} parent=0
    _
  %s12 = ssub.s32 1, %s10
  %s13 = scalar_select 0, %s12, %s10
  $region1: #{tpu_custom_call.1} parent=0
    #allocation2 [shape = 'u8[1048576]{0}', space=vmem, size = 0x100000, scoped, tag = 'input window, operand 3, single buffered']
    #allocation3 [shape = 's32[2]{0}', space=sflag, size = 0x8, scoped, tag = 'scoped memory for tpu_custom_call.1']
    #allocation4 [shape = 's32[2]{0}', space=sflag, size = 0x8, scoped, tag = 'scoped memory for tpu_custom_call.1']
    #allocation5 [shape = 'u8[1048576]{0}', space=vmem, size = 0x100000, scoped, tag = 'input window, operand 5, single buffered']
    #allocation6 [shape = 's32[1]{0}', space=sflag, size = 0x4, scoped, tag = 'scoped memory for tpu_custom_call.1']
    #allocation7 [shape = 'u8[262144]{0}', space=vmem, size = 0x40000, scoped, tag = 'input window, operand 7, single buffered']
    #allocation8 [shape = 'u8[131072]{0}', space=vmem, size = 0x20000, scoped, tag = 'output window, operand 0']
    %14 = vsyncpa [#allocation3], 0
    %15 = vsyncpa [#allocation6], 0
    %16 = vsyncpa [#allocation4], 0
    %s17 = scalar_lea.sflag [#allocation4], 1
    %18 = vsyncpa %s17, 0
    loop: start=0, step=1, limit=4
    $region2: #{tpu_custom_call.1} parent=1 // loop_pre_header
      _
    $region3: #{tpu_custom_call.1} parent=1 // loop_header
      %s20 = sphi 0, %s24
      %p21 = scmp.ge.s32.totalorder %s20, 4
      %s30 = sphi 0, %s32
      %s33 = sphi 0, %s30
      %s34 = sphi 0, %s33
      %s50 = sphi 0, %s34
      %s54 = sphi 0, %s54
      %s56 = sphi 0, %s54
      %s57 = sphi 0, %s56
      %s71 = sphi 0, %s57
      %s75 = sphi 0, %s75
      %s77 = sphi 0, %s75
      %s78 = sphi 0, %s77
      %s92 = sphi 0, %s78
      %s96 = sphi 0, %s96
      %s98 = sphi 0, %s96
      %s99 = sphi 0, %s98
      %s113 = sphi 0, %s99
      %s117 = sphi 0, %s117
      %s119 = sphi 0, %s117
      %s120 = sphi 0, %s119
      %s134 = sphi 0, %s120
      %s138 = sphi 0, %s138
      %s140 = sphi 0, %s138
      %s141 = sphi 0, %s140
      %s155 = sphi 0, %s141
      %s159 = sphi 0, %s159
      %s161 = sphi 0, %s159
      %s162 = sphi 0, %s161
      %s176 = sphi 0, %s162
      %s180 = sphi 0, %s180
      %s182 = sphi 0, %s180
      %s183 = sphi 0, %s182
      %s197 = sphi 0, %s183
      %s201 = sphi 0, %s201
      %s203 = sphi 0, %s201
      %s204 = sphi 0, %s203
      %s218 = sphi 0, %s204
      %s224 = sphi 0, %s226
      %s227 = sphi 0, %s224
      %s228 = sphi 0, %s227
      %s244 = sphi 0, %s228
    $region4: #{tpu_custom_call.1} parent=1 // loop_header_branch
      %23 = sbr.rel (%p21) target = $region8
    $region5: #{tpu_custom_call.1} parent=1 // loop_body
      %s25 = ssub.s32 %s20, 1
      %s26 = ssub.s32 %s20, 2
      %s27 = sadd.s32 %s20, 1
      %s28 = ssub.s32 %s20, %s27
      %p29 = scmp.eq.s32.totalorder %s28, 0
      %s31 = sadd.s32 %s30, 1
      %s32 = scalar_select %p29, %s30, %s31
      %p35 = pneg %p29
      %p36 = scmp.eq.s32.totalorder %s20, 1
      %p37 = por %p35, %p36
      %p38 = scmp.ne.s32.totalorder %s30, %s33
      %p39 = scmp.eq.s32.totalorder %s20, 0
      %p40 = por %p38, %p39
      %p41 = scmp.ne.s32.totalorder %s30, %s33
      %p42 = scmp.eq.s32.totalorder %s25, 1
      %p43 = por %p41, %p42
      %p44 = scmp.ne.s32.totalorder %s33, %s34
      %p45 = scmp.eq.s32.totalorder %s25, 0
      %p46 = por %p44, %p45
      %p47 = scmp.ne.s32.totalorder %s33, %s34
      %p48 = scmp.eq.s32.totalorder %s26, 1
      %p49 = por %p47, %p48
      %p51 = scmp.ne.s32.totalorder %s34, %s50
      %p52 = scmp.eq.s32.totalorder %s26, 0
      %p53 = por %p51, %p52
      %s55 = sadd.s32 %s54, 1
      %p58 = scmp.eq.s32.totalorder %s20, 1
      %p59 = scmp.ne.s32.totalorder %s54, %s56
      %p60 = scmp.eq.s32.totalorder %s20, 0
      %p61 = por %p59, %p60
      %p62 = scmp.ne.s32.totalorder %s54, %s56
      %p63 = scmp.eq.s32.totalorder %s25, 1
      %p64 = por %p62, %p63
      %p65 = scmp.ne.s32.totalorder %s56, %s57
      %p66 = scmp.eq.s32.totalorder %s25, 0
      %p67 = por %p65, %p66
      %p68 = scmp.ne.s32.totalorder %s56, %s57
      %p69 = scmp.eq.s32.totalorder %s26, 1
      %p70 = por %p68, %p69
      %p72 = scmp.ne.s32.totalorder %s57, %s71
      %p73 = scmp.eq.s32.totalorder %s26, 0
      %p74 = por %p72, %p73
      %s76 = sadd.s32 %s75, 1
      %p79 = scmp.eq.s32.totalorder %s20, 1
      %p80 = scmp.ne.s32.totalorder %s75, %s77
      %p81 = scmp.eq.s32.totalorder %s20, 0
      %p82 = por %p80, %p81
      %p83 = scmp.ne.s32.totalorder %s75, %s77
      %p84 = scmp.eq.s32.totalorder %s25, 1
      %p85 = por %p83, %p84
      %p86 = scmp.ne.s32.totalorder %s77, %s78
      %p87 = scmp.eq.s32.totalorder %s25, 0
      %p88 = por %p86, %p87
      %p89 = scmp.ne.s32.totalorder %s77, %s78
      %p90 = scmp.eq.s32.totalorder %s26, 1
      %p91 = por %p89, %p90
      %p93 = scmp.ne.s32.totalorder %s78, %s92
      %p94 = scmp.eq.s32.totalorder %s26, 0
      %p95 = por %p93, %p94
      %s97 = sadd.s32 %s96, 1
      %p100 = scmp.eq.s32.totalorder %s20, 1
      %p101 = scmp.ne.s32.totalorder %s96, %s98
      %p102 = scmp.eq.s32.totalorder %s20, 0
      %p103 = por %p101, %p102
      %p104 = scmp.ne.s32.totalorder %s96, %s98
      %p105 = scmp.eq.s32.totalorder %s25, 1
      %p106 = por %p104, %p105
      %p107 = scmp.ne.s32.totalorder %s98, %s99
      %p108 = scmp.eq.s32.totalorder %s25, 0
      %p109 = por %p107, %p108
      %p110 = scmp.ne.s32.totalorder %s98, %s99
      %p111 = scmp.eq.s32.totalorder %s26, 1
      %p112 = por %p110, %p111
      %p114 = scmp.ne.s32.totalorder %s99, %s113
      %p115 = scmp.eq.s32.totalorder %s26, 0
      %p116 = por %p114, %p115
      %s118 = sadd.s32 %s117, 1
      %p121 = scmp.eq.s32.totalorder %s20, 1
      %p122 = scmp.ne.s32.totalorder %s117, %s119
      %p123 = scmp.eq.s32.totalorder %s20, 0
      %p124 = por %p122, %p123
      %p125 = scmp.ne.s32.totalorder %s117, %s119
      %p126 = scmp.eq.s32.totalorder %s25, 1
      %p127 = por %p125, %p126
      %p128 = scmp.ne.s32.totalorder %s119, %s120
      %p129 = scmp.eq.s32.totalorder %s25, 0
      %p130 = por %p128, %p129
      %p131 = scmp.ne.s32.totalorder %s119, %s120
      %p132 = scmp.eq.s32.totalorder %s26, 1
      %p133 = por %p131, %p132
      %p135 = scmp.ne.s32.totalorder %s120, %s134
      %p136 = scmp.eq.s32.totalorder %s26, 0
      %p137 = por %p135, %p136
      %s139 = sadd.s32 %s138, 1
      %p142 = scmp.eq.s32.totalorder %s20, 1
      %p143 = scmp.ne.s32.totalorder %s138, %s140
      %p144 = scmp.eq.s32.totalorder %s20, 0
      %p145 = por %p143, %p144
      %p146 = scmp.ne.s32.totalorder %s138, %s140
      %p147 = scmp.eq.s32.totalorder %s25, 1
      %p148 = por %p146, %p147
      %p149 = scmp.ne.s32.totalorder %s140, %s141
      %p150 = scmp.eq.s32.totalorder %s25, 0
      %p151 = por %p149, %p150
      %p152 = scmp.ne.s32.totalorder %s140, %s141
      %p153 = scmp.eq.s32.totalorder %s26, 1
      %p154 = por %p152, %p153
      %p156 = scmp.ne.s32.totalorder %s141, %s155
      %p157 = scmp.eq.s32.totalorder %s26, 0
      %p158 = por %p156, %p157
      %s160 = sadd.s32 %s159, 1
      %p163 = scmp.eq.s32.totalorder %s20, 1
      %p164 = scmp.ne.s32.totalorder %s159, %s161
      %p165 = scmp.eq.s32.totalorder %s20, 0
      %p166 = por %p164, %p165
      %p167 = scmp.ne.s32.totalorder %s159, %s161
      %p168 = scmp.eq.s32.totalorder %s25, 1
      %p169 = por %p167, %p168
      %p170 = scmp.ne.s32.totalorder %s161, %s162
      %p171 = scmp.eq.s32.totalorder %s25, 0
      %p172 = por %p170, %p171
      %p173 = scmp.ne.s32.totalorder %s161, %s162
      %p174 = scmp.eq.s32.totalorder %s26, 1
      %p175 = por %p173, %p174
      %p177 = scmp.ne.s32.totalorder %s162, %s176
      %p178 = scmp.eq.s32.totalorder %s26, 0
      %p179 = por %p177, %p178
      %s181 = sadd.s32 %s180, 1
      %p184 = scmp.eq.s32.totalorder %s20, 1
      %p185 = scmp.ne.s32.totalorder %s180, %s182
      %p186 = scmp.eq.s32.totalorder %s20, 0
      %p187 = por %p185, %p186
      %p188 = scmp.ne.s32.totalorder %s180, %s182
      %p189 = scmp.eq.s32.totalorder %s25, 1
      %p190 = por %p188, %p189
      %p191 = scmp.ne.s32.totalorder %s182, %s183
      %p192 = scmp.eq.s32.totalorder %s25, 0
      %p193 = por %p191, %p192
      %p194 = scmp.ne.s32.totalorder %s182, %s183
      %p195 = scmp.eq.s32.totalorder %s26, 1
      %p196 = por %p194, %p195
      %p198 = scmp.ne.s32.totalorder %s183, %s197
      %p199 = scmp.eq.s32.totalorder %s26, 0
      %p200 = por %p198, %p199
      %s202 = sadd.s32 %s201, 1
      %p205 = scmp.eq.s32.totalorder %s20, 1
      %p206 = scmp.ne.s32.totalorder %s201, %s203
      %p207 = scmp.eq.s32.totalorder %s20, 0
      %p208 = por %p206, %p207
      %p209 = scmp.ne.s32.totalorder %s201, %s203
      %p210 = scmp.eq.s32.totalorder %s25, 1
      %p211 = por %p209, %p210
      %p212 = scmp.ne.s32.totalorder %s203, %s204
      %p213 = scmp.eq.s32.totalorder %s25, 0
      %p214 = por %p212, %p213
      %p215 = scmp.ne.s32.totalorder %s203, %s204
      %p216 = scmp.eq.s32.totalorder %s26, 1
      %p217 = por %p215, %p216
      %p219 = scmp.ne.s32.totalorder %s204, %s218
      %p220 = scmp.eq.s32.totalorder %s26, 0
      %p221 = por %p219, %p220
      %s222 = ssub.s32 %s20, %s27
      %p223 = scmp.eq.s32.totalorder %s222, 0
      %s225 = sadd.s32 %s224, 1
      %s226 = scalar_select %p223, %s224, %s225
      %p229 = pneg %p223
      %p230 = scmp.eq.s32.totalorder %s20, 1
      %p231 = por %p229, %p230
      %p232 = scmp.ne.s32.totalorder %s224, %s227
      %p233 = scmp.eq.s32.totalorder %s20, 0
      %p234 = por %p232, %p233
      %p235 = scmp.ne.s32.totalorder %s224, %s227
      %p236 = scmp.eq.s32.totalorder %s25, 1
      %p237 = por %p235, %p236
      %p238 = scmp.ne.s32.totalorder %s227, %s228
      %p239 = scmp.eq.s32.totalorder %s25, 0
      %p240 = por %p238, %p239
      %p241 = scmp.ne.s32.totalorder %s227, %s228
      %p242 = scmp.eq.s32.totalorder %s26, 1
      %p243 = por %p241, %p242
      %p245 = scmp.ne.s32.totalorder %s228, %s244
      %p246 = scmp.eq.s32.totalorder %s26, 0
      %p247 = por %p245, %p246
      %p248 = scmp.le.s32.totalorder 1, %s20
      %p249 = scmp.lt.s32.totalorder %s20, 3
      %p250 = pnand %p248, %p249
      %p251 = pneg %p250
      // Predicated region
      $region9: #{tpu_custom_call.1} parent=5 // pred_check
        _
      $region10: #{tpu_custom_call.1} parent=5 // pred_check_branch
        %253 = sbr.rel (%p250) target = $region12
      $region11: #{tpu_custom_call.1} parent=5 // pred_region
        %s254 = ssub.s32 %s20, 1
        // Predicated region
        $region13: #{tpu_custom_call.1} parent=11 // pred_check
          %p255 = pneg %p67
        $region14: #{tpu_custom_call.1} parent=11 // pred_check_branch
          %257 = sbr.rel (%p255) target = $region16
        $region15: #{tpu_custom_call.1} parent=11 // pred_region
          _
        $region16: #{tpu_custom_call.1} parent=11 // pred_fallthru
          _
        // Predicated region
        $region17: #{tpu_custom_call.1} parent=11 // pred_check
          %p258 = pneg %p88
        $region18: #{tpu_custom_call.1} parent=11 // pred_check_branch
          %260 = sbr.rel (%p258) target = $region20
        $region19: #{tpu_custom_call.1} parent=11 // pred_region
          _
        $region20: #{tpu_custom_call.1} parent=11 // pred_fallthru
          _
        // Predicated region
        $region21: #{tpu_custom_call.1} parent=11 // pred_check
          %p261 = pneg %p109
        $region22: #{tpu_custom_call.1} parent=11 // pred_check_branch
          %263 = sbr.rel (%p261) target = $region24
        $region23: #{tpu_custom_call.1} parent=11 // pred_region
          %s265 = ssub.s32 32768, 32768
          %266 = vsyncadd [#allocation3], %s265
          %s267 = sshll.u32 [#allocation2], 4
          %s268 = int_to_ptr.vmem [resolvable:$true] %s267
          %273 = dma.hbm_to_vmem [thread:$0]  %s3, 32768, %s268, [#allocation3], 512, 512, 32
        $region24: #{tpu_custom_call.1} parent=11 // pred_fallthru
          _
        // Predicated region
        $region25: #{tpu_custom_call.1} parent=11 // pred_check
          %p274 = pneg %p130
        $region26: #{tpu_custom_call.1} parent=11 // pred_check_branch
          %276 = sbr.rel (%p274) target = $region28
        $region27: #{tpu_custom_call.1} parent=11 // pred_region
          _
        $region28: #{tpu_custom_call.1} parent=11 // pred_fallthru
          _
        // Predicated region
        $region29: #{tpu_custom_call.1} parent=11 // pred_check
          %p277 = pneg %p151
        $region30: #{tpu_custom_call.1} parent=11 // pred_check_branch
          %279 = sbr.rel (%p277) target = $region32
        $region31: #{tpu_custom_call.1} parent=11 // pred_region
          %s281 = ssub.s32 32768, 32768
          %282 = vsyncadd [#allocation6], %s281
          %s283 = sshll.u32 [#allocation5], 4
          %s284 = int_to_ptr.vmem [resolvable:$true] %s283
          %289 = dma.hbm_to_vmem [thread:$0]  %s5, 32768, %s284, [#allocation6], 512, 512, 32
        $region32: #{tpu_custom_call.1} parent=11 // pred_fallthru
          _
        // Predicated region
        $region33: #{tpu_custom_call.1} parent=11 // pred_check
          %p290 = pneg %p172
        $region34: #{tpu_custom_call.1} parent=11 // pred_check_branch
          %292 = sbr.rel (%p290) target = $region36
        $region35: #{tpu_custom_call.1} parent=11 // pred_region
          _
        $region36: #{tpu_custom_call.1} parent=11 // pred_fallthru
          _
        // Predicated region
        $region37: #{tpu_custom_call.1} parent=11 // pred_check
          %p293 = pneg %p193
        $region38: #{tpu_custom_call.1} parent=11 // pred_check_branch
          %295 = sbr.rel (%p293) target = $region40
        $region39: #{tpu_custom_call.1} parent=11 // pred_region
          %s297 = ssub.s32 8192, 8192
          %298 = vsyncadd [#allocation6], %s297
          %s299 = sshll.u32 [#allocation7], 4
          %s300 = int_to_ptr.vmem [resolvable:$true] %s299
          %305 = dma.hbm_to_vmem [thread:$0]  %s7, 8192, %s300, [#allocation6], 128, 128, 8
        $region40: #{tpu_custom_call.1} parent=11 // pred_fallthru
          _
        // Predicated region
        $region41: #{tpu_custom_call.1} parent=11 // pred_check
          %p306 = pneg %p214
        $region42: #{tpu_custom_call.1} parent=11 // pred_check_branch
          %308 = sbr.rel (%p306) target = $region44
        $region43: #{tpu_custom_call.1} parent=11 // pred_region
          _
        $region44: #{tpu_custom_call.1} parent=11 // pred_fallthru
          _
      $region12: #{tpu_custom_call.1} parent=5 // pred_fallthru
        _
      %p309 = scmp.lt.s32.totalorder %s20, 2
      // Predicated region
      $region45: #{tpu_custom_call.1} parent=5 // pred_check
        %p310 = pneg %p309
      $region46: #{tpu_custom_call.1} parent=5 // pred_check_branch
        %312 = sbr.rel (%p310) target = $region48
      $region47: #{tpu_custom_call.1} parent=5 // pred_region
        // Predicated region
        $region49: #{tpu_custom_call.1} parent=47 // pred_check
          %p313 = pneg %p40
        $region50: #{tpu_custom_call.1} parent=47 // pred_check_branch
          %315 = sbr.rel (%p313) target = $region52
        $region51: #{tpu_custom_call.1} parent=47 // pred_region
          %s316 = smul.u32 16, %s20
          %p317 = scmp.lt.s32.totalorder %s316, 31
          %s318 = scalar_select %p317, %s316, 31
          %s319 = smul.addr %s318, 8
          %s320 = scalar_lea.vmem %s0, %s319
          %s321 = smul.u32 16, %s20
        $region52: #{tpu_custom_call.1} parent=47 // pred_fallthru
          _
      $region48: #{tpu_custom_call.1} parent=5 // pred_fallthru
        _
      %p322 = scmp.le.s32.totalorder 1, %s20
      %p323 = scmp.lt.s32.totalorder %s20, 3
      %p324 = pnand %p322, %p323
      %p325 = pneg %p324
      // Predicated region
      $region53: #{tpu_custom_call.1} parent=5 // pred_check
        _
      $region54: #{tpu_custom_call.1} parent=5 // pred_check_branch
        %327 = sbr.rel (%p324) target = $region56
      $region55: #{tpu_custom_call.1} parent=5 // pred_region
        %s328 = ssub.s32 %s20, 1
        // Predicated region
        $region57: #{tpu_custom_call.1} parent=55 // pred_check
          %p329 = pneg %p109
        $region58: #{tpu_custom_call.1} parent=55 // pred_check_branch
          %331 = sbr.rel (%p329) target = $region60
        $region59: #{tpu_custom_call.1} parent=55 // pred_region
          %332 = dma.done [#allocation3], 32768
        $region60: #{tpu_custom_call.1} parent=55 // pred_fallthru
          _
        // Predicated region
        $region61: #{tpu_custom_call.1} parent=55 // pred_check
          %p333 = pneg %p151
        $region62: #{tpu_custom_call.1} parent=55 // pred_check_branch
          %335 = sbr.rel (%p333) target = $region64
        $region63: #{tpu_custom_call.1} parent=55 // pred_region
          %336 = dma.done [#allocation6], 32768
        $region64: #{tpu_custom_call.1} parent=55 // pred_fallthru
          _
        // Predicated region
        $region65: #{tpu_custom_call.1} parent=55 // pred_check
          %p337 = pneg %p193
        $region66: #{tpu_custom_call.1} parent=55 // pred_check_branch
          %339 = sbr.rel (%p337) target = $region68
        $region67: #{tpu_custom_call.1} parent=55 // pred_region
          %340 = dma.done [#allocation6], 8192
        $region68: #{tpu_custom_call.1} parent=55 // pred_fallthru
          _
        %s341 = smul.u32 16, %s25
        %p342 = scmp.lt.s32.totalorder %s341, 31
        %s343 = scalar_select %p342, %s341, 31
        %s344 = smul.addr %s343, 8
        %s345 = scalar_lea.vmem %s0, %s344
        %p346 = pneg %p46
        %p347 = pneg %p43
        %p348 = pneg %p67
        %p349 = pneg %p64
        %p350 = pneg %p88
        %p351 = pneg %p85
        %p352 = pneg %p109
        %p353 = pneg %p106
        %p354 = pneg %p130
        %p355 = pneg %p127
        %p356 = pneg %p151
        %p357 = pneg %p148
        %p358 = pneg %p172
        %p359 = pneg %p169
        %p360 = pneg %p193
        %p361 = pneg %p190
        %p362 = pneg %p214
        %p363 = pneg %p211
        %p364 = pneg %p240
        %p365 = pneg %p237
        %s366 = sand.u32 %s227, 1
        %s367 = scalar_lea.sflag [#allocation4], %s366
        %s368 = sand.u32 %s227, 1
        %s369 = smul.addr %s368, 128
        %s370 = scalar_lea.vmem [#allocation8], %s369
        %s371 = smul.u32 16, %s25
        %p372 = scmp.lt.s32.totalorder %s371, 31
        %s373 = scalar_select %p372, %s371, 31
        %s374 = smul.addr %s373, 8
        %s375 = scalar_lea.vmem %s0, %s374
        %s376 = smul.u32 16, %s25
        %s377 = smul.u32 16, %s25
        %v378 = vld [vmem:[%s375] sm:$0xff]
        %v379 = vld [vmem:[%s375 + $0x8] sm:$0xff]
        %v380 = vld [vmem:[%s375 + $0x10] sm:$0xff]
        %v381 = vld [vmem:[%s375 + $0x18] sm:$0xff]
        %v382 = vld [vmem:[%s375 + $0x20] sm:$0xff]
        %v383 = vld [vmem:[%s375 + $0x28] sm:$0xff]
        %v384 = vld [vmem:[%s375 + $0x30] sm:$0xff]
        %v385 = vld [vmem:[%s375 + $0x38] sm:$0xff]
        %v386 = vld [vmem:[%s375 + $0x40] sm:$0xff]
        %v387 = vld [vmem:[%s375 + $0x48] sm:$0xff]
        %v388 = vld [vmem:[%s375 + $0x50] sm:$0xff]
        %v389 = vld [vmem:[%s375 + $0x58] sm:$0xff]
        %v390 = vld [vmem:[%s375 + $0x60] sm:$0xff]
        %v391 = vld [vmem:[%s375 + $0x68] sm:$0xff]
        %v392 = vld [vmem:[%s375 + $0x70] sm:$0xff]
        %v393 = vld [vmem:[%s375 + $0x78] sm:$0xff]
        %v394 = vld [vmem:[%s1] sm:$0xff]
        %v395 = vld [vmem:[%s1 + $0x8] sm:$0xff]
        %v396 = vld [vmem:[%s1 + $0x10] sm:$0xff]
        %v397 = vld [vmem:[%s1 + $0x18] sm:$0xff]
        %v398 = vld [vmem:[%s1 + $0x20] sm:$0xff]
        %v399 = vld [vmem:[%s1 + $0x28] sm:$0xff]
        %v400 = vld [vmem:[%s1 + $0x30] sm:$0xff]
        %v401 = vld [vmem:[%s1 + $0x38] sm:$0xff]
        %v402 = vld [vmem:[%s1 + $0x40] sm:$0xff]
        %v403 = vld [vmem:[%s1 + $0x48] sm:$0xff]
        %v404 = vld [vmem:[%s1 + $0x50] sm:$0xff]
        %v405 = vld [vmem:[%s1 + $0x58] sm:$0xff]
        %v406 = vld [vmem:[%s1 + $0x60] sm:$0xff]
        %v407 = vld [vmem:[%s1 + $0x68] sm:$0xff]
        %v408 = vld [vmem:[%s1 + $0x70] sm:$0xff]
        %v409 = vld [vmem:[%s1 + $0x78] sm:$0xff]
        %v410 = vld [vmem:[%s1 + $0x80] sm:$0xff]
        %v411 = vld [vmem:[%s1 + $0x88] sm:$0xff]
        %v412 = vld [vmem:[%s1 + $0x90] sm:$0xff]
        %v413 = vld [vmem:[%s1 + $0x98] sm:$0xff]
        %v414 = vld [vmem:[%s2] sm:$0xf]
        %v416 = vlaneseq
        %v417 = vshrl.u32 %v416, 7
        %v418 = vsub.s32 0, %v417
        %v419 = vrot.slane %v414, %v418
        %v420 = vlaneseq
        %v421 = vshrl.u32 %v420, 7
        %v422 = vsub.s32 1, %v421
        %v423 = vrot.slane %v414, %v422
        %v424 = vlaneseq
        %v425 = vshrl.u32 %v424, 7
        %v426 = vsub.s32 2, %v425
        %v427 = vrot.slane %v414, %v426
        %v428 = vlaneseq
        %v429 = vshrl.u32 %v428, 7
        %v430 = vsub.s32 3, %v429
        %v431 = vrot.slane %v414, %v430
        %vm436 = vcmask 326656
        %v438 = vsel %vm436, %v378, 0
        %v441 = vsel %vm436, %v379, 0
        %v444 = vsel %vm436, %v380, 0
        %v447 = vsel %vm436, %v381, 0
        %v450 = vsel %vm436, %v382, 0
        %v453 = vsel %vm436, %v383, 0
        %v456 = vsel %vm436, %v384, 0
        %v459 = vsel %vm436, %v385, 0
        %v462 = vsel %vm436, %v386, 0
        %v465 = vsel %vm436, %v387, 0
        %v468 = vsel %vm436, %v388, 0
        %v471 = vsel %vm436, %v389, 0
        %v474 = vsel %vm436, %v390, 0
        %v477 = vsel %vm436, %v391, 0
        %v480 = vsel %vm436, %v392, 0
        %v483 = vsel %vm436, %v393, 0
        %485 = vmatprep.subr.mxu0 0.0
        %486 = vmatpush1.msra.mxu0 0.0
        %487 = vmatprep.subr.mxu0 0.0
        %488 = vmatpush1.msra.mxu0 0.0
        %489 = vmatprep.subr.mxu0 0.0
        %490 = vmatpush1.msra.mxu0 0.0
        %491 = vmatprep.subr.mxu0 0.0
        %492 = vmatpush1.msra.mxu0 0.0
        %493 = vmatprep.subr.mxu0 0.0
        %494 = vmatpush1.msra.mxu0 0.0
        %495 = vmatprep.subr.mxu0 0.0
        %496 = vmatpush1.msra.mxu0 0.0
        %497 = vmatprep.subr.mxu0 0.0
        %498 = vmatpush1.msra.mxu0 0.0
        %499 = vmatprep.subr.mxu0 0.0
        %500 = vmatpush1.msra.mxu0 0.0
        %501 = vmatprep.subr.mxu0 0.0
        %502 = vmatpush1.msra.mxu0 0.0
        %503 = vmatprep.subr.mxu0 0.0
        %504 = vmatpush1.msra.mxu0 0.0
        %505 = vmatprep.subr.mxu0 0.0
        %506 = vmatpush1.msra.mxu0 0.0
        %507 = vmatprep.subr.mxu0 %v411
        %508 = vmatpush1.msra.mxu0 %v410
        %509 = vmatprep.subr.mxu0 %v407
        %510 = vmatpush1.msra.mxu0 %v406
        %511 = vmatprep.subr.mxu0 %v403
        %512 = vmatpush1.msra.mxu0 %v402
        %513 = vmatprep.subr.mxu0 %v399
        %514 = vmatpush1.msra.mxu0 %v398
        %515 = vmatprep.subr.mxu0 %v395
        %516 = vmatpush1.msra.mxu0 %v394
        %517 = vmatprep.subr.mxu0 0.0
        %518 = vmatpush2.msra.mxu0 0.0
        %519 = vmatprep.subr.mxu0 0.0
        %520 = vmatpush2.msra.mxu0 0.0
        %521 = vmatprep.subr.mxu0 0.0
        %522 = vmatpush2.msra.mxu0 0.0
        %523 = vmatprep.subr.mxu0 0.0
        %524 = vmatpush2.msra.mxu0 0.0
        %525 = vmatprep.subr.mxu0 0.0
        %526 = vmatpush2.msra.mxu0 0.0
        %527 = vmatprep.subr.mxu0 0.0
        %528 = vmatpush2.msra.mxu0 0.0
        %529 = vmatprep.subr.mxu0 0.0
        %530 = vmatpush2.msra.mxu0 0.0
        %531 = vmatprep.subr.mxu0 0.0
        %532 = vmatpush2.msra.mxu0 0.0
        %533 = vmatprep.subr.mxu0 0.0
        %534 = vmatpush2.msra.mxu0 0.0
        %535 = vmatprep.subr.mxu0 0.0
        %536 = vmatpush2.msra.mxu0 0.0
        %537 = vmatprep.subr.mxu0 0.0
        %538 = vmatpush2.msra.mxu0 0.0
        %539 = vmatprep.subr.mxu0 0.0
        %540 = vmatpush2.msra.mxu0 0.0
        %541 = vmatprep.subr.mxu0 0.0
        %542 = vmatpush2.msra.mxu0 0.0
        %543 = vmatprep.subr.mxu0 0.0
        %544 = vmatpush2.msra.mxu0 0.0
        %545 = vmatprep.subr.mxu0 0.0
        %546 = vmatpush2.msra.mxu0 0.0
        %547 = vmatprep.subr.mxu0 0.0
        %548 = vmatpush2.msra.mxu0 0.0
        %549 = vmatprep.mubr.f32.mxu0 0.0
        %550 = vmatmul.mubr.f32.gmra.mxu0 %v438
        %v551 = vpop.f32.mrf.mxu0
        %v552 = vadd.f32 %v419, %v551
        %v553 = vpop.f32.mrf.mxu0
        %v554 = vadd.f32 %v423, %v553
        %555 = vmatprep.mubr.f32.mxu0 0.0
        %556 = vmatmul.mubr.f32.gmra.mxu0 %v441
        %v557 = vpop.f32.mrf.mxu0
        %v558 = vadd.f32 %v419, %v557
        %v559 = vpop.f32.mrf.mxu0
        %v560 = vadd.f32 %v423, %v559
        %561 = vmatprep.mubr.f32.mxu0 0.0
        %562 = vmatmul.mubr.f32.gmra.mxu0 %v444
        %v563 = vpop.f32.mrf.mxu0
        %v564 = vadd.f32 %v419, %v563
        %v565 = vpop.f32.mrf.mxu0
        %v566 = vadd.f32 %v423, %v565
        %567 = vmatprep.mubr.f32.mxu0 0.0
        %568 = vmatmul.mubr.f32.gmra.mxu0 %v447
        %v569 = vpop.f32.mrf.mxu0
        %v570 = vadd.f32 %v419, %v569
        %v571 = vpop.f32.mrf.mxu0
        %v572 = vadd.f32 %v423, %v571
        %573 = vmatprep.mubr.f32.mxu0 0.0
        %574 = vmatmul.mubr.f32.gmra.mxu0 %v450
        %v575 = vpop.f32.mrf.mxu0
        %v576 = vadd.f32 %v419, %v575
        %v577 = vpop.f32.mrf.mxu0
        %v578 = vadd.f32 %v423, %v577
        %579 = vmatprep.mubr.f32.mxu0 0.0
        %580 = vmatmul.mubr.f32.gmra.mxu0 %v453
        %v581 = vpop.f32.mrf.mxu0
        %v582 = vadd.f32 %v419, %v581
        %v583 = vpop.f32.mrf.mxu0
        %v584 = vadd.f32 %v423, %v583
        %585 = vmatprep.mubr.f32.mxu0 0.0
        %586 = vmatmul.mubr.f32.gmra.mxu0 %v456
        %v587 = vpop.f32.mrf.mxu0
        %v588 = vadd.f32 %v419, %v587
        %v589 = vpop.f32.mrf.mxu0
        %v590 = vadd.f32 %v423, %v589
        %591 = vmatprep.mubr.f32.mxu0 0.0
        %592 = vmatmul.mubr.f32.gmra.mxu0 %v459
        %v593 = vpop.f32.mrf.mxu0
        %v594 = vadd.f32 %v419, %v593
        %v595 = vpop.f32.mrf.mxu0
        %v596 = vadd.f32 %v423, %v595
        %597 = vmatprep.mubr.f32.mxu0 0.0
        %598 = vmatmul.mubr.f32.gmra.mxu0 %v462
        %v599 = vpop.f32.mrf.mxu0
        %v600 = vadd.f32 %v419, %v599
        %v601 = vpop.f32.mrf.mxu0
        %v602 = vadd.f32 %v423, %v601
        %603 = vmatprep.mubr.f32.mxu0 0.0
        %604 = vmatmul.mubr.f32.gmra.mxu0 %v465
        %v605 = vpop.f32.mrf.mxu0
        %v606 = vadd.f32 %v419, %v605
        %v607 = vpop.f32.mrf.mxu0
        %v608 = vadd.f32 %v423, %v607
        %609 = vmatprep.mubr.f32.mxu0 0.0
        %610 = vmatmul.mubr.f32.gmra.mxu0 %v468
        %v611 = vpop.f32.mrf.mxu0
        %v612 = vadd.f32 %v419, %v611
        %v613 = vpop.f32.mrf.mxu0
        %v614 = vadd.f32 %v423, %v613
        %615 = vmatprep.mubr.f32.mxu0 0.0
        %616 = vmatmul.mubr.f32.gmra.mxu0 %v471
        %v617 = vpop.f32.mrf.mxu0
        %v618 = vadd.f32 %v419, %v617
        %v619 = vpop.f32.mrf.mxu0
        %v620 = vadd.f32 %v423, %v619
        %621 = vmatprep.mubr.f32.mxu0 0.0
        %622 = vmatmul.mubr.f32.gmra.mxu0 %v474
        %v623 = vpop.f32.mrf.mxu0
        %v624 = vadd.f32 %v419, %v623
        %v625 = vpop.f32.mrf.mxu0
        %v626 = vadd.f32 %v423, %v625
        %627 = vmatprep.mubr.f32.mxu0 0.0
        %628 = vmatmul.mubr.f32.gmra.mxu0 %v477
        %v629 = vpop.f32.mrf.mxu0
        %v630 = vadd.f32 %v419, %v629
        %v631 = vpop.f32.mrf.mxu0
        %v632 = vadd.f32 %v423, %v631
        %633 = vmatprep.mubr.f32.mxu0 0.0
        %634 = vmatmul.mubr.f32.gmra.mxu0 %v480
        %v635 = vpop.f32.mrf.mxu0
        %v636 = vadd.f32 %v419, %v635
        %v637 = vpop.f32.mrf.mxu0
        %v638 = vadd.f32 %v423, %v637
        %639 = vmatprep.mubr.f32.mxu0 0.0
        %640 = vmatmul.mubr.f32.gmra.mxu0 %v483
        %v641 = vpop.f32.mrf.mxu0
        %v642 = vadd.f32 %v419, %v641
        %v643 = vpop.f32.mrf.mxu0
        %v644 = vadd.f32 %v423, %v643
        %645 = vdwg.mxu0
        %646 = vmatprep.subr.mxu0 0.0
        %647 = vmatpush1.msra.mxu0 0.0
        %648 = vmatprep.subr.mxu0 0.0
        %649 = vmatpush1.msra.mxu0 0.0
        %650 = vmatprep.subr.mxu0 0.0
        %651 = vmatpush1.msra.mxu0 0.0
        %652 = vmatprep.subr.mxu0 0.0
        %653 = vmatpush1.msra.mxu0 0.0
        %654 = vmatprep.subr.mxu0 0.0
        %655 = vmatpush1.msra.mxu0 0.0
        %656 = vmatprep.subr.mxu0 0.0
        %657 = vmatpush1.msra.mxu0 0.0
        %658 = vmatprep.subr.mxu0 0.0
        %659 = vmatpush1.msra.mxu0 0.0
        %660 = vmatprep.subr.mxu0 0.0
        %661 = vmatpush1.msra.mxu0 0.0
        %662 = vmatprep.subr.mxu0 0.0
        %663 = vmatpush1.msra.mxu0 0.0
        %664 = vmatprep.subr.mxu0 0.0
        %665 = vmatpush1.msra.mxu0 0.0
        %666 = vmatprep.subr.mxu0 0.0
        %667 = vmatpush1.msra.mxu0 0.0
        %668 = vmatprep.subr.mxu0 %v413
        %669 = vmatpush1.msra.mxu0 %v412
        %670 = vmatprep.subr.mxu0 %v409
        %671 = vmatpush1.msra.mxu0 %v408
        %672 = vmatprep.subr.mxu0 %v405
        %673 = vmatpush1.msra.mxu0 %v404
        %674 = vmatprep.subr.mxu0 %v401
        %675 = vmatpush1.msra.mxu0 %v400
        %676 = vmatprep.subr.mxu0 %v397
        %677 = vmatpush1.msra.mxu0 %v396
        %678 = vmatprep.subr.mxu0 0.0
        %679 = vmatpush2.msra.mxu0 0.0
        %680 = vmatprep.subr.mxu0 0.0
        %681 = vmatpush2.msra.mxu0 0.0
        %682 = vmatprep.subr.mxu0 0.0
        %683 = vmatpush2.msra.mxu0 0.0
        %684 = vmatprep.subr.mxu0 0.0
        %685 = vmatpush2.msra.mxu0 0.0
        %686 = vmatprep.subr.mxu0 0.0
        %687 = vmatpush2.msra.mxu0 0.0
        %688 = vmatprep.subr.mxu0 0.0
        %689 = vmatpush2.msra.mxu0 0.0
        %690 = vmatprep.subr.mxu0 0.0
        %691 = vmatpush2.msra.mxu0 0.0
        %692 = vmatprep.subr.mxu0 0.0
        %693 = vmatpush2.msra.mxu0 0.0
        %694 = vmatprep.subr.mxu0 0.0
        %695 = vmatpush2.msra.mxu0 0.0
        %696 = vmatprep.subr.mxu0 0.0
        %697 = vmatpush2.msra.mxu0 0.0
        %698 = vmatprep.subr.mxu0 0.0
        %699 = vmatpush2.msra.mxu0 0.0
        %700 = vmatprep.subr.mxu0 0.0
        %701 = vmatpush2.msra.mxu0 0.0
        %702 = vmatprep.subr.mxu0 0.0
        %703 = vmatpush2.msra.mxu0 0.0
        %704 = vmatprep.subr.mxu0 0.0
        %705 = vmatpush2.msra.mxu0 0.0
        %706 = vmatprep.subr.mxu0 0.0
        %707 = vmatpush2.msra.mxu0 0.0
        %708 = vmatprep.subr.mxu0 0.0
        %709 = vmatpush2.msra.mxu0 0.0
        %710 = vmatprep.mubr.f32.mxu0 0.0
        %711 = vmatmul.mubr.f32.gmra.mxu0 %v438
        %v712 = vpop.f32.mrf.mxu0
        %v713 = vadd.f32 %v427, %v712
        %v714 = vpop.f32.mrf.mxu0
        %v715 = vadd.f32 %v431, %v714
        %716 = vmatprep.mubr.f32.mxu0 0.0
        %717 = vmatmul.mubr.f32.gmra.mxu0 %v441
        %v718 = vpop.f32.mrf.mxu0
        %v719 = vadd.f32 %v427, %v718
        %v720 = vpop.f32.mrf.mxu0
        %v721 = vadd.f32 %v431, %v720
        %722 = vmatprep.mubr.f32.mxu0 0.0
        %723 = vmatmul.mubr.f32.gmra.mxu0 %v444
        %v724 = vpop.f32.mrf.mxu0
        %v725 = vadd.f32 %v427, %v724
        %v726 = vpop.f32.mrf.mxu0
        %v727 = vadd.f32 %v431, %v726
        %728 = vmatprep.mubr.f32.mxu0 0.0
        %729 = vmatmul.mubr.f32.gmra.mxu0 %v447
        %v730 = vpop.f32.mrf.mxu0
        %v731 = vadd.f32 %v427, %v730
        %v732 = vpop.f32.mrf.mxu0
        %v733 = vadd.f32 %v431, %v732
        %734 = vmatprep.mubr.f32.mxu0 0.0
        %735 = vmatmul.mubr.f32.gmra.mxu0 %v450
        %v736 = vpop.f32.mrf.mxu0
        %v737 = vadd.f32 %v427, %v736
        %v738 = vpop.f32.mrf.mxu0
        %v739 = vadd.f32 %v431, %v738
        %740 = vmatprep.mubr.f32.mxu0 0.0
        %741 = vmatmul.mubr.f32.gmra.mxu0 %v453
        %v742 = vpop.f32.mrf.mxu0
        %v743 = vadd.f32 %v427, %v742
        %v744 = vpop.f32.mrf.mxu0
        %v745 = vadd.f32 %v431, %v744
        %746 = vmatprep.mubr.f32.mxu0 0.0
        %747 = vmatmul.mubr.f32.gmra.mxu0 %v456
        %v748 = vpop.f32.mrf.mxu0
        %v749 = vadd.f32 %v427, %v748
        %v750 = vpop.f32.mrf.mxu0
        %v751 = vadd.f32 %v431, %v750
        %752 = vmatprep.mubr.f32.mxu0 0.0
        %753 = vmatmul.mubr.f32.gmra.mxu0 %v459
        %v754 = vpop.f32.mrf.mxu0
        %v755 = vadd.f32 %v427, %v754
        %v756 = vpop.f32.mrf.mxu0
        %v757 = vadd.f32 %v431, %v756
        %758 = vmatprep.mubr.f32.mxu0 0.0
        %759 = vmatmul.mubr.f32.gmra.mxu0 %v462
        %v760 = vpop.f32.mrf.mxu0
        %v761 = vadd.f32 %v427, %v760
        %v762 = vpop.f32.mrf.mxu0
        %v763 = vadd.f32 %v431, %v762
        %764 = vmatprep.mubr.f32.mxu0 0.0
        %765 = vmatmul.mubr.f32.gmra.mxu0 %v465
        %v766 = vpop.f32.mrf.mxu0
        %v767 = vadd.f32 %v427, %v766
        %v768 = vpop.f32.mrf.mxu0
        %v769 = vadd.f32 %v431, %v768
        %770 = vmatprep.mubr.f32.mxu0 0.0
        %771 = vmatmul.mubr.f32.gmra.mxu0 %v468
        %v772 = vpop.f32.mrf.mxu0
        %v773 = vadd.f32 %v427, %v772
        %v774 = vpop.f32.mrf.mxu0
        %v775 = vadd.f32 %v431, %v774
        %776 = vmatprep.mubr.f32.mxu0 0.0
        %777 = vmatmul.mubr.f32.gmra.mxu0 %v471
        %v778 = vpop.f32.mrf.mxu0
        %v779 = vadd.f32 %v427, %v778
        %v780 = vpop.f32.mrf.mxu0
        %v781 = vadd.f32 %v431, %v780
        %782 = vmatprep.mubr.f32.mxu0 0.0
        %783 = vmatmul.mubr.f32.gmra.mxu0 %v474
        %v784 = vpop.f32.mrf.mxu0
        %v785 = vadd.f32 %v427, %v784
        %v786 = vpop.f32.mrf.mxu0
        %v787 = vadd.f32 %v431, %v786
        %788 = vmatprep.mubr.f32.mxu0 0.0
        %789 = vmatmul.mubr.f32.gmra.mxu0 %v477
        %v790 = vpop.f32.mrf.mxu0
        %v791 = vadd.f32 %v427, %v790
        %v792 = vpop.f32.mrf.mxu0
        %v793 = vadd.f32 %v431, %v792
        %794 = vmatprep.mubr.f32.mxu0 0.0
        %795 = vmatmul.mubr.f32.gmra.mxu0 %v480
        %v796 = vpop.f32.mrf.mxu0
        %v797 = vadd.f32 %v427, %v796
        %v798 = vpop.f32.mrf.mxu0
        %v799 = vadd.f32 %v431, %v798
        %800 = vmatprep.mubr.f32.mxu0 0.0
        %801 = vmatmul.mubr.f32.gmra.mxu0 %v483
        %v802 = vpop.f32.mrf.mxu0
        %v803 = vadd.f32 %v427, %v802
        %v804 = vpop.f32.mrf.mxu0
        %v805 = vadd.f32 %v431, %v804
        %806 = vdwg.mxu0
        %v807 = vtanh.pop %v552
        %v808 = vtanh.pop %v554
        %v809 = vtanh.pop %v713
        %v810 = vtanh.pop %v715
        %v811 = vtanh.pop %v558
        %v812 = vtanh.pop %v560
        %v813 = vtanh.pop %v719
        %v814 = vtanh.pop %v721
        %v815 = vtanh.pop %v564
        %v816 = vtanh.pop %v566
        %v817 = vtanh.pop %v725
        %v818 = vtanh.pop %v727
        %v819 = vtanh.pop %v570
        %v820 = vtanh.pop %v572
        %v821 = vtanh.pop %v731
        %v822 = vtanh.pop %v733
        %v823 = vtanh.pop %v576
        %v824 = vtanh.pop %v578
        %v825 = vtanh.pop %v737
        %v826 = vtanh.pop %v739
        %v827 = vtanh.pop %v582
        %v828 = vtanh.pop %v584
        %v829 = vtanh.pop %v743
        %v830 = vtanh.pop %v745
        %v831 = vtanh.pop %v588
        %v832 = vtanh.pop %v590
        %v833 = vtanh.pop %v749
        %v834 = vtanh.pop %v751
        %v835 = vtanh.pop %v594
        %v836 = vtanh.pop %v596
        %v837 = vtanh.pop %v755
        %v838 = vtanh.pop %v757
        %v839 = vtanh.pop %v600
        %v840 = vtanh.pop %v602
        %v841 = vtanh.pop %v761
        %v842 = vtanh.pop %v763
        %v843 = vtanh.pop %v606
        %v844 = vtanh.pop %v608
        %v845 = vtanh.pop %v767
        %v846 = vtanh.pop %v769
        %v847 = vtanh.pop %v612
        %v848 = vtanh.pop %v614
        %v849 = vtanh.pop %v773
        %v850 = vtanh.pop %v775
        %v851 = vtanh.pop %v618
        %v852 = vtanh.pop %v620
        %v853 = vtanh.pop %v779
        %v854 = vtanh.pop %v781
        %v855 = vtanh.pop %v624
        %v856 = vtanh.pop %v626
        %v857 = vtanh.pop %v785
        %v858 = vtanh.pop %v787
        %v859 = vtanh.pop %v630
        %v860 = vtanh.pop %v632
        %v861 = vtanh.pop %v791
        %v862 = vtanh.pop %v793
        %v863 = vtanh.pop %v636
        %v864 = vtanh.pop %v638
        %v865 = vtanh.pop %v797
        %v866 = vtanh.pop %v799
        %v867 = vtanh.pop %v642
        %v868 = vtanh.pop %v644
        %v869 = vtanh.pop %v803
        %v870 = vtanh.pop %v805
        %v871 = vld [vmem:[#allocation2] sm:$0xff]
        %v872 = vld [vmem:[#allocation2 + $0x8] sm:$0xff]
        %v873 = vld [vmem:[#allocation2 + $0x10] sm:$0xff]
        %v874 = vld [vmem:[#allocation2 + $0x18] sm:$0xff]
        %v875 = vld [vmem:[#allocation2 + $0x20] sm:$0xff]
        %v876 = vld [vmem:[#allocation2 + $0x28] sm:$0xff]
        %v877 = vld [vmem:[#allocation2 + $0x30] sm:$0xff]
        %v878 = vld [vmem:[#allocation2 + $0x38] sm:$0xff]
        %v879 = vld [vmem:[#allocation2 + $0x40] sm:$0xff]
        %v880 = vld [vmem:[#allocation2 + $0x48] sm:$0xff]
        %v881 = vld [vmem:[#allocation2 + $0x50] sm:$0xff]
        %v882 = vld [vmem:[#allocation2 + $0x58] sm:$0xff]
        %v883 = vld [vmem:[#allocation2 + $0x60] sm:$0xff]
        %v884 = vld [vmem:[#allocation2 + $0x68] sm:$0xff]
        %v885 = vld [vmem:[#allocation2 + $0x70] sm:$0xff]
        %v886 = vld [vmem:[#allocation2 + $0x78] sm:$0xff]
        %v887 = vld [vmem:[#allocation2 + $0x80] sm:$0xff]
        %v888 = vld [vmem:[#allocation2 + $0x88] sm:$0xff]
        %v889 = vld [vmem:[#allocation2 + $0x90] sm:$0xff]
        %v890 = vld [vmem:[#allocation2 + $0x98] sm:$0xff]
        %v891 = vld [vmem:[#allocation2 + $0xa0] sm:$0xff]
        %v892 = vld [vmem:[#allocation2 + $0xa8] sm:$0xff]
        %v893 = vld [vmem:[#allocation2 + $0xb0] sm:$0xff]
        %v894 = vld [vmem:[#allocation2 + $0xb8] sm:$0xff]
        %v895 = vld [vmem:[#allocation2 + $0xc0] sm:$0xff]
        %v896 = vld [vmem:[#allocation2 + $0xc8] sm:$0xff]
        %v897 = vld [vmem:[#allocation2 + $0xd0] sm:$0xff]
        %v898 = vld [vmem:[#allocation2 + $0xd8] sm:$0xff]
        %v899 = vld [vmem:[#allocation2 + $0xe0] sm:$0xff]
        %v900 = vld [vmem:[#allocation2 + $0xe8] sm:$0xff]
        %v901 = vld [vmem:[#allocation2 + $0xf0] sm:$0xff]
        %v902 = vld [vmem:[#allocation2 + $0xf8] sm:$0xff]
        %v903 = vld [vmem:[#allocation2 + $0x100] sm:$0xff]
        %v904 = vld [vmem:[#allocation2 + $0x108] sm:$0xff]
        %v905 = vld [vmem:[#allocation2 + $0x110] sm:$0xff]
        %v906 = vld [vmem:[#allocation2 + $0x118] sm:$0xff]
        %v907 = vld [vmem:[#allocation2 + $0x120] sm:$0xff]
        %v908 = vld [vmem:[#allocation2 + $0x128] sm:$0xff]
        %v909 = vld [vmem:[#allocation2 + $0x130] sm:$0xff]
        %v910 = vld [vmem:[#allocation2 + $0x138] sm:$0xff]
        %v911 = vld [vmem:[#allocation2 + $0x140] sm:$0xff]
        %v912 = vld [vmem:[#allocation2 + $0x148] sm:$0xff]
        %v913 = vld [vmem:[#allocation2 + $0x150] sm:$0xff]
        %v914 = vld [vmem:[#allocation2 + $0x158] sm:$0xff]
        %v915 = vld [vmem:[#allocation2 + $0x160] sm:$0xff]
        %v916 = vld [vmem:[#allocation2 + $0x168] sm:$0xff]
        %v917 = vld [vmem:[#allocation2 + $0x170] sm:$0xff]
        %v918 = vld [vmem:[#allocation2 + $0x178] sm:$0xff]
        %v919 = vld [vmem:[#allocation2 + $0x180] sm:$0xff]
        %v920 = vld [vmem:[#allocation2 + $0x188] sm:$0xff]
        %v921 = vld [vmem:[#allocation2 + $0x190] sm:$0xff]
        %v922 = vld [vmem:[#allocation2 + $0x198] sm:$0xff]
        %v923 = vld [vmem:[#allocation2 + $0x1a0] sm:$0xff]
        %v924 = vld [vmem:[#allocation2 + $0x1a8] sm:$0xff]
        %v925 = vld [vmem:[#allocation2 + $0x1b0] sm:$0xff]
        %v926 = vld [vmem:[#allocation2 + $0x1b8] sm:$0xff]
        %v927 = vld [vmem:[#allocation2 + $0x1c0] sm:$0xff]
        %v928 = vld [vmem:[#allocation2 + $0x1c8] sm:$0xff]
        %v929 = vld [vmem:[#allocation2 + $0x1d0] sm:$0xff]
        %v930 = vld [vmem:[#allocation2 + $0x1d8] sm:$0xff]
        %v931 = vld [vmem:[#allocation2 + $0x1e0] sm:$0xff]
        %v932 = vld [vmem:[#allocation2 + $0x1e8] sm:$0xff]
        %v933 = vld [vmem:[#allocation2 + $0x1f0] sm:$0xff]
        %v934 = vld [vmem:[#allocation2 + $0x1f8] sm:$0xff]
        %v935 = vld [vmem:[#allocation2 + $0x200] sm:$0xff]
        %v936 = vld [vmem:[#allocation2 + $0x208] sm:$0xff]
        %v937 = vld [vmem:[#allocation2 + $0x210] sm:$0xff]
        %v938 = vld [vmem:[#allocation2 + $0x218] sm:$0xff]
        %v939 = vld [vmem:[#allocation2 + $0x220] sm:$0xff]
        %v940 = vld [vmem:[#allocation2 + $0x228] sm:$0xff]
        %v941 = vld [vmem:[#allocation2 + $0x230] sm:$0xff]
        %v942 = vld [vmem:[#allocation2 + $0x238] sm:$0xff]
        %v943 = vld [vmem:[#allocation2 + $0x240] sm:$0xff]
        %v944 = vld [vmem:[#allocation2 + $0x248] sm:$0xff]
        %v945 = vld [vmem:[#allocation2 + $0x250] sm:$0xff]
        %v946 = vld [vmem:[#allocation2 + $0x258] sm:$0xff]
        %v947 = vld [vmem:[#allocation2 + $0x260] sm:$0xff]
        %v948 = vld [vmem:[#allocation2 + $0x268] sm:$0xff]
        %v949 = vld [vmem:[#allocation2 + $0x270] sm:$0xff]
        %v950 = vld [vmem:[#allocation2 + $0x278] sm:$0xff]
        %v951 = vld [vmem:[#allocation2 + $0x280] sm:$0xff]
        %v952 = vld [vmem:[#allocation2 + $0x288] sm:$0xff]
        %v953 = vld [vmem:[#allocation2 + $0x290] sm:$0xff]
        %v954 = vld [vmem:[#allocation2 + $0x298] sm:$0xff]
        %v955 = vld [vmem:[#allocation2 + $0x2a0] sm:$0xff]
        %v956 = vld [vmem:[#allocation2 + $0x2a8] sm:$0xff]
        %v957 = vld [vmem:[#allocation2 + $0x2b0] sm:$0xff]
        %v958 = vld [vmem:[#allocation2 + $0x2b8] sm:$0xff]
        %v959 = vld [vmem:[#allocation2 + $0x2c0] sm:$0xff]
        %v960 = vld [vmem:[#allocation2 + $0x2c8] sm:$0xff]
        %v961 = vld [vmem:[#allocation2 + $0x2d0] sm:$0xff]
        %v962 = vld [vmem:[#allocation2 + $0x2d8] sm:$0xff]
        %v963 = vld [vmem:[#allocation2 + $0x2e0] sm:$0xff]
        %v964 = vld [vmem:[#allocation2 + $0x2e8] sm:$0xff]
        %v965 = vld [vmem:[#allocation2 + $0x2f0] sm:$0xff]
        %v966 = vld [vmem:[#allocation2 + $0x2f8] sm:$0xff]
        %v967 = vld [vmem:[#allocation2 + $0x300] sm:$0xff]
        %v968 = vld [vmem:[#allocation2 + $0x308] sm:$0xff]
        %v969 = vld [vmem:[#allocation2 + $0x310] sm:$0xff]
        %v970 = vld [vmem:[#allocation2 + $0x318] sm:$0xff]
        %v971 = vld [vmem:[#allocation2 + $0x320] sm:$0xff]
        %v972 = vld [vmem:[#allocation2 + $0x328] sm:$0xff]
        %v973 = vld [vmem:[#allocation2 + $0x330] sm:$0xff]
        %v974 = vld [vmem:[#allocation2 + $0x338] sm:$0xff]
        %v975 = vld [vmem:[#allocation2 + $0x340] sm:$0xff]
        %v976 = vld [vmem:[#allocation2 + $0x348] sm:$0xff]
        %v977 = vld [vmem:[#allocation2 + $0x350] sm:$0xff]
        %v978 = vld [vmem:[#allocation2 + $0x358] sm:$0xff]
        %v979 = vld [vmem:[#allocation2 + $0x360] sm:$0xff]
        %v980 = vld [vmem:[#allocation2 + $0x368] sm:$0xff]
        %v981 = vld [vmem:[#allocation2 + $0x370] sm:$0xff]
        %v982 = vld [vmem:[#allocation2 + $0x378] sm:$0xff]
        %v983 = vld [vmem:[#allocation2 + $0x380] sm:$0xff]
        %v984 = vld [vmem:[#allocation2 + $0x388] sm:$0xff]
        %v985 = vld [vmem:[#allocation2 + $0x390] sm:$0xff]
        %v986 = vld [vmem:[#allocation2 + $0x398] sm:$0xff]
        %v987 = vld [vmem:[#allocation2 + $0x3a0] sm:$0xff]
        %v988 = vld [vmem:[#allocation2 + $0x3a8] sm:$0xff]
        %v989 = vld [vmem:[#allocation2 + $0x3b0] sm:$0xff]
        %v990 = vld [vmem:[#allocation2 + $0x3b8] sm:$0xff]
        %v991 = vld [vmem:[#allocation2 + $0x3c0] sm:$0xff]
        %v992 = vld [vmem:[#allocation2 + $0x3c8] sm:$0xff]
        %v993 = vld [vmem:[#allocation2 + $0x3d0] sm:$0xff]
        %v994 = vld [vmem:[#allocation2 + $0x3d8] sm:$0xff]
        %v995 = vld [vmem:[#allocation2 + $0x3e0] sm:$0xff]
        %v996 = vld [vmem:[#allocation2 + $0x3e8] sm:$0xff]
        %v997 = vld [vmem:[#allocation2 + $0x3f0] sm:$0xff]
        %v998 = vld [vmem:[#allocation2 + $0x3f8] sm:$0xff]
        %v999 = vld [vmem:[#allocation2 + $0x400] sm:$0xff]
        %v1000 = vld [vmem:[#allocation2 + $0x408] sm:$0xff]
        %v1001 = vld [vmem:[#allocation2 + $0x410] sm:$0xff]
        %v1002 = vld [vmem:[#allocation2 + $0x418] sm:$0xff]
        %v1003 = vld [vmem:[#allocation2 + $0x420] sm:$0xff]
        %v1004 = vld [vmem:[#allocation2 + $0x428] sm:$0xff]
        %v1005 = vld [vmem:[#allocation2 + $0x430] sm:$0xff]
        %v1006 = vld [vmem:[#allocation2 + $0x438] sm:$0xff]
        %v1007 = vld [vmem:[#allocation2 + $0x440] sm:$0xff]
        %v1008 = vld [vmem:[#allocation2 + $0x448] sm:$0xff]
        %v1009 = vld [vmem:[#allocation2 + $0x450] sm:$0xff]
        %v1010 = vld [vmem:[#allocation2 + $0x458] sm:$0xff]
        %v1011 = vld [vmem:[#allocation2 + $0x460] sm:$0xff]
        %v1012 = vld [vmem:[#allocation2 + $0x468] sm:$0xff]
        %v1013 = vld [vmem:[#allocation2 + $0x470] sm:$0xff]
        %v1014 = vld [vmem:[#allocation2 + $0x478] sm:$0xff]
        %v1015 = vld [vmem:[#allocation2 + $0x480] sm:$0xff]
        %v1016 = vld [vmem:[#allocation2 + $0x488] sm:$0xff]
        %v1017 = vld [vmem:[#allocation2 + $0x490] sm:$0xff]
        %v1018 = vld [vmem:[#allocation2 + $0x498] sm:$0xff]
        %v1019 = vld [vmem:[#allocation2 + $0x4a0] sm:$0xff]
        %v1020 = vld [vmem:[#allocation2 + $0x4a8] sm:$0xff]
        %v1021 = vld [vmem:[#allocation2 + $0x4b0] sm:$0xff]
        %v1022 = vld [vmem:[#allocation2 + $0x4b8] sm:$0xff]
        %v1023 = vld [vmem:[#allocation2 + $0x4c0] sm:$0xff]
        %v1024 = vld [vmem:[#allocation2 + $0x4c8] sm:$0xff]
        %v1025 = vld [vmem:[#allocation2 + $0x4d0] sm:$0xff]
        %v1026 = vld [vmem:[#allocation2 + $0x4d8] sm:$0xff]
        %v1027 = vld [vmem:[#allocation2 + $0x4e0] sm:$0xff]
        %v1028 = vld [vmem:[#allocation2 + $0x4e8] sm:$0xff]
        %v1029 = vld [vmem:[#allocation2 + $0x4f0] sm:$0xff]
        %v1030 = vld [vmem:[#allocation2 + $0x4f8] sm:$0xff]
        %v1031 = vld [vmem:[#allocation2 + $0x500] sm:$0xff]
        %v1032 = vld [vmem:[#allocation2 + $0x508] sm:$0xff]
        %v1033 = vld [vmem:[#allocation2 + $0x510] sm:$0xff]
        %v1034 = vld [vmem:[#allocation2 + $0x518] sm:$0xff]
        %v1035 = vld [vmem:[#allocation2 + $0x520] sm:$0xff]
        %v1036 = vld [vmem:[#allocation2 + $0x528] sm:$0xff]
        %v1037 = vld [vmem:[#allocation2 + $0x530] sm:$0xff]
        %v1038 = vld [vmem:[#allocation2 + $0x538] sm:$0xff]
        %v1039 = vld [vmem:[#allocation2 + $0x540] sm:$0xff]
        %v1040 = vld [vmem:[#allocation2 + $0x548] sm:$0xff]
        %v1041 = vld [vmem:[#allocation2 + $0x550] sm:$0xff]
        %v1042 = vld [vmem:[#allocation2 + $0x558] sm:$0xff]
        %v1043 = vld [vmem:[#allocation2 + $0x560] sm:$0xff]
        %v1044 = vld [vmem:[#allocation2 + $0x568] sm:$0xff]
        %v1045 = vld [vmem:[#allocation2 + $0x570] sm:$0xff]
        %v1046 = vld [vmem:[#allocation2 + $0x578] sm:$0xff]
        %v1047 = vld [vmem:[#allocation2 + $0x580] sm:$0xff]
        %v1048 = vld [vmem:[#allocation2 + $0x588] sm:$0xff]
        %v1049 = vld [vmem:[#allocation2 + $0x590] sm:$0xff]
        %v1050 = vld [vmem:[#allocation2 + $0x598] sm:$0xff]
        %v1051 = vld [vmem:[#allocation2 + $0x5a0] sm:$0xff]
        %v1052 = vld [vmem:[#allocation2 + $0x5a8] sm:$0xff]
        %v1053 = vld [vmem:[#allocation2 + $0x5b0] sm:$0xff]
        %v1054 = vld [vmem:[#allocation2 + $0x5b8] sm:$0xff]
        %v1055 = vld [vmem:[#allocation2 + $0x5c0] sm:$0xff]
        %v1056 = vld [vmem:[#allocation2 + $0x5c8] sm:$0xff]
        %v1057 = vld [vmem:[#allocation2 + $0x5d0] sm:$0xff]
        %v1058 = vld [vmem:[#allocation2 + $0x5d8] sm:$0xff]
        %v1059 = vld [vmem:[#allocation2 + $0x5e0] sm:$0xff]
        %v1060 = vld [vmem:[#allocation2 + $0x5e8] sm:$0xff]
        %v1061 = vld [vmem:[#allocation2 + $0x5f0] sm:$0xff]
        %v1062 = vld [vmem:[#allocation2 + $0x5f8] sm:$0xff]
        %v1063 = vld [vmem:[#allocation2 + $0x600] sm:$0xff]
        %v1064 = vld [vmem:[#allocation2 + $0x608] sm:$0xff]
        %v1065 = vld [vmem:[#allocation2 + $0x610] sm:$0xff]
        %v1066 = vld [vmem:[#allocation2 + $0x618] sm:$0xff]
        %v1067 = vld [vmem:[#allocation2 + $0x620] sm:$0xff]
        %v1068 = vld [vmem:[#allocation2 + $0x628] sm:$0xff]
        %v1069 = vld [vmem:[#allocation2 + $0x630] sm:$0xff]
        %v1070 = vld [vmem:[#allocation2 + $0x638] sm:$0xff]
        %v1071 = vld [vmem:[#allocation2 + $0x640] sm:$0xff]
        %v1072 = vld [vmem:[#allocation2 + $0x648] sm:$0xff]
        %v1073 = vld [vmem:[#allocation2 + $0x650] sm:$0xff]
        %v1074 = vld [vmem:[#allocation2 + $0x658] sm:$0xff]
        %v1075 = vld [vmem:[#allocation2 + $0x660] sm:$0xff]
        %v1076 = vld [vmem:[#allocation2 + $0x668] sm:$0xff]
        %v1077 = vld [vmem:[#allocation2 + $0x670] sm:$0xff]
        %v1078 = vld [vmem:[#allocation2 + $0x678] sm:$0xff]
        %v1079 = vld [vmem:[#allocation2 + $0x680] sm:$0xff]
        %v1080 = vld [vmem:[#allocation2 + $0x688] sm:$0xff]
        %v1081 = vld [vmem:[#allocation2 + $0x690] sm:$0xff]
        %v1082 = vld [vmem:[#allocation2 + $0x698] sm:$0xff]
        %v1083 = vld [vmem:[#allocation2 + $0x6a0] sm:$0xff]
        %v1084 = vld [vmem:[#allocation2 + $0x6a8] sm:$0xff]
        %v1085 = vld [vmem:[#allocation2 + $0x6b0] sm:$0xff]
        %v1086 = vld [vmem:[#allocation2 + $0x6b8] sm:$0xff]
        %v1087 = vld [vmem:[#allocation2 + $0x6c0] sm:$0xff]
        %v1088 = vld [vmem:[#allocation2 + $0x6c8] sm:$0xff]
        %v1089 = vld [vmem:[#allocation2 + $0x6d0] sm:$0xff]
        %v1090 = vld [vmem:[#allocation2 + $0x6d8] sm:$0xff]
        %v1091 = vld [vmem:[#allocation2 + $0x6e0] sm:$0xff]
        %v1092 = vld [vmem:[#allocation2 + $0x6e8] sm:$0xff]
        %v1093 = vld [vmem:[#allocation2 + $0x6f0] sm:$0xff]
        %v1094 = vld [vmem:[#allocation2 + $0x6f8] sm:$0xff]
        %v1095 = vld [vmem:[#allocation2 + $0x700] sm:$0xff]
        %v1096 = vld [vmem:[#allocation2 + $0x708] sm:$0xff]
        %v1097 = vld [vmem:[#allocation2 + $0x710] sm:$0xff]
        %v1098 = vld [vmem:[#allocation2 + $0x718] sm:$0xff]
        %v1099 = vld [vmem:[#allocation2 + $0x720] sm:$0xff]
        %v1100 = vld [vmem:[#allocation2 + $0x728] sm:$0xff]
        %v1101 = vld [vmem:[#allocation2 + $0x730] sm:$0xff]
        %v1102 = vld [vmem:[#allocation2 + $0x738] sm:$0xff]
        %v1103 = vld [vmem:[#allocation2 + $0x740] sm:$0xff]
        %v1104 = vld [vmem:[#allocation2 + $0x748] sm:$0xff]
        %v1105 = vld [vmem:[#allocation2 + $0x750] sm:$0xff]
        %v1106 = vld [vmem:[#allocation2 + $0x758] sm:$0xff]
        %v1107 = vld [vmem:[#allocation2 + $0x760] sm:$0xff]
        %v1108 = vld [vmem:[#allocation2 + $0x768] sm:$0xff]
        %v1109 = vld [vmem:[#allocation2 + $0x770] sm:$0xff]
        %v1110 = vld [vmem:[#allocation2 + $0x778] sm:$0xff]
        %v1111 = vld [vmem:[#allocation2 + $0x780] sm:$0xff]
        %v1112 = vld [vmem:[#allocation2 + $0x788] sm:$0xff]
        %v1113 = vld [vmem:[#allocation2 + $0x790] sm:$0xff]
        %v1114 = vld [vmem:[#allocation2 + $0x798] sm:$0xff]
        %v1115 = vld [vmem:[#allocation2 + $0x7a0] sm:$0xff]
        %v1116 = vld [vmem:[#allocation2 + $0x7a8] sm:$0xff]
        %v1117 = vld [vmem:[#allocation2 + $0x7b0] sm:$0xff]
        %v1118 = vld [vmem:[#allocation2 + $0x7b8] sm:$0xff]
        %v1119 = vld [vmem:[#allocation2 + $0x7c0] sm:$0xff]
        %v1120 = vld [vmem:[#allocation2 + $0x7c8] sm:$0xff]
        %v1121 = vld [vmem:[#allocation2 + $0x7d0] sm:$0xff]
        %v1122 = vld [vmem:[#allocation2 + $0x7d8] sm:$0xff]
        %v1123 = vld [vmem:[#allocation2 + $0x7e0] sm:$0xff]
        %v1124 = vld [vmem:[#allocation2 + $0x7e8] sm:$0xff]
        %v1125 = vld [vmem:[#allocation2 + $0x7f0] sm:$0xff]
        %v1126 = vld [vmem:[#allocation2 + $0x7f8] sm:$0xff]
        %v1127 = vld [vmem:[%s4] sm:$0xf]
        %v1129 = vlaneseq
        %v1130 = vshrl.u32 %v1129, 7
        %v1131 = vsub.s32 0, %v1130
        %v1132 = vrot.slane %v1127, %v1131
        %v1133 = vlaneseq
        %v1134 = vshrl.u32 %v1133, 7
        %v1135 = vsub.s32 1, %v1134
        %v1136 = vrot.slane %v1127, %v1135
        %v1137 = vlaneseq
        %v1138 = vshrl.u32 %v1137, 7
        %v1139 = vsub.s32 2, %v1138
        %v1140 = vrot.slane %v1127, %v1139
        %v1141 = vlaneseq
        %v1142 = vshrl.u32 %v1141, 7
        %v1143 = vsub.s32 3, %v1142
        %v1144 = vrot.slane %v1127, %v1143
        %1149 = vmatprep.subr.mxu0 %v932
        %1150 = vmatpush1.msra.mxu0 %v931
        %1151 = vmatprep.subr.mxu0 %v928
        %1152 = vmatpush1.msra.mxu0 %v927
        %1153 = vmatprep.subr.mxu0 %v924
        %1154 = vmatpush1.msra.mxu0 %v923
        %1155 = vmatprep.subr.mxu0 %v920
        %1156 = vmatpush1.msra.mxu0 %v919
        %1157 = vmatprep.subr.mxu0 %v916
        %1158 = vmatpush1.msra.mxu0 %v915
        %1159 = vmatprep.subr.mxu0 %v912
        %1160 = vmatpush1.msra.mxu0 %v911
        %1161 = vmatprep.subr.mxu0 %v908
        %1162 = vmatpush1.msra.mxu0 %v907
        %1163 = vmatprep.subr.mxu0 %v904
        %1164 = vmatpush1.msra.mxu0 %v903
        %1165 = vmatprep.subr.mxu0 %v900
        %1166 = vmatpush1.msra.mxu0 %v899
        %1167 = vmatprep.subr.mxu0 %v896
        %1168 = vmatpush1.msra.mxu0 %v895
        %1169 = vmatprep.subr.mxu0 %v892
        %1170 = vmatpush1.msra.mxu0 %v891
        %1171 = vmatprep.subr.mxu0 %v888
        %1172 = vmatpush1.msra.mxu0 %v887
        %1173 = vmatprep.subr.mxu0 %v884
        %1174 = vmatpush1.msra.mxu0 %v883
        %1175 = vmatprep.subr.mxu0 %v880
        %1176 = vmatpush1.msra.mxu0 %v879
        %1177 = vmatprep.subr.mxu0 %v876
        %1178 = vmatpush1.msra.mxu0 %v875
        %1179 = vmatprep.subr.mxu0 %v872
        %1180 = vmatpush1.msra.mxu0 %v871
        %1181 = vmatprep.subr.mxu0 %v996
        %1182 = vmatpush2.msra.mxu0 %v995
        %1183 = vmatprep.subr.mxu0 %v992
        %1184 = vmatpush2.msra.mxu0 %v991
        %1185 = vmatprep.subr.mxu0 %v988
        %1186 = vmatpush2.msra.mxu0 %v987
        %1187 = vmatprep.subr.mxu0 %v984
        %1188 = vmatpush2.msra.mxu0 %v983
        %1189 = vmatprep.subr.mxu0 %v980
        %1190 = vmatpush2.msra.mxu0 %v979
        %1191 = vmatprep.subr.mxu0 %v976
        %1192 = vmatpush2.msra.mxu0 %v975
        %1193 = vmatprep.subr.mxu0 %v972
        %1194 = vmatpush2.msra.mxu0 %v971
        %1195 = vmatprep.subr.mxu0 %v968
        %1196 = vmatpush2.msra.mxu0 %v967
        %1197 = vmatprep.subr.mxu0 %v964
        %1198 = vmatpush2.msra.mxu0 %v963
        %1199 = vmatprep.subr.mxu0 %v960
        %1200 = vmatpush2.msra.mxu0 %v959
        %1201 = vmatprep.subr.mxu0 %v956
        %1202 = vmatpush2.msra.mxu0 %v955
        %1203 = vmatprep.subr.mxu0 %v952
        %1204 = vmatpush2.msra.mxu0 %v951
        %1205 = vmatprep.subr.mxu0 %v948
        %1206 = vmatpush2.msra.mxu0 %v947
        %1207 = vmatprep.subr.mxu0 %v944
        %1208 = vmatpush2.msra.mxu0 %v943
        %1209 = vmatprep.subr.mxu0 %v940
        %1210 = vmatpush2.msra.mxu0 %v939
        %1211 = vmatprep.subr.mxu0 %v936
        %1212 = vmatpush2.msra.mxu0 %v935
        %1213 = vmatprep.mubr.f32.mxu0 %v808
        %1214 = vmatmul.mubr.f32.gmra.mxu0 %v807
        %v1215 = vpop.f32.mrf.mxu0
        %v1216 = vadd.f32 %v1132, %v1215
        %v1217 = vpop.f32.mrf.mxu0
        %v1218 = vadd.f32 %v1136, %v1217
        %1219 = vmatprep.mubr.f32.mxu0 %v812
        %1220 = vmatmul.mubr.f32.gmra.mxu0 %v811
        %v1221 = vpop.f32.mrf.mxu0
        %v1222 = vadd.f32 %v1132, %v1221
        %v1223 = vpop.f32.mrf.mxu0
        %v1224 = vadd.f32 %v1136, %v1223
        %1225 = vmatprep.mubr.f32.mxu0 %v816
        %1226 = vmatmul.mubr.f32.gmra.mxu0 %v815
        %v1227 = vpop.f32.mrf.mxu0
        %v1228 = vadd.f32 %v1132, %v1227
        %v1229 = vpop.f32.mrf.mxu0
        %v1230 = vadd.f32 %v1136, %v1229
        %1231 = vmatprep.mubr.f32.mxu0 %v820
        %1232 = vmatmul.mubr.f32.gmra.mxu0 %v819
        %v1233 = vpop.f32.mrf.mxu0
        %v1234 = vadd.f32 %v1132, %v1233
        %v1235 = vpop.f32.mrf.mxu0
        %v1236 = vadd.f32 %v1136, %v1235
        %1237 = vmatprep.mubr.f32.mxu0 %v824
        %1238 = vmatmul.mubr.f32.gmra.mxu0 %v823
        %v1239 = vpop.f32.mrf.mxu0
        %v1240 = vadd.f32 %v1132, %v1239
        %v1241 = vpop.f32.mrf.mxu0
        %v1242 = vadd.f32 %v1136, %v1241
        %1243 = vmatprep.mubr.f32.mxu0 %v828
        %1244 = vmatmul.mubr.f32.gmra.mxu0 %v827
        %v1245 = vpop.f32.mrf.mxu0
        %v1246 = vadd.f32 %v1132, %v1245
        %v1247 = vpop.f32.mrf.mxu0
        %v1248 = vadd.f32 %v1136, %v1247
        %1249 = vmatprep.mubr.f32.mxu0 %v832
        %1250 = vmatmul.mubr.f32.gmra.mxu0 %v831
        %v1251 = vpop.f32.mrf.mxu0
        %v1252 = vadd.f32 %v1132, %v1251
        %v1253 = vpop.f32.mrf.mxu0
        %v1254 = vadd.f32 %v1136, %v1253
        %1255 = vmatprep.mubr.f32.mxu0 %v836
        %1256 = vmatmul.mubr.f32.gmra.mxu0 %v835
        %v1257 = vpop.f32.mrf.mxu0
        %v1258 = vadd.f32 %v1132, %v1257
        %v1259 = vpop.f32.mrf.mxu0
        %v1260 = vadd.f32 %v1136, %v1259
        %1261 = vmatprep.mubr.f32.mxu0 %v840
        %1262 = vmatmul.mubr.f32.gmra.mxu0 %v839
        %v1263 = vpop.f32.mrf.mxu0
        %v1264 = vadd.f32 %v1132, %v1263
        %v1265 = vpop.f32.mrf.mxu0
        %v1266 = vadd.f32 %v1136, %v1265
        %1267 = vmatprep.mubr.f32.mxu0 %v844
        %1268 = vmatmul.mubr.f32.gmra.mxu0 %v843
        %v1269 = vpop.f32.mrf.mxu0
        %v1270 = vadd.f32 %v1132, %v1269
        %v1271 = vpop.f32.mrf.mxu0
        %v1272 = vadd.f32 %v1136, %v1271
        %1273 = vmatprep.mubr.f32.mxu0 %v848
        %1274 = vmatmul.mubr.f32.gmra.mxu0 %v847
        %v1275 = vpop.f32.mrf.mxu0
        %v1276 = vadd.f32 %v1132, %v1275
        %v1277 = vpop.f32.mrf.mxu0
        %v1278 = vadd.f32 %v1136, %v1277
        %1279 = vmatprep.mubr.f32.mxu0 %v852
        %1280 = vmatmul.mubr.f32.gmra.mxu0 %v851
        %v1281 = vpop.f32.mrf.mxu0
        %v1282 = vadd.f32 %v1132, %v1281
        %v1283 = vpop.f32.mrf.mxu0
        %v1284 = vadd.f32 %v1136, %v1283
        %1285 = vmatprep.mubr.f32.mxu0 %v856
        %1286 = vmatmul.mubr.f32.gmra.mxu0 %v855
        %v1287 = vpop.f32.mrf.mxu0
        %v1288 = vadd.f32 %v1132, %v1287
        %v1289 = vpop.f32.mrf.mxu0
        %v1290 = vadd.f32 %v1136, %v1289
        %1291 = vmatprep.mubr.f32.mxu0 %v860
        %1292 = vmatmul.mubr.f32.gmra.mxu0 %v859
        %v1293 = vpop.f32.mrf.mxu0
        %v1294 = vadd.f32 %v1132, %v1293
        %v1295 = vpop.f32.mrf.mxu0
        %v1296 = vadd.f32 %v1136, %v1295
        %1297 = vmatprep.mubr.f32.mxu0 %v864
        %1298 = vmatmul.mubr.f32.gmra.mxu0 %v863
        %v1299 = vpop.f32.mrf.mxu0
        %v1300 = vadd.f32 %v1132, %v1299
        %v1301 = vpop.f32.mrf.mxu0
        %v1302 = vadd.f32 %v1136, %v1301
        %1303 = vmatprep.mubr.f32.mxu0 %v868
        %1304 = vmatmul.mubr.f32.gmra.mxu0 %v867
        %v1305 = vpop.f32.mrf.mxu0
        %v1306 = vadd.f32 %v1132, %v1305
        %v1307 = vpop.f32.mrf.mxu0
        %v1308 = vadd.f32 %v1136, %v1307
        %1309 = vdwg.mxu0
        %1310 = vmatprep.subr.mxu0 %v1060
        %1311 = vmatpush1.msra.mxu0 %v1059
        %1312 = vmatprep.subr.mxu0 %v1056
        %1313 = vmatpush1.msra.mxu0 %v1055
        %1314 = vmatprep.subr.mxu0 %v1052
        %1315 = vmatpush1.msra.mxu0 %v1051
        %1316 = vmatprep.subr.mxu0 %v1048
        %1317 = vmatpush1.msra.mxu0 %v1047
        %1318 = vmatprep.subr.mxu0 %v1044
        %1319 = vmatpush1.msra.mxu0 %v1043
        %1320 = vmatprep.subr.mxu0 %v1040
        %1321 = vmatpush1.msra.mxu0 %v1039
        %1322 = vmatprep.subr.mxu0 %v1036
        %1323 = vmatpush1.msra.mxu0 %v1035
        %1324 = vmatprep.subr.mxu0 %v1032
        %1325 = vmatpush1.msra.mxu0 %v1031
        %1326 = vmatprep.subr.mxu0 %v1028
        %1327 = vmatpush1.msra.mxu0 %v1027
        %1328 = vmatprep.subr.mxu0 %v1024
        %1329 = vmatpush1.msra.mxu0 %v1023
        %1330 = vmatprep.subr.mxu0 %v1020
        %1331 = vmatpush1.msra.mxu0 %v1019
        %1332 = vmatprep.subr.mxu0 %v1016
        %1333 = vmatpush1.msra.mxu0 %v1015
        %1334 = vmatprep.subr.mxu0 %v1012
        %1335 = vmatpush1.msra.mxu0 %v1011
        %1336 = vmatprep.subr.mxu0 %v1008
        %1337 = vmatpush1.msra.mxu0 %v1007
        %1338 = vmatprep.subr.mxu0 %v1004
        %1339 = vmatpush1.msra.mxu0 %v1003
        %1340 = vmatprep.subr.mxu0 %v1000
        %1341 = vmatpush1.msra.mxu0 %v999
        %1342 = vmatprep.subr.mxu0 %v1124
        %1343 = vmatpush2.msra.mxu0 %v1123
        %1344 = vmatprep.subr.mxu0 %v1120
        %1345 = vmatpush2.msra.mxu0 %v1119
        %1346 = vmatprep.subr.mxu0 %v1116
        %1347 = vmatpush2.msra.mxu0 %v1115
        %1348 = vmatprep.subr.mxu0 %v1112
        %1349 = vmatpush2.msra.mxu0 %v1111
        %1350 = vmatprep.subr.mxu0 %v1108
        %1351 = vmatpush2.msra.mxu0 %v1107
        %1352 = vmatprep.subr.mxu0 %v1104
        %1353 = vmatpush2.msra.mxu0 %v1103
        %1354 = vmatprep.subr.mxu0 %v1100
        %1355 = vmatpush2.msra.mxu0 %v1099
        %1356 = vmatprep.subr.mxu0 %v1096
        %1357 = vmatpush2.msra.mxu0 %v1095
        %1358 = vmatprep.subr.mxu0 %v1092
        %1359 = vmatpush2.msra.mxu0 %v1091
        %1360 = vmatprep.subr.mxu0 %v1088
        %1361 = vmatpush2.msra.mxu0 %v1087
        %1362 = vmatprep.subr.mxu0 %v1084
        %1363 = vmatpush2.msra.mxu0 %v1083
        %1364 = vmatprep.subr.mxu0 %v1080
        %1365 = vmatpush2.msra.mxu0 %v1079
        %1366 = vmatprep.subr.mxu0 %v1076
        %1367 = vmatpush2.msra.mxu0 %v1075
        %1368 = vmatprep.subr.mxu0 %v1072
        %1369 = vmatpush2.msra.mxu0 %v1071
        %1370 = vmatprep.subr.mxu0 %v1068
        %1371 = vmatpush2.msra.mxu0 %v1067
        %1372 = vmatprep.subr.mxu0 %v1064
        %1373 = vmatpush2.msra.mxu0 %v1063
        %1374 = vmatprep.mubr.f32.mxu0 %v810
        %1375 = vmatmul.mubr.f32.gmra.mxu0 %v809
        %v1376 = vpop.f32.mrf.mxu0
        %v1377 = vadd.f32 %v1216, %v1376
        %v1378 = vpop.f32.mrf.mxu0
        %v1379 = vadd.f32 %v1218, %v1378
        %1380 = vmatprep.mubr.f32.mxu0 %v814
        %1381 = vmatmul.mubr.f32.gmra.mxu0 %v813
        %v1382 = vpop.f32.mrf.mxu0
        %v1383 = vadd.f32 %v1222, %v1382
        %v1384 = vpop.f32.mrf.mxu0
        %v1385 = vadd.f32 %v1224, %v1384
        %1386 = vmatprep.mubr.f32.mxu0 %v818
        %1387 = vmatmul.mubr.f32.gmra.mxu0 %v817
        %v1388 = vpop.f32.mrf.mxu0
        %v1389 = vadd.f32 %v1228, %v1388
        %v1390 = vpop.f32.mrf.mxu0
        %v1391 = vadd.f32 %v1230, %v1390
        %1392 = vmatprep.mubr.f32.mxu0 %v822
        %1393 = vmatmul.mubr.f32.gmra.mxu0 %v821
        %v1394 = vpop.f32.mrf.mxu0
        %v1395 = vadd.f32 %v1234, %v1394
        %v1396 = vpop.f32.mrf.mxu0
        %v1397 = vadd.f32 %v1236, %v1396
        %1398 = vmatprep.mubr.f32.mxu0 %v826
        %1399 = vmatmul.mubr.f32.gmra.mxu0 %v825
        %v1400 = vpop.f32.mrf.mxu0
        %v1401 = vadd.f32 %v1240, %v1400
        %v1402 = vpop.f32.mrf.mxu0
        %v1403 = vadd.f32 %v1242, %v1402
        %1404 = vmatprep.mubr.f32.mxu0 %v830
        %1405 = vmatmul.mubr.f32.gmra.mxu0 %v829
        %v1406 = vpop.f32.mrf.mxu0
        %v1407 = vadd.f32 %v1246, %v1406
        %v1408 = vpop.f32.mrf.mxu0
        %v1409 = vadd.f32 %v1248, %v1408
        %1410 = vmatprep.mubr.f32.mxu0 %v834
        %1411 = vmatmul.mubr.f32.gmra.mxu0 %v833
        %v1412 = vpop.f32.mrf.mxu0
        %v1413 = vadd.f32 %v1252, %v1412
        %v1414 = vpop.f32.mrf.mxu0
        %v1415 = vadd.f32 %v1254, %v1414
        %1416 = vmatprep.mubr.f32.mxu0 %v838
        %1417 = vmatmul.mubr.f32.gmra.mxu0 %v837
        %v1418 = vpop.f32.mrf.mxu0
        %v1419 = vadd.f32 %v1258, %v1418
        %v1420 = vpop.f32.mrf.mxu0
        %v1421 = vadd.f32 %v1260, %v1420
        %1422 = vmatprep.mubr.f32.mxu0 %v842
        %1423 = vmatmul.mubr.f32.gmra.mxu0 %v841
        %v1424 = vpop.f32.mrf.mxu0
        %v1425 = vadd.f32 %v1264, %v1424
        %v1426 = vpop.f32.mrf.mxu0
        %v1427 = vadd.f32 %v1266, %v1426
        %1428 = vmatprep.mubr.f32.mxu0 %v846
        %1429 = vmatmul.mubr.f32.gmra.mxu0 %v845
        %v1430 = vpop.f32.mrf.mxu0
        %v1431 = vadd.f32 %v1270, %v1430
        %v1432 = vpop.f32.mrf.mxu0
        %v1433 = vadd.f32 %v1272, %v1432
        %1434 = vmatprep.mubr.f32.mxu0 %v850
        %1435 = vmatmul.mubr.f32.gmra.mxu0 %v849
        %v1436 = vpop.f32.mrf.mxu0
        %v1437 = vadd.f32 %v1276, %v1436
        %v1438 = vpop.f32.mrf.mxu0
        %v1439 = vadd.f32 %v1278, %v1438
        %1440 = vmatprep.mubr.f32.mxu0 %v854
        %1441 = vmatmul.mubr.f32.gmra.mxu0 %v853
        %v1442 = vpop.f32.mrf.mxu0
        %v1443 = vadd.f32 %v1282, %v1442
        %v1444 = vpop.f32.mrf.mxu0
        %v1445 = vadd.f32 %v1284, %v1444
        %1446 = vmatprep.mubr.f32.mxu0 %v858
        %1447 = vmatmul.mubr.f32.gmra.mxu0 %v857
        %v1448 = vpop.f32.mrf.mxu0
        %v1449 = vadd.f32 %v1288, %v1448
        %v1450 = vpop.f32.mrf.mxu0
        %v1451 = vadd.f32 %v1290, %v1450
        %1452 = vmatprep.mubr.f32.mxu0 %v862
        %1453 = vmatmul.mubr.f32.gmra.mxu0 %v861
        %v1454 = vpop.f32.mrf.mxu0
        %v1455 = vadd.f32 %v1294, %v1454
        %v1456 = vpop.f32.mrf.mxu0
        %v1457 = vadd.f32 %v1296, %v1456
        %1458 = vmatprep.mubr.f32.mxu0 %v866
        %1459 = vmatmul.mubr.f32.gmra.mxu0 %v865
        %v1460 = vpop.f32.mrf.mxu0
        %v1461 = vadd.f32 %v1300, %v1460
        %v1462 = vpop.f32.mrf.mxu0
        %v1463 = vadd.f32 %v1302, %v1462
        %1464 = vmatprep.mubr.f32.mxu0 %v870
        %1465 = vmatmul.mubr.f32.gmra.mxu0 %v869
        %v1466 = vpop.f32.mrf.mxu0
        %v1467 = vadd.f32 %v1306, %v1466
        %v1468 = vpop.f32.mrf.mxu0
        %v1469 = vadd.f32 %v1308, %v1468
        %1470 = vdwg.mxu0
        %1471 = vmatprep.subr.mxu0 %v934
        %1472 = vmatpush1.msra.mxu0 %v933
        %1473 = vmatprep.subr.mxu0 %v930
        %1474 = vmatpush1.msra.mxu0 %v929
        %1475 = vmatprep.subr.mxu0 %v926
        %1476 = vmatpush1.msra.mxu0 %v925
        %1477 = vmatprep.subr.mxu0 %v922
        %1478 = vmatpush1.msra.mxu0 %v921
        %1479 = vmatprep.subr.mxu0 %v918
        %1480 = vmatpush1.msra.mxu0 %v917
        %1481 = vmatprep.subr.mxu0 %v914
        %1482 = vmatpush1.msra.mxu0 %v913
        %1483 = vmatprep.subr.mxu0 %v910
        %1484 = vmatpush1.msra.mxu0 %v909
        %1485 = vmatprep.subr.mxu0 %v906
        %1486 = vmatpush1.msra.mxu0 %v905
        %1487 = vmatprep.subr.mxu0 %v902
        %1488 = vmatpush1.msra.mxu0 %v901
        %1489 = vmatprep.subr.mxu0 %v898
        %1490 = vmatpush1.msra.mxu0 %v897
        %1491 = vmatprep.subr.mxu0 %v894
        %1492 = vmatpush1.msra.mxu0 %v893
        %1493 = vmatprep.subr.mxu0 %v890
        %1494 = vmatpush1.msra.mxu0 %v889
        %1495 = vmatprep.subr.mxu0 %v886
        %1496 = vmatpush1.msra.mxu0 %v885
        %1497 = vmatprep.subr.mxu0 %v882
        %1498 = vmatpush1.msra.mxu0 %v881
        %1499 = vmatprep.subr.mxu0 %v878
        %1500 = vmatpush1.msra.mxu0 %v877
        %1501 = vmatprep.subr.mxu0 %v874
        %1502 = vmatpush1.msra.mxu0 %v873
        %1503 = vmatprep.subr.mxu0 %v998
        %1504 = vmatpush2.msra.mxu0 %v997
        %1505 = vmatprep.subr.mxu0 %v994
        %1506 = vmatpush2.msra.mxu0 %v993
        %1507 = vmatprep.subr.mxu0 %v990
        %1508 = vmatpush2.msra.mxu0 %v989
        %1509 = vmatprep.subr.mxu0 %v986
        %1510 = vmatpush2.msra.mxu0 %v985
        %1511 = vmatprep.subr.mxu0 %v982
        %1512 = vmatpush2.msra.mxu0 %v981
        %1513 = vmatprep.subr.mxu0 %v978
        %1514 = vmatpush2.msra.mxu0 %v977
        %1515 = vmatprep.subr.mxu0 %v974
        %1516 = vmatpush2.msra.mxu0 %v973
        %1517 = vmatprep.subr.mxu0 %v970
        %1518 = vmatpush2.msra.mxu0 %v969
        %1519 = vmatprep.subr.mxu0 %v966
        %1520 = vmatpush2.msra.mxu0 %v965
        %1521 = vmatprep.subr.mxu0 %v962
        %1522 = vmatpush2.msra.mxu0 %v961
        %1523 = vmatprep.subr.mxu0 %v958
        %1524 = vmatpush2.msra.mxu0 %v957
        %1525 = vmatprep.subr.mxu0 %v954
        %1526 = vmatpush2.msra.mxu0 %v953
        %1527 = vmatprep.subr.mxu0 %v950
        %1528 = vmatpush2.msra.mxu0 %v949
        %1529 = vmatprep.subr.mxu0 %v946
        %1530 = vmatpush2.msra.mxu0 %v945
        %1531 = vmatprep.subr.mxu0 %v942
        %1532 = vmatpush2.msra.mxu0 %v941
        %1533 = vmatprep.subr.mxu0 %v938
        %1534 = vmatpush2.msra.mxu0 %v937
        %1535 = vmatprep.mubr.f32.mxu0 %v808
        %1536 = vmatmul.mubr.f32.gmra.mxu0 %v807
        %v1537 = vpop.f32.mrf.mxu0
        %v1538 = vadd.f32 %v1140, %v1537
        %v1539 = vpop.f32.mrf.mxu0
        %v1540 = vadd.f32 %v1144, %v1539
        %1541 = vmatprep.mubr.f32.mxu0 %v812
        %1542 = vmatmul.mubr.f32.gmra.mxu0 %v811
        %v1543 = vpop.f32.mrf.mxu0
        %v1544 = vadd.f32 %v1140, %v1543
        %v1545 = vpop.f32.mrf.mxu0
        %v1546 = vadd.f32 %v1144, %v1545
        %1547 = vmatprep.mubr.f32.mxu0 %v816
        %1548 = vmatmul.mubr.f32.gmra.mxu0 %v815
        %v1549 = vpop.f32.mrf.mxu0
        %v1550 = vadd.f32 %v1140, %v1549
        %v1551 = vpop.f32.mrf.mxu0
        %v1552 = vadd.f32 %v1144, %v1551
        %1553 = vmatprep.mubr.f32.mxu0 %v820
        %1554 = vmatmul.mubr.f32.gmra.mxu0 %v819
        %v1555 = vpop.f32.mrf.mxu0
        %v1556 = vadd.f32 %v1140, %v1555
        %v1557 = vpop.f32.mrf.mxu0
        %v1558 = vadd.f32 %v1144, %v1557
        %1559 = vmatprep.mubr.f32.mxu0 %v824
        %1560 = vmatmul.mubr.f32.gmra.mxu0 %v823
        %v1561 = vpop.f32.mrf.mxu0
        %v1562 = vadd.f32 %v1140, %v1561
        %v1563 = vpop.f32.mrf.mxu0
        %v1564 = vadd.f32 %v1144, %v1563
        %1565 = vmatprep.mubr.f32.mxu0 %v828
        %1566 = vmatmul.mubr.f32.gmra.mxu0 %v827
        %v1567 = vpop.f32.mrf.mxu0
        %v1568 = vadd.f32 %v1140, %v1567
        %v1569 = vpop.f32.mrf.mxu0
        %v1570 = vadd.f32 %v1144, %v1569
        %1571 = vmatprep.mubr.f32.mxu0 %v832
        %1572 = vmatmul.mubr.f32.gmra.mxu0 %v831
        %v1573 = vpop.f32.mrf.mxu0
        %v1574 = vadd.f32 %v1140, %v1573
        %v1575 = vpop.f32.mrf.mxu0
        %v1576 = vadd.f32 %v1144, %v1575
        %1577 = vmatprep.mubr.f32.mxu0 %v836
        %1578 = vmatmul.mubr.f32.gmra.mxu0 %v835
        %v1579 = vpop.f32.mrf.mxu0
        %v1580 = vadd.f32 %v1140, %v1579
        %v1581 = vpop.f32.mrf.mxu0
        %v1582 = vadd.f32 %v1144, %v1581
        %1583 = vmatprep.mubr.f32.mxu0 %v840
        %1584 = vmatmul.mubr.f32.gmra.mxu0 %v839
        %v1585 = vpop.f32.mrf.mxu0
        %v1586 = vadd.f32 %v1140, %v1585
        %v1587 = vpop.f32.mrf.mxu0
        %v1588 = vadd.f32 %v1144, %v1587
        %1589 = vmatprep.mubr.f32.mxu0 %v844
        %1590 = vmatmul.mubr.f32.gmra.mxu0 %v843
        %v1591 = vpop.f32.mrf.mxu0
        %v1592 = vadd.f32 %v1140, %v1591
        %v1593 = vpop.f32.mrf.mxu0
        %v1594 = vadd.f32 %v1144, %v1593
        %1595 = vmatprep.mubr.f32.mxu0 %v848
        %1596 = vmatmul.mubr.f32.gmra.mxu0 %v847
        %v1597 = vpop.f32.mrf.mxu0
        %v1598 = vadd.f32 %v1140, %v1597
        %v1599 = vpop.f32.mrf.mxu0
        %v1600 = vadd.f32 %v1144, %v1599
        %1601 = vmatprep.mubr.f32.mxu0 %v852
        %1602 = vmatmul.mubr.f32.gmra.mxu0 %v851
        %v1603 = vpop.f32.mrf.mxu0
        %v1604 = vadd.f32 %v1140, %v1603
        %v1605 = vpop.f32.mrf.mxu0
        %v1606 = vadd.f32 %v1144, %v1605
        %1607 = vmatprep.mubr.f32.mxu0 %v856
        %1608 = vmatmul.mubr.f32.gmra.mxu0 %v855
        %v1609 = vpop.f32.mrf.mxu0
        %v1610 = vadd.f32 %v1140, %v1609
        %v1611 = vpop.f32.mrf.mxu0
        %v1612 = vadd.f32 %v1144, %v1611
        %1613 = vmatprep.mubr.f32.mxu0 %v860
        %1614 = vmatmul.mubr.f32.gmra.mxu0 %v859
        %v1615 = vpop.f32.mrf.mxu0
        %v1616 = vadd.f32 %v1140, %v1615
        %v1617 = vpop.f32.mrf.mxu0
        %v1618 = vadd.f32 %v1144, %v1617
        %1619 = vmatprep.mubr.f32.mxu0 %v864
        %1620 = vmatmul.mubr.f32.gmra.mxu0 %v863
        %v1621 = vpop.f32.mrf.mxu0
        %v1622 = vadd.f32 %v1140, %v1621
        %v1623 = vpop.f32.mrf.mxu0
        %v1624 = vadd.f32 %v1144, %v1623
        %1625 = vmatprep.mubr.f32.mxu0 %v868
        %1626 = vmatmul.mubr.f32.gmra.mxu0 %v867
        %v1627 = vpop.f32.mrf.mxu0
        %v1628 = vadd.f32 %v1140, %v1627
        %v1629 = vpop.f32.mrf.mxu0
        %v1630 = vadd.f32 %v1144, %v1629
        %1631 = vdwg.mxu0
        %1632 = vmatprep.subr.mxu0 %v1062
        %1633 = vmatpush1.msra.mxu0 %v1061
        %1634 = vmatprep.subr.mxu0 %v1058
        %1635 = vmatpush1.msra.mxu0 %v1057
        %1636 = vmatprep.subr.mxu0 %v1054
        %1637 = vmatpush1.msra.mxu0 %v1053
        %1638 = vmatprep.subr.mxu0 %v1050
        %1639 = vmatpush1.msra.mxu0 %v1049
        %1640 = vmatprep.subr.mxu0 %v1046
        %1641 = vmatpush1.msra.mxu0 %v1045
        %1642 = vmatprep.subr.mxu0 %v1042
        %1643 = vmatpush1.msra.mxu0 %v1041
        %1644 = vmatprep.subr.mxu0 %v1038
        %1645 = vmatpush1.msra.mxu0 %v1037
        %1646 = vmatprep.subr.mxu0 %v1034
        %1647 = vmatpush1.msra.mxu0 %v1033
        %1648 = vmatprep.subr.mxu0 %v1030
        %1649 = vmatpush1.msra.mxu0 %v1029
        %1650 = vmatprep.subr.mxu0 %v1026
        %1651 = vmatpush1.msra.mxu0 %v1025
        %1652 = vmatprep.subr.mxu0 %v1022
        %1653 = vmatpush1.msra.mxu0 %v1021
        %1654 = vmatprep.subr.mxu0 %v1018
        %1655 = vmatpush1.msra.mxu0 %v1017
        %1656 = vmatprep.subr.mxu0 %v1014
        %1657 = vmatpush1.msra.mxu0 %v1013
        %1658 = vmatprep.subr.mxu0 %v1010
        %1659 = vmatpush1.msra.mxu0 %v1009
        %1660 = vmatprep.subr.mxu0 %v1006
        %1661 = vmatpush1.msra.mxu0 %v1005
        %1662 = vmatprep.subr.mxu0 %v1002
        %1663 = vmatpush1.msra.mxu0 %v1001
        %1664 = vmatprep.subr.mxu0 %v1126
        %1665 = vmatpush2.msra.mxu0 %v1125
        %1666 = vmatprep.subr.mxu0 %v1122
        %1667 = vmatpush2.msra.mxu0 %v1121
        %1668 = vmatprep.subr.mxu0 %v1118
        %1669 = vmatpush2.msra.mxu0 %v1117
        %1670 = vmatprep.subr.mxu0 %v1114
        %1671 = vmatpush2.msra.mxu0 %v1113
        %1672 = vmatprep.subr.mxu0 %v1110
        %1673 = vmatpush2.msra.mxu0 %v1109
        %1674 = vmatprep.subr.mxu0 %v1106
        %1675 = vmatpush2.msra.mxu0 %v1105
        %1676 = vmatprep.subr.mxu0 %v1102
        %1677 = vmatpush2.msra.mxu0 %v1101
        %1678 = vmatprep.subr.mxu0 %v1098
        %1679 = vmatpush2.msra.mxu0 %v1097
        %1680 = vmatprep.subr.mxu0 %v1094
        %1681 = vmatpush2.msra.mxu0 %v1093
        %1682 = vmatprep.subr.mxu0 %v1090
        %1683 = vmatpush2.msra.mxu0 %v1089
        %1684 = vmatprep.subr.mxu0 %v1086
        %1685 = vmatpush2.msra.mxu0 %v1085
        %1686 = vmatprep.subr.mxu0 %v1082
        %1687 = vmatpush2.msra.mxu0 %v1081
        %1688 = vmatprep.subr.mxu0 %v1078
        %1689 = vmatpush2.msra.mxu0 %v1077
        %1690 = vmatprep.subr.mxu0 %v1074
        %1691 = vmatpush2.msra.mxu0 %v1073
        %1692 = vmatprep.subr.mxu0 %v1070
        %1693 = vmatpush2.msra.mxu0 %v1069
        %1694 = vmatprep.subr.mxu0 %v1066
        %1695 = vmatpush2.msra.mxu0 %v1065
        %1696 = vmatprep.mubr.f32.mxu0 %v810
        %1697 = vmatmul.mubr.f32.gmra.mxu0 %v809
        %v1698 = vpop.f32.mrf.mxu0
        %v1699 = vadd.f32 %v1538, %v1698
        %v1700 = vpop.f32.mrf.mxu0
        %v1701 = vadd.f32 %v1540, %v1700
        %1702 = vmatprep.mubr.f32.mxu0 %v814
        %1703 = vmatmul.mubr.f32.gmra.mxu0 %v813
        %v1704 = vpop.f32.mrf.mxu0
        %v1705 = vadd.f32 %v1544, %v1704
        %v1706 = vpop.f32.mrf.mxu0
        %v1707 = vadd.f32 %v1546, %v1706
        %1708 = vmatprep.mubr.f32.mxu0 %v818
        %1709 = vmatmul.mubr.f32.gmra.mxu0 %v817
        %v1710 = vpop.f32.mrf.mxu0
        %v1711 = vadd.f32 %v1550, %v1710
        %v1712 = vpop.f32.mrf.mxu0
        %v1713 = vadd.f32 %v1552, %v1712
        %1714 = vmatprep.mubr.f32.mxu0 %v822
        %1715 = vmatmul.mubr.f32.gmra.mxu0 %v821
        %v1716 = vpop.f32.mrf.mxu0
        %v1717 = vadd.f32 %v1556, %v1716
        %v1718 = vpop.f32.mrf.mxu0
        %v1719 = vadd.f32 %v1558, %v1718
        %1720 = vmatprep.mubr.f32.mxu0 %v826
        %1721 = vmatmul.mubr.f32.gmra.mxu0 %v825
        %v1722 = vpop.f32.mrf.mxu0
        %v1723 = vadd.f32 %v1562, %v1722
        %v1724 = vpop.f32.mrf.mxu0
        %v1725 = vadd.f32 %v1564, %v1724
        %1726 = vmatprep.mubr.f32.mxu0 %v830
        %1727 = vmatmul.mubr.f32.gmra.mxu0 %v829
        %v1728 = vpop.f32.mrf.mxu0
        %v1729 = vadd.f32 %v1568, %v1728
        %v1730 = vpop.f32.mrf.mxu0
        %v1731 = vadd.f32 %v1570, %v1730
        %1732 = vmatprep.mubr.f32.mxu0 %v834
        %1733 = vmatmul.mubr.f32.gmra.mxu0 %v833
        %v1734 = vpop.f32.mrf.mxu0
        %v1735 = vadd.f32 %v1574, %v1734
        %v1736 = vpop.f32.mrf.mxu0
        %v1737 = vadd.f32 %v1576, %v1736
        %1738 = vmatprep.mubr.f32.mxu0 %v838
        %1739 = vmatmul.mubr.f32.gmra.mxu0 %v837
        %v1740 = vpop.f32.mrf.mxu0
        %v1741 = vadd.f32 %v1580, %v1740
        %v1742 = vpop.f32.mrf.mxu0
        %v1743 = vadd.f32 %v1582, %v1742
        %1744 = vmatprep.mubr.f32.mxu0 %v842
        %1745 = vmatmul.mubr.f32.gmra.mxu0 %v841
        %v1746 = vpop.f32.mrf.mxu0
        %v1747 = vadd.f32 %v1586, %v1746
        %v1748 = vpop.f32.mrf.mxu0
        %v1749 = vadd.f32 %v1588, %v1748
        %1750 = vmatprep.mubr.f32.mxu0 %v846
        %1751 = vmatmul.mubr.f32.gmra.mxu0 %v845
        %v1752 = vpop.f32.mrf.mxu0
        %v1753 = vadd.f32 %v1592, %v1752
        %v1754 = vpop.f32.mrf.mxu0
        %v1755 = vadd.f32 %v1594, %v1754
        %1756 = vmatprep.mubr.f32.mxu0 %v850
        %1757 = vmatmul.mubr.f32.gmra.mxu0 %v849
        %v1758 = vpop.f32.mrf.mxu0
        %v1759 = vadd.f32 %v1598, %v1758
        %v1760 = vpop.f32.mrf.mxu0
        %v1761 = vadd.f32 %v1600, %v1760
        %1762 = vmatprep.mubr.f32.mxu0 %v854
        %1763 = vmatmul.mubr.f32.gmra.mxu0 %v853
        %v1764 = vpop.f32.mrf.mxu0
        %v1765 = vadd.f32 %v1604, %v1764
        %v1766 = vpop.f32.mrf.mxu0
        %v1767 = vadd.f32 %v1606, %v1766
        %1768 = vmatprep.mubr.f32.mxu0 %v858
        %1769 = vmatmul.mubr.f32.gmra.mxu0 %v857
        %v1770 = vpop.f32.mrf.mxu0
        %v1771 = vadd.f32 %v1610, %v1770
        %v1772 = vpop.f32.mrf.mxu0
        %v1773 = vadd.f32 %v1612, %v1772
        %1774 = vmatprep.mubr.f32.mxu0 %v862
        %1775 = vmatmul.mubr.f32.gmra.mxu0 %v861
        %v1776 = vpop.f32.mrf.mxu0
        %v1777 = vadd.f32 %v1616, %v1776
        %v1778 = vpop.f32.mrf.mxu0
        %v1779 = vadd.f32 %v1618, %v1778
        %1780 = vmatprep.mubr.f32.mxu0 %v866
        %1781 = vmatmul.mubr.f32.gmra.mxu0 %v865
        %v1782 = vpop.f32.mrf.mxu0
        %v1783 = vadd.f32 %v1622, %v1782
        %v1784 = vpop.f32.mrf.mxu0
        %v1785 = vadd.f32 %v1624, %v1784
        %1786 = vmatprep.mubr.f32.mxu0 %v870
        %1787 = vmatmul.mubr.f32.gmra.mxu0 %v869
        %v1788 = vpop.f32.mrf.mxu0
        %v1789 = vadd.f32 %v1628, %v1788
        %v1790 = vpop.f32.mrf.mxu0
        %v1791 = vadd.f32 %v1630, %v1790
        %1792 = vdwg.mxu0
        %v1793 = vtanh.pop %v1377
        %v1794 = vtanh.pop %v1379
        %v1795 = vtanh.pop %v1699
        %v1796 = vtanh.pop %v1701
        %v1797 = vtanh.pop %v1383
        %v1798 = vtanh.pop %v1385
        %v1799 = vtanh.pop %v1705
        %v1800 = vtanh.pop %v1707
        %v1801 = vtanh.pop %v1389
        %v1802 = vtanh.pop %v1391
        %v1803 = vtanh.pop %v1711
        %v1804 = vtanh.pop %v1713
        %v1805 = vtanh.pop %v1395
        %v1806 = vtanh.pop %v1397
        %v1807 = vtanh.pop %v1717
        %v1808 = vtanh.pop %v1719
        %v1809 = vtanh.pop %v1401
        %v1810 = vtanh.pop %v1403
        %v1811 = vtanh.pop %v1723
        %v1812 = vtanh.pop %v1725
        %v1813 = vtanh.pop %v1407
        %v1814 = vtanh.pop %v1409
        %v1815 = vtanh.pop %v1729
        %v1816 = vtanh.pop %v1731
        %v1817 = vtanh.pop %v1413
        %v1818 = vtanh.pop %v1415
        %v1819 = vtanh.pop %v1735
        %v1820 = vtanh.pop %v1737
        %v1821 = vtanh.pop %v1419
        %v1822 = vtanh.pop %v1421
        %v1823 = vtanh.pop %v1741
        %v1824 = vtanh.pop %v1743
        %v1825 = vtanh.pop %v1425
        %v1826 = vtanh.pop %v1427
        %v1827 = vtanh.pop %v1747
        %v1828 = vtanh.pop %v1749
        %v1829 = vtanh.pop %v1431
        %v1830 = vtanh.pop %v1433
        %v1831 = vtanh.pop %v1753
        %v1832 = vtanh.pop %v1755
        %v1833 = vtanh.pop %v1437
        %v1834 = vtanh.pop %v1439
        %v1835 = vtanh.pop %v1759
        %v1836 = vtanh.pop %v1761
        %v1837 = vtanh.pop %v1443
        %v1838 = vtanh.pop %v1445
        %v1839 = vtanh.pop %v1765
        %v1840 = vtanh.pop %v1767
        %v1841 = vtanh.pop %v1449
        %v1842 = vtanh.pop %v1451
        %v1843 = vtanh.pop %v1771
        %v1844 = vtanh.pop %v1773
        %v1845 = vtanh.pop %v1455
        %v1846 = vtanh.pop %v1457
        %v1847 = vtanh.pop %v1777
        %v1848 = vtanh.pop %v1779
        %v1849 = vtanh.pop %v1461
        %v1850 = vtanh.pop %v1463
        %v1851 = vtanh.pop %v1783
        %v1852 = vtanh.pop %v1785
        %v1853 = vtanh.pop %v1467
        %v1854 = vtanh.pop %v1469
        %v1855 = vtanh.pop %v1789
        %v1856 = vtanh.pop %v1791
        %v1857 = vld [vmem:[#allocation5] sm:$0xff]
        %v1858 = vld [vmem:[#allocation5 + $0x8] sm:$0xff]
        %v1859 = vld [vmem:[#allocation5 + $0x10] sm:$0xff]
        %v1860 = vld [vmem:[#allocation5 + $0x18] sm:$0xff]
        %v1861 = vld [vmem:[#allocation5 + $0x20] sm:$0xff]
        %v1862 = vld [vmem:[#allocation5 + $0x28] sm:$0xff]
        %v1863 = vld [vmem:[#allocation5 + $0x30] sm:$0xff]
        %v1864 = vld [vmem:[#allocation5 + $0x38] sm:$0xff]
        %v1865 = vld [vmem:[#allocation5 + $0x40] sm:$0xff]
        %v1866 = vld [vmem:[#allocation5 + $0x48] sm:$0xff]
        %v1867 = vld [vmem:[#allocation5 + $0x50] sm:$0xff]
        %v1868 = vld [vmem:[#allocation5 + $0x58] sm:$0xff]
        %v1869 = vld [vmem:[#allocation5 + $0x60] sm:$0xff]
        %v1870 = vld [vmem:[#allocation5 + $0x68] sm:$0xff]
        %v1871 = vld [vmem:[#allocation5 + $0x70] sm:$0xff]
        %v1872 = vld [vmem:[#allocation5 + $0x78] sm:$0xff]
        %v1873 = vld [vmem:[#allocation5 + $0x80] sm:$0xff]
        %v1874 = vld [vmem:[#allocation5 + $0x88] sm:$0xff]
        %v1875 = vld [vmem:[#allocation5 + $0x90] sm:$0xff]
        %v1876 = vld [vmem:[#allocation5 + $0x98] sm:$0xff]
        %v1877 = vld [vmem:[#allocation5 + $0xa0] sm:$0xff]
        %v1878 = vld [vmem:[#allocation5 + $0xa8] sm:$0xff]
        %v1879 = vld [vmem:[#allocation5 + $0xb0] sm:$0xff]
        %v1880 = vld [vmem:[#allocation5 + $0xb8] sm:$0xff]
        %v1881 = vld [vmem:[#allocation5 + $0xc0] sm:$0xff]
        %v1882 = vld [vmem:[#allocation5 + $0xc8] sm:$0xff]
        %v1883 = vld [vmem:[#allocation5 + $0xd0] sm:$0xff]
        %v1884 = vld [vmem:[#allocation5 + $0xd8] sm:$0xff]
        %v1885 = vld [vmem:[#allocation5 + $0xe0] sm:$0xff]
        %v1886 = vld [vmem:[#allocation5 + $0xe8] sm:$0xff]
        %v1887 = vld [vmem:[#allocation5 + $0xf0] sm:$0xff]
        %v1888 = vld [vmem:[#allocation5 + $0xf8] sm:$0xff]
        %v1889 = vld [vmem:[#allocation5 + $0x100] sm:$0xff]
        %v1890 = vld [vmem:[#allocation5 + $0x108] sm:$0xff]
        %v1891 = vld [vmem:[#allocation5 + $0x110] sm:$0xff]
        %v1892 = vld [vmem:[#allocation5 + $0x118] sm:$0xff]
        %v1893 = vld [vmem:[#allocation5 + $0x120] sm:$0xff]
        %v1894 = vld [vmem:[#allocation5 + $0x128] sm:$0xff]
        %v1895 = vld [vmem:[#allocation5 + $0x130] sm:$0xff]
        %v1896 = vld [vmem:[#allocation5 + $0x138] sm:$0xff]
        %v1897 = vld [vmem:[#allocation5 + $0x140] sm:$0xff]
        %v1898 = vld [vmem:[#allocation5 + $0x148] sm:$0xff]
        %v1899 = vld [vmem:[#allocation5 + $0x150] sm:$0xff]
        %v1900 = vld [vmem:[#allocation5 + $0x158] sm:$0xff]
        %v1901 = vld [vmem:[#allocation5 + $0x160] sm:$0xff]
        %v1902 = vld [vmem:[#allocation5 + $0x168] sm:$0xff]
        %v1903 = vld [vmem:[#allocation5 + $0x170] sm:$0xff]
        %v1904 = vld [vmem:[#allocation5 + $0x178] sm:$0xff]
        %v1905 = vld [vmem:[#allocation5 + $0x180] sm:$0xff]
        %v1906 = vld [vmem:[#allocation5 + $0x188] sm:$0xff]
        %v1907 = vld [vmem:[#allocation5 + $0x190] sm:$0xff]
        %v1908 = vld [vmem:[#allocation5 + $0x198] sm:$0xff]
        %v1909 = vld [vmem:[#allocation5 + $0x1a0] sm:$0xff]
        %v1910 = vld [vmem:[#allocation5 + $0x1a8] sm:$0xff]
        %v1911 = vld [vmem:[#allocation5 + $0x1b0] sm:$0xff]
        %v1912 = vld [vmem:[#allocation5 + $0x1b8] sm:$0xff]
        %v1913 = vld [vmem:[#allocation5 + $0x1c0] sm:$0xff]
        %v1914 = vld [vmem:[#allocation5 + $0x1c8] sm:$0xff]
        %v1915 = vld [vmem:[#allocation5 + $0x1d0] sm:$0xff]
        %v1916 = vld [vmem:[#allocation5 + $0x1d8] sm:$0xff]
        %v1917 = vld [vmem:[#allocation5 + $0x1e0] sm:$0xff]
        %v1918 = vld [vmem:[#allocation5 + $0x1e8] sm:$0xff]
        %v1919 = vld [vmem:[#allocation5 + $0x1f0] sm:$0xff]
        %v1920 = vld [vmem:[#allocation5 + $0x1f8] sm:$0xff]
        %v1921 = vld [vmem:[#allocation5 + $0x200] sm:$0xff]
        %v1922 = vld [vmem:[#allocation5 + $0x208] sm:$0xff]
        %v1923 = vld [vmem:[#allocation5 + $0x210] sm:$0xff]
        %v1924 = vld [vmem:[#allocation5 + $0x218] sm:$0xff]
        %v1925 = vld [vmem:[#allocation5 + $0x220] sm:$0xff]
        %v1926 = vld [vmem:[#allocation5 + $0x228] sm:$0xff]
        %v1927 = vld [vmem:[#allocation5 + $0x230] sm:$0xff]
        %v1928 = vld [vmem:[#allocation5 + $0x238] sm:$0xff]
        %v1929 = vld [vmem:[#allocation5 + $0x240] sm:$0xff]
        %v1930 = vld [vmem:[#allocation5 + $0x248] sm:$0xff]
        %v1931 = vld [vmem:[#allocation5 + $0x250] sm:$0xff]
        %v1932 = vld [vmem:[#allocation5 + $0x258] sm:$0xff]
        %v1933 = vld [vmem:[#allocation5 + $0x260] sm:$0xff]
        %v1934 = vld [vmem:[#allocation5 + $0x268] sm:$0xff]
        %v1935 = vld [vmem:[#allocation5 + $0x270] sm:$0xff]
        %v1936 = vld [vmem:[#allocation5 + $0x278] sm:$0xff]
        %v1937 = vld [vmem:[#allocation5 + $0x280] sm:$0xff]
        %v1938 = vld [vmem:[#allocation5 + $0x288] sm:$0xff]
        %v1939 = vld [vmem:[#allocation5 + $0x290] sm:$0xff]
        %v1940 = vld [vmem:[#allocation5 + $0x298] sm:$0xff]
        %v1941 = vld [vmem:[#allocation5 + $0x2a0] sm:$0xff]
        %v1942 = vld [vmem:[#allocation5 + $0x2a8] sm:$0xff]
        %v1943 = vld [vmem:[#allocation5 + $0x2b0] sm:$0xff]
        %v1944 = vld [vmem:[#allocation5 + $0x2b8] sm:$0xff]
        %v1945 = vld [vmem:[#allocation5 + $0x2c0] sm:$0xff]
        %v1946 = vld [vmem:[#allocation5 + $0x2c8] sm:$0xff]
        %v1947 = vld [vmem:[#allocation5 + $0x2d0] sm:$0xff]
        %v1948 = vld [vmem:[#allocation5 + $0x2d8] sm:$0xff]
        %v1949 = vld [vmem:[#allocation5 + $0x2e0] sm:$0xff]
        %v1950 = vld [vmem:[#allocation5 + $0x2e8] sm:$0xff]
        %v1951 = vld [vmem:[#allocation5 + $0x2f0] sm:$0xff]
        %v1952 = vld [vmem:[#allocation5 + $0x2f8] sm:$0xff]
        %v1953 = vld [vmem:[#allocation5 + $0x300] sm:$0xff]
        %v1954 = vld [vmem:[#allocation5 + $0x308] sm:$0xff]
        %v1955 = vld [vmem:[#allocation5 + $0x310] sm:$0xff]
        %v1956 = vld [vmem:[#allocation5 + $0x318] sm:$0xff]
        %v1957 = vld [vmem:[#allocation5 + $0x320] sm:$0xff]
        %v1958 = vld [vmem:[#allocation5 + $0x328] sm:$0xff]
        %v1959 = vld [vmem:[#allocation5 + $0x330] sm:$0xff]
        %v1960 = vld [vmem:[#allocation5 + $0x338] sm:$0xff]
        %v1961 = vld [vmem:[#allocation5 + $0x340] sm:$0xff]
        %v1962 = vld [vmem:[#allocation5 + $0x348] sm:$0xff]
        %v1963 = vld [vmem:[#allocation5 + $0x350] sm:$0xff]
        %v1964 = vld [vmem:[#allocation5 + $0x358] sm:$0xff]
        %v1965 = vld [vmem:[#allocation5 + $0x360] sm:$0xff]
        %v1966 = vld [vmem:[#allocation5 + $0x368] sm:$0xff]
        %v1967 = vld [vmem:[#allocation5 + $0x370] sm:$0xff]
        %v1968 = vld [vmem:[#allocation5 + $0x378] sm:$0xff]
        %v1969 = vld [vmem:[#allocation5 + $0x380] sm:$0xff]
        %v1970 = vld [vmem:[#allocation5 + $0x388] sm:$0xff]
        %v1971 = vld [vmem:[#allocation5 + $0x390] sm:$0xff]
        %v1972 = vld [vmem:[#allocation5 + $0x398] sm:$0xff]
        %v1973 = vld [vmem:[#allocation5 + $0x3a0] sm:$0xff]
        %v1974 = vld [vmem:[#allocation5 + $0x3a8] sm:$0xff]
        %v1975 = vld [vmem:[#allocation5 + $0x3b0] sm:$0xff]
        %v1976 = vld [vmem:[#allocation5 + $0x3b8] sm:$0xff]
        %v1977 = vld [vmem:[#allocation5 + $0x3c0] sm:$0xff]
        %v1978 = vld [vmem:[#allocation5 + $0x3c8] sm:$0xff]
        %v1979 = vld [vmem:[#allocation5 + $0x3d0] sm:$0xff]
        %v1980 = vld [vmem:[#allocation5 + $0x3d8] sm:$0xff]
        %v1981 = vld [vmem:[#allocation5 + $0x3e0] sm:$0xff]
        %v1982 = vld [vmem:[#allocation5 + $0x3e8] sm:$0xff]
        %v1983 = vld [vmem:[#allocation5 + $0x3f0] sm:$0xff]
        %v1984 = vld [vmem:[#allocation5 + $0x3f8] sm:$0xff]
        %v1985 = vld [vmem:[#allocation5 + $0x400] sm:$0xff]
        %v1986 = vld [vmem:[#allocation5 + $0x408] sm:$0xff]
        %v1987 = vld [vmem:[#allocation5 + $0x410] sm:$0xff]
        %v1988 = vld [vmem:[#allocation5 + $0x418] sm:$0xff]
        %v1989 = vld [vmem:[#allocation5 + $0x420] sm:$0xff]
        %v1990 = vld [vmem:[#allocation5 + $0x428] sm:$0xff]
        %v1991 = vld [vmem:[#allocation5 + $0x430] sm:$0xff]
        %v1992 = vld [vmem:[#allocation5 + $0x438] sm:$0xff]
        %v1993 = vld [vmem:[#allocation5 + $0x440] sm:$0xff]
        %v1994 = vld [vmem:[#allocation5 + $0x448] sm:$0xff]
        %v1995 = vld [vmem:[#allocation5 + $0x450] sm:$0xff]
        %v1996 = vld [vmem:[#allocation5 + $0x458] sm:$0xff]
        %v1997 = vld [vmem:[#allocation5 + $0x460] sm:$0xff]
        %v1998 = vld [vmem:[#allocation5 + $0x468] sm:$0xff]
        %v1999 = vld [vmem:[#allocation5 + $0x470] sm:$0xff]
        %v2000 = vld [vmem:[#allocation5 + $0x478] sm:$0xff]
        %v2001 = vld [vmem:[#allocation5 + $0x480] sm:$0xff]
        %v2002 = vld [vmem:[#allocation5 + $0x488] sm:$0xff]
        %v2003 = vld [vmem:[#allocation5 + $0x490] sm:$0xff]
        %v2004 = vld [vmem:[#allocation5 + $0x498] sm:$0xff]
        %v2005 = vld [vmem:[#allocation5 + $0x4a0] sm:$0xff]
        %v2006 = vld [vmem:[#allocation5 + $0x4a8] sm:$0xff]
        %v2007 = vld [vmem:[#allocation5 + $0x4b0] sm:$0xff]
        %v2008 = vld [vmem:[#allocation5 + $0x4b8] sm:$0xff]
        %v2009 = vld [vmem:[#allocation5 + $0x4c0] sm:$0xff]
        %v2010 = vld [vmem:[#allocation5 + $0x4c8] sm:$0xff]
        %v2011 = vld [vmem:[#allocation5 + $0x4d0] sm:$0xff]
        %v2012 = vld [vmem:[#allocation5 + $0x4d8] sm:$0xff]
        %v2013 = vld [vmem:[#allocation5 + $0x4e0] sm:$0xff]
        %v2014 = vld [vmem:[#allocation5 + $0x4e8] sm:$0xff]
        %v2015 = vld [vmem:[#allocation5 + $0x4f0] sm:$0xff]
        %v2016 = vld [vmem:[#allocation5 + $0x4f8] sm:$0xff]
        %v2017 = vld [vmem:[#allocation5 + $0x500] sm:$0xff]
        %v2018 = vld [vmem:[#allocation5 + $0x508] sm:$0xff]
        %v2019 = vld [vmem:[#allocation5 + $0x510] sm:$0xff]
        %v2020 = vld [vmem:[#allocation5 + $0x518] sm:$0xff]
        %v2021 = vld [vmem:[#allocation5 + $0x520] sm:$0xff]
        %v2022 = vld [vmem:[#allocation5 + $0x528] sm:$0xff]
        %v2023 = vld [vmem:[#allocation5 + $0x530] sm:$0xff]
        %v2024 = vld [vmem:[#allocation5 + $0x538] sm:$0xff]
        %v2025 = vld [vmem:[#allocation5 + $0x540] sm:$0xff]
        %v2026 = vld [vmem:[#allocation5 + $0x548] sm:$0xff]
        %v2027 = vld [vmem:[#allocation5 + $0x550] sm:$0xff]
        %v2028 = vld [vmem:[#allocation5 + $0x558] sm:$0xff]
        %v2029 = vld [vmem:[#allocation5 + $0x560] sm:$0xff]
        %v2030 = vld [vmem:[#allocation5 + $0x568] sm:$0xff]
        %v2031 = vld [vmem:[#allocation5 + $0x570] sm:$0xff]
        %v2032 = vld [vmem:[#allocation5 + $0x578] sm:$0xff]
        %v2033 = vld [vmem:[#allocation5 + $0x580] sm:$0xff]
        %v2034 = vld [vmem:[#allocation5 + $0x588] sm:$0xff]
        %v2035 = vld [vmem:[#allocation5 + $0x590] sm:$0xff]
        %v2036 = vld [vmem:[#allocation5 + $0x598] sm:$0xff]
        %v2037 = vld [vmem:[#allocation5 + $0x5a0] sm:$0xff]
        %v2038 = vld [vmem:[#allocation5 + $0x5a8] sm:$0xff]
        %v2039 = vld [vmem:[#allocation5 + $0x5b0] sm:$0xff]
        %v2040 = vld [vmem:[#allocation5 + $0x5b8] sm:$0xff]
        %v2041 = vld [vmem:[#allocation5 + $0x5c0] sm:$0xff]
        %v2042 = vld [vmem:[#allocation5 + $0x5c8] sm:$0xff]
        %v2043 = vld [vmem:[#allocation5 + $0x5d0] sm:$0xff]
        %v2044 = vld [vmem:[#allocation5 + $0x5d8] sm:$0xff]
        %v2045 = vld [vmem:[#allocation5 + $0x5e0] sm:$0xff]
        %v2046 = vld [vmem:[#allocation5 + $0x5e8] sm:$0xff]
        %v2047 = vld [vmem:[#allocation5 + $0x5f0] sm:$0xff]
        %v2048 = vld [vmem:[#allocation5 + $0x5f8] sm:$0xff]
        %v2049 = vld [vmem:[#allocation5 + $0x600] sm:$0xff]
        %v2050 = vld [vmem:[#allocation5 + $0x608] sm:$0xff]
        %v2051 = vld [vmem:[#allocation5 + $0x610] sm:$0xff]
        %v2052 = vld [vmem:[#allocation5 + $0x618] sm:$0xff]
        %v2053 = vld [vmem:[#allocation5 + $0x620] sm:$0xff]
        %v2054 = vld [vmem:[#allocation5 + $0x628] sm:$0xff]
        %v2055 = vld [vmem:[#allocation5 + $0x630] sm:$0xff]
        %v2056 = vld [vmem:[#allocation5 + $0x638] sm:$0xff]
        %v2057 = vld [vmem:[#allocation5 + $0x640] sm:$0xff]
        %v2058 = vld [vmem:[#allocation5 + $0x648] sm:$0xff]
        %v2059 = vld [vmem:[#allocation5 + $0x650] sm:$0xff]
        %v2060 = vld [vmem:[#allocation5 + $0x658] sm:$0xff]
        %v2061 = vld [vmem:[#allocation5 + $0x660] sm:$0xff]
        %v2062 = vld [vmem:[#allocation5 + $0x668] sm:$0xff]
        %v2063 = vld [vmem:[#allocation5 + $0x670] sm:$0xff]
        %v2064 = vld [vmem:[#allocation5 + $0x678] sm:$0xff]
        %v2065 = vld [vmem:[#allocation5 + $0x680] sm:$0xff]
        %v2066 = vld [vmem:[#allocation5 + $0x688] sm:$0xff]
        %v2067 = vld [vmem:[#allocation5 + $0x690] sm:$0xff]
        %v2068 = vld [vmem:[#allocation5 + $0x698] sm:$0xff]
        %v2069 = vld [vmem:[#allocation5 + $0x6a0] sm:$0xff]
        %v2070 = vld [vmem:[#allocation5 + $0x6a8] sm:$0xff]
        %v2071 = vld [vmem:[#allocation5 + $0x6b0] sm:$0xff]
        %v2072 = vld [vmem:[#allocation5 + $0x6b8] sm:$0xff]
        %v2073 = vld [vmem:[#allocation5 + $0x6c0] sm:$0xff]
        %v2074 = vld [vmem:[#allocation5 + $0x6c8] sm:$0xff]
        %v2075 = vld [vmem:[#allocation5 + $0x6d0] sm:$0xff]
        %v2076 = vld [vmem:[#allocation5 + $0x6d8] sm:$0xff]
        %v2077 = vld [vmem:[#allocation5 + $0x6e0] sm:$0xff]
        %v2078 = vld [vmem:[#allocation5 + $0x6e8] sm:$0xff]
        %v2079 = vld [vmem:[#allocation5 + $0x6f0] sm:$0xff]
        %v2080 = vld [vmem:[#allocation5 + $0x6f8] sm:$0xff]
        %v2081 = vld [vmem:[#allocation5 + $0x700] sm:$0xff]
        %v2082 = vld [vmem:[#allocation5 + $0x708] sm:$0xff]
        %v2083 = vld [vmem:[#allocation5 + $0x710] sm:$0xff]
        %v2084 = vld [vmem:[#allocation5 + $0x718] sm:$0xff]
        %v2085 = vld [vmem:[#allocation5 + $0x720] sm:$0xff]
        %v2086 = vld [vmem:[#allocation5 + $0x728] sm:$0xff]
        %v2087 = vld [vmem:[#allocation5 + $0x730] sm:$0xff]
        %v2088 = vld [vmem:[#allocation5 + $0x738] sm:$0xff]
        %v2089 = vld [vmem:[#allocation5 + $0x740] sm:$0xff]
        %v2090 = vld [vmem:[#allocation5 + $0x748] sm:$0xff]
        %v2091 = vld [vmem:[#allocation5 + $0x750] sm:$0xff]
        %v2092 = vld [vmem:[#allocation5 + $0x758] sm:$0xff]
        %v2093 = vld [vmem:[#allocation5 + $0x760] sm:$0xff]
        %v2094 = vld [vmem:[#allocation5 + $0x768] sm:$0xff]
        %v2095 = vld [vmem:[#allocation5 + $0x770] sm:$0xff]
        %v2096 = vld [vmem:[#allocation5 + $0x778] sm:$0xff]
        %v2097 = vld [vmem:[#allocation5 + $0x780] sm:$0xff]
        %v2098 = vld [vmem:[#allocation5 + $0x788] sm:$0xff]
        %v2099 = vld [vmem:[#allocation5 + $0x790] sm:$0xff]
        %v2100 = vld [vmem:[#allocation5 + $0x798] sm:$0xff]
        %v2101 = vld [vmem:[#allocation5 + $0x7a0] sm:$0xff]
        %v2102 = vld [vmem:[#allocation5 + $0x7a8] sm:$0xff]
        %v2103 = vld [vmem:[#allocation5 + $0x7b0] sm:$0xff]
        %v2104 = vld [vmem:[#allocation5 + $0x7b8] sm:$0xff]
        %v2105 = vld [vmem:[#allocation5 + $0x7c0] sm:$0xff]
        %v2106 = vld [vmem:[#allocation5 + $0x7c8] sm:$0xff]
        %v2107 = vld [vmem:[#allocation5 + $0x7d0] sm:$0xff]
        %v2108 = vld [vmem:[#allocation5 + $0x7d8] sm:$0xff]
        %v2109 = vld [vmem:[#allocation5 + $0x7e0] sm:$0xff]
        %v2110 = vld [vmem:[#allocation5 + $0x7e8] sm:$0xff]
        %v2111 = vld [vmem:[#allocation5 + $0x7f0] sm:$0xff]
        %v2112 = vld [vmem:[#allocation5 + $0x7f8] sm:$0xff]
        %v2113 = vld [vmem:[%s6] sm:$0xf]
        %v2115 = vlaneseq
        %v2116 = vshrl.u32 %v2115, 7
        %v2117 = vsub.s32 0, %v2116
        %v2118 = vrot.slane %v2113, %v2117
        %v2119 = vlaneseq
        %v2120 = vshrl.u32 %v2119, 7
        %v2121 = vsub.s32 1, %v2120
        %v2122 = vrot.slane %v2113, %v2121
        %v2123 = vlaneseq
        %v2124 = vshrl.u32 %v2123, 7
        %v2125 = vsub.s32 2, %v2124
        %v2126 = vrot.slane %v2113, %v2125
        %v2127 = vlaneseq
        %v2128 = vshrl.u32 %v2127, 7
        %v2129 = vsub.s32 3, %v2128
        %v2130 = vrot.slane %v2113, %v2129
        %2135 = vmatprep.subr.mxu0 %v1918
        %2136 = vmatpush1.msra.mxu0 %v1917
        %2137 = vmatprep.subr.mxu0 %v1914
        %2138 = vmatpush1.msra.mxu0 %v1913
        %2139 = vmatprep.subr.mxu0 %v1910
        %2140 = vmatpush1.msra.mxu0 %v1909
        %2141 = vmatprep.subr.mxu0 %v1906
        %2142 = vmatpush1.msra.mxu0 %v1905
        %2143 = vmatprep.subr.mxu0 %v1902
        %2144 = vmatpush1.msra.mxu0 %v1901
        %2145 = vmatprep.subr.mxu0 %v1898
        %2146 = vmatpush1.msra.mxu0 %v1897
        %2147 = vmatprep.subr.mxu0 %v1894
        %2148 = vmatpush1.msra.mxu0 %v1893
        %2149 = vmatprep.subr.mxu0 %v1890
        %2150 = vmatpush1.msra.mxu0 %v1889
        %2151 = vmatprep.subr.mxu0 %v1886
        %2152 = vmatpush1.msra.mxu0 %v1885
        %2153 = vmatprep.subr.mxu0 %v1882
        %2154 = vmatpush1.msra.mxu0 %v1881
        %2155 = vmatprep.subr.mxu0 %v1878
        %2156 = vmatpush1.msra.mxu0 %v1877
        %2157 = vmatprep.subr.mxu0 %v1874
        %2158 = vmatpush1.msra.mxu0 %v1873
        %2159 = vmatprep.subr.mxu0 %v1870
        %2160 = vmatpush1.msra.mxu0 %v1869
        %2161 = vmatprep.subr.mxu0 %v1866
        %2162 = vmatpush1.msra.mxu0 %v1865
        %2163 = vmatprep.subr.mxu0 %v1862
        %2164 = vmatpush1.msra.mxu0 %v1861
        %2165 = vmatprep.subr.mxu0 %v1858
        %2166 = vmatpush1.msra.mxu0 %v1857
        %2167 = vmatprep.subr.mxu0 %v1982
        %2168 = vmatpush2.msra.mxu0 %v1981
        %2169 = vmatprep.subr.mxu0 %v1978
        %2170 = vmatpush2.msra.mxu0 %v1977
        %2171 = vmatprep.subr.mxu0 %v1974
        %2172 = vmatpush2.msra.mxu0 %v1973
        %2173 = vmatprep.subr.mxu0 %v1970
        %2174 = vmatpush2.msra.mxu0 %v1969
        %2175 = vmatprep.subr.mxu0 %v1966
        %2176 = vmatpush2.msra.mxu0 %v1965
        %2177 = vmatprep.subr.mxu0 %v1962
        %2178 = vmatpush2.msra.mxu0 %v1961
        %2179 = vmatprep.subr.mxu0 %v1958
        %2180 = vmatpush2.msra.mxu0 %v1957
        %2181 = vmatprep.subr.mxu0 %v1954
        %2182 = vmatpush2.msra.mxu0 %v1953
        %2183 = vmatprep.subr.mxu0 %v1950
        %2184 = vmatpush2.msra.mxu0 %v1949
        %2185 = vmatprep.subr.mxu0 %v1946
        %2186 = vmatpush2.msra.mxu0 %v1945
        %2187 = vmatprep.subr.mxu0 %v1942
        %2188 = vmatpush2.msra.mxu0 %v1941
        %2189 = vmatprep.subr.mxu0 %v1938
        %2190 = vmatpush2.msra.mxu0 %v1937
        %2191 = vmatprep.subr.mxu0 %v1934
        %2192 = vmatpush2.msra.mxu0 %v1933
        %2193 = vmatprep.subr.mxu0 %v1930
        %2194 = vmatpush2.msra.mxu0 %v1929
        %2195 = vmatprep.subr.mxu0 %v1926
        %2196 = vmatpush2.msra.mxu0 %v1925
        %2197 = vmatprep.subr.mxu0 %v1922
        %2198 = vmatpush2.msra.mxu0 %v1921
        %2199 = vmatprep.mubr.f32.mxu0 %v1794
        %2200 = vmatmul.mubr.f32.gmra.mxu0 %v1793
        %v2201 = vpop.f32.mrf.mxu0
        %v2202 = vadd.f32 %v2118, %v2201
        %v2203 = vpop.f32.mrf.mxu0
        %v2204 = vadd.f32 %v2122, %v2203
        %2205 = vmatprep.mubr.f32.mxu0 %v1798
        %2206 = vmatmul.mubr.f32.gmra.mxu0 %v1797
        %v2207 = vpop.f32.mrf.mxu0
        %v2208 = vadd.f32 %v2118, %v2207
        %v2209 = vpop.f32.mrf.mxu0
        %v2210 = vadd.f32 %v2122, %v2209
        %2211 = vmatprep.mubr.f32.mxu0 %v1802
        %2212 = vmatmul.mubr.f32.gmra.mxu0 %v1801
        %v2213 = vpop.f32.mrf.mxu0
        %v2214 = vadd.f32 %v2118, %v2213
        %v2215 = vpop.f32.mrf.mxu0
        %v2216 = vadd.f32 %v2122, %v2215
        %2217 = vmatprep.mubr.f32.mxu0 %v1806
        %2218 = vmatmul.mubr.f32.gmra.mxu0 %v1805
        %v2219 = vpop.f32.mrf.mxu0
        %v2220 = vadd.f32 %v2118, %v2219
        %v2221 = vpop.f32.mrf.mxu0
        %v2222 = vadd.f32 %v2122, %v2221
        %2223 = vmatprep.mubr.f32.mxu0 %v1810
        %2224 = vmatmul.mubr.f32.gmra.mxu0 %v1809
        %v2225 = vpop.f32.mrf.mxu0
        %v2226 = vadd.f32 %v2118, %v2225
        %v2227 = vpop.f32.mrf.mxu0
        %v2228 = vadd.f32 %v2122, %v2227
        %2229 = vmatprep.mubr.f32.mxu0 %v1814
        %2230 = vmatmul.mubr.f32.gmra.mxu0 %v1813
        %v2231 = vpop.f32.mrf.mxu0
        %v2232 = vadd.f32 %v2118, %v2231
        %v2233 = vpop.f32.mrf.mxu0
        %v2234 = vadd.f32 %v2122, %v2233
        %2235 = vmatprep.mubr.f32.mxu0 %v1818
        %2236 = vmatmul.mubr.f32.gmra.mxu0 %v1817
        %v2237 = vpop.f32.mrf.mxu0
        %v2238 = vadd.f32 %v2118, %v2237
        %v2239 = vpop.f32.mrf.mxu0
        %v2240 = vadd.f32 %v2122, %v2239
        %2241 = vmatprep.mubr.f32.mxu0 %v1822
        %2242 = vmatmul.mubr.f32.gmra.mxu0 %v1821
        %v2243 = vpop.f32.mrf.mxu0
        %v2244 = vadd.f32 %v2118, %v2243
        %v2245 = vpop.f32.mrf.mxu0
        %v2246 = vadd.f32 %v2122, %v2245
        %2247 = vmatprep.mubr.f32.mxu0 %v1826
        %2248 = vmatmul.mubr.f32.gmra.mxu0 %v1825
        %v2249 = vpop.f32.mrf.mxu0
        %v2250 = vadd.f32 %v2118, %v2249
        %v2251 = vpop.f32.mrf.mxu0
        %v2252 = vadd.f32 %v2122, %v2251
        %2253 = vmatprep.mubr.f32.mxu0 %v1830
        %2254 = vmatmul.mubr.f32.gmra.mxu0 %v1829
        %v2255 = vpop.f32.mrf.mxu0
        %v2256 = vadd.f32 %v2118, %v2255
        %v2257 = vpop.f32.mrf.mxu0
        %v2258 = vadd.f32 %v2122, %v2257
        %2259 = vmatprep.mubr.f32.mxu0 %v1834
        %2260 = vmatmul.mubr.f32.gmra.mxu0 %v1833
        %v2261 = vpop.f32.mrf.mxu0
        %v2262 = vadd.f32 %v2118, %v2261
        %v2263 = vpop.f32.mrf.mxu0
        %v2264 = vadd.f32 %v2122, %v2263
        %2265 = vmatprep.mubr.f32.mxu0 %v1838
        %2266 = vmatmul.mubr.f32.gmra.mxu0 %v1837
        %v2267 = vpop.f32.mrf.mxu0
        %v2268 = vadd.f32 %v2118, %v2267
        %v2269 = vpop.f32.mrf.mxu0
        %v2270 = vadd.f32 %v2122, %v2269
        %2271 = vmatprep.mubr.f32.mxu0 %v1842
        %2272 = vmatmul.mubr.f32.gmra.mxu0 %v1841
        %v2273 = vpop.f32.mrf.mxu0
        %v2274 = vadd.f32 %v2118, %v2273
        %v2275 = vpop.f32.mrf.mxu0
        %v2276 = vadd.f32 %v2122, %v2275
        %2277 = vmatprep.mubr.f32.mxu0 %v1846
        %2278 = vmatmul.mubr.f32.gmra.mxu0 %v1845
        %v2279 = vpop.f32.mrf.mxu0
        %v2280 = vadd.f32 %v2118, %v2279
        %v2281 = vpop.f32.mrf.mxu0
        %v2282 = vadd.f32 %v2122, %v2281
        %2283 = vmatprep.mubr.f32.mxu0 %v1850
        %2284 = vmatmul.mubr.f32.gmra.mxu0 %v1849
        %v2285 = vpop.f32.mrf.mxu0
        %v2286 = vadd.f32 %v2118, %v2285
        %v2287 = vpop.f32.mrf.mxu0
        %v2288 = vadd.f32 %v2122, %v2287
        %2289 = vmatprep.mubr.f32.mxu0 %v1854
        %2290 = vmatmul.mubr.f32.gmra.mxu0 %v1853
        %v2291 = vpop.f32.mrf.mxu0
        %v2292 = vadd.f32 %v2118, %v2291
        %v2293 = vpop.f32.mrf.mxu0
        %v2294 = vadd.f32 %v2122, %v2293
        %2295 = vdwg.mxu0
        %2296 = vmatprep.subr.mxu0 %v2046
        %2297 = vmatpush1.msra.mxu0 %v2045
        %2298 = vmatprep.subr.mxu0 %v2042
        %2299 = vmatpush1.msra.mxu0 %v2041
        %2300 = vmatprep.subr.mxu0 %v2038
        %2301 = vmatpush1.msra.mxu0 %v2037
        %2302 = vmatprep.subr.mxu0 %v2034
        %2303 = vmatpush1.msra.mxu0 %v2033
        %2304 = vmatprep.subr.mxu0 %v2030
        %2305 = vmatpush1.msra.mxu0 %v2029
        %2306 = vmatprep.subr.mxu0 %v2026
        %2307 = vmatpush1.msra.mxu0 %v2025
        %2308 = vmatprep.subr.mxu0 %v2022
        %2309 = vmatpush1.msra.mxu0 %v2021
        %2310 = vmatprep.subr.mxu0 %v2018
        %2311 = vmatpush1.msra.mxu0 %v2017
        %2312 = vmatprep.subr.mxu0 %v2014
        %2313 = vmatpush1.msra.mxu0 %v2013
        %2314 = vmatprep.subr.mxu0 %v2010
        %2315 = vmatpush1.msra.mxu0 %v2009
        %2316 = vmatprep.subr.mxu0 %v2006
        %2317 = vmatpush1.msra.mxu0 %v2005
        %2318 = vmatprep.subr.mxu0 %v2002
        %2319 = vmatpush1.msra.mxu0 %v2001
        %2320 = vmatprep.subr.mxu0 %v1998
        %2321 = vmatpush1.msra.mxu0 %v1997
        %2322 = vmatprep.subr.mxu0 %v1994
        %2323 = vmatpush1.msra.mxu0 %v1993
        %2324 = vmatprep.subr.mxu0 %v1990
        %2325 = vmatpush1.msra.mxu0 %v1989
        %2326 = vmatprep.subr.mxu0 %v1986
        %2327 = vmatpush1.msra.mxu0 %v1985
        %2328 = vmatprep.subr.mxu0 %v2110
        %2329 = vmatpush2.msra.mxu0 %v2109
        %2330 = vmatprep.subr.mxu0 %v2106
        %2331 = vmatpush2.msra.mxu0 %v2105
        %2332 = vmatprep.subr.mxu0 %v2102
        %2333 = vmatpush2.msra.mxu0 %v2101
        %2334 = vmatprep.subr.mxu0 %v2098
        %2335 = vmatpush2.msra.mxu0 %v2097
        %2336 = vmatprep.subr.mxu0 %v2094
        %2337 = vmatpush2.msra.mxu0 %v2093
        %2338 = vmatprep.subr.mxu0 %v2090
        %2339 = vmatpush2.msra.mxu0 %v2089
        %2340 = vmatprep.subr.mxu0 %v2086
        %2341 = vmatpush2.msra.mxu0 %v2085
        %2342 = vmatprep.subr.mxu0 %v2082
        %2343 = vmatpush2.msra.mxu0 %v2081
        %2344 = vmatprep.subr.mxu0 %v2078
        %2345 = vmatpush2.msra.mxu0 %v2077
        %2346 = vmatprep.subr.mxu0 %v2074
        %2347 = vmatpush2.msra.mxu0 %v2073
        %2348 = vmatprep.subr.mxu0 %v2070
        %2349 = vmatpush2.msra.mxu0 %v2069
        %2350 = vmatprep.subr.mxu0 %v2066
        %2351 = vmatpush2.msra.mxu0 %v2065
        %2352 = vmatprep.subr.mxu0 %v2062
        %2353 = vmatpush2.msra.mxu0 %v2061
        %2354 = vmatprep.subr.mxu0 %v2058
        %2355 = vmatpush2.msra.mxu0 %v2057
        %2356 = vmatprep.subr.mxu0 %v2054
        %2357 = vmatpush2.msra.mxu0 %v2053
        %2358 = vmatprep.subr.mxu0 %v2050
        %2359 = vmatpush2.msra.mxu0 %v2049
        %2360 = vmatprep.mubr.f32.mxu0 %v1796
        %2361 = vmatmul.mubr.f32.gmra.mxu0 %v1795
        %v2362 = vpop.f32.mrf.mxu0
        %v2363 = vadd.f32 %v2202, %v2362
        %v2364 = vpop.f32.mrf.mxu0
        %v2365 = vadd.f32 %v2204, %v2364
        %2366 = vmatprep.mubr.f32.mxu0 %v1800
        %2367 = vmatmul.mubr.f32.gmra.mxu0 %v1799
        %v2368 = vpop.f32.mrf.mxu0
        %v2369 = vadd.f32 %v2208, %v2368
        %v2370 = vpop.f32.mrf.mxu0
        %v2371 = vadd.f32 %v2210, %v2370
        %2372 = vmatprep.mubr.f32.mxu0 %v1804
        %2373 = vmatmul.mubr.f32.gmra.mxu0 %v1803
        %v2374 = vpop.f32.mrf.mxu0
        %v2375 = vadd.f32 %v2214, %v2374
        %v2376 = vpop.f32.mrf.mxu0
        %v2377 = vadd.f32 %v2216, %v2376
        %2378 = vmatprep.mubr.f32.mxu0 %v1808
        %2379 = vmatmul.mubr.f32.gmra.mxu0 %v1807
        %v2380 = vpop.f32.mrf.mxu0
        %v2381 = vadd.f32 %v2220, %v2380
        %v2382 = vpop.f32.mrf.mxu0
        %v2383 = vadd.f32 %v2222, %v2382
        %2384 = vmatprep.mubr.f32.mxu0 %v1812
        %2385 = vmatmul.mubr.f32.gmra.mxu0 %v1811
        %v2386 = vpop.f32.mrf.mxu0
        %v2387 = vadd.f32 %v2226, %v2386
        %v2388 = vpop.f32.mrf.mxu0
        %v2389 = vadd.f32 %v2228, %v2388
        %2390 = vmatprep.mubr.f32.mxu0 %v1816
        %2391 = vmatmul.mubr.f32.gmra.mxu0 %v1815
        %v2392 = vpop.f32.mrf.mxu0
        %v2393 = vadd.f32 %v2232, %v2392
        %v2394 = vpop.f32.mrf.mxu0
        %v2395 = vadd.f32 %v2234, %v2394
        %2396 = vmatprep.mubr.f32.mxu0 %v1820
        %2397 = vmatmul.mubr.f32.gmra.mxu0 %v1819
        %v2398 = vpop.f32.mrf.mxu0
        %v2399 = vadd.f32 %v2238, %v2398
        %v2400 = vpop.f32.mrf.mxu0
        %v2401 = vadd.f32 %v2240, %v2400
        %2402 = vmatprep.mubr.f32.mxu0 %v1824
        %2403 = vmatmul.mubr.f32.gmra.mxu0 %v1823
        %v2404 = vpop.f32.mrf.mxu0
        %v2405 = vadd.f32 %v2244, %v2404
        %v2406 = vpop.f32.mrf.mxu0
        %v2407 = vadd.f32 %v2246, %v2406
        %2408 = vmatprep.mubr.f32.mxu0 %v1828
        %2409 = vmatmul.mubr.f32.gmra.mxu0 %v1827
        %v2410 = vpop.f32.mrf.mxu0
        %v2411 = vadd.f32 %v2250, %v2410
        %v2412 = vpop.f32.mrf.mxu0
        %v2413 = vadd.f32 %v2252, %v2412
        %2414 = vmatprep.mubr.f32.mxu0 %v1832
        %2415 = vmatmul.mubr.f32.gmra.mxu0 %v1831
        %v2416 = vpop.f32.mrf.mxu0
        %v2417 = vadd.f32 %v2256, %v2416
        %v2418 = vpop.f32.mrf.mxu0
        %v2419 = vadd.f32 %v2258, %v2418
        %2420 = vmatprep.mubr.f32.mxu0 %v1836
        %2421 = vmatmul.mubr.f32.gmra.mxu0 %v1835
        %v2422 = vpop.f32.mrf.mxu0
        %v2423 = vadd.f32 %v2262, %v2422
        %v2424 = vpop.f32.mrf.mxu0
        %v2425 = vadd.f32 %v2264, %v2424
        %2426 = vmatprep.mubr.f32.mxu0 %v1840
        %2427 = vmatmul.mubr.f32.gmra.mxu0 %v1839
        %v2428 = vpop.f32.mrf.mxu0
        %v2429 = vadd.f32 %v2268, %v2428
        %v2430 = vpop.f32.mrf.mxu0
        %v2431 = vadd.f32 %v2270, %v2430
        %2432 = vmatprep.mubr.f32.mxu0 %v1844
        %2433 = vmatmul.mubr.f32.gmra.mxu0 %v1843
        %v2434 = vpop.f32.mrf.mxu0
        %v2435 = vadd.f32 %v2274, %v2434
        %v2436 = vpop.f32.mrf.mxu0
        %v2437 = vadd.f32 %v2276, %v2436
        %2438 = vmatprep.mubr.f32.mxu0 %v1848
        %2439 = vmatmul.mubr.f32.gmra.mxu0 %v1847
        %v2440 = vpop.f32.mrf.mxu0
        %v2441 = vadd.f32 %v2280, %v2440
        %v2442 = vpop.f32.mrf.mxu0
        %v2443 = vadd.f32 %v2282, %v2442
        %2444 = vmatprep.mubr.f32.mxu0 %v1852
        %2445 = vmatmul.mubr.f32.gmra.mxu0 %v1851
        %v2446 = vpop.f32.mrf.mxu0
        %v2447 = vadd.f32 %v2286, %v2446
        %v2448 = vpop.f32.mrf.mxu0
        %v2449 = vadd.f32 %v2288, %v2448
        %2450 = vmatprep.mubr.f32.mxu0 %v1856
        %2451 = vmatmul.mubr.f32.gmra.mxu0 %v1855
        %v2452 = vpop.f32.mrf.mxu0
        %v2453 = vadd.f32 %v2292, %v2452
        %v2454 = vpop.f32.mrf.mxu0
        %v2455 = vadd.f32 %v2294, %v2454
        %2456 = vdwg.mxu0
        %2457 = vmatprep.subr.mxu0 %v1920
        %2458 = vmatpush1.msra.mxu0 %v1919
        %2459 = vmatprep.subr.mxu0 %v1916
        %2460 = vmatpush1.msra.mxu0 %v1915
        %2461 = vmatprep.subr.mxu0 %v1912
        %2462 = vmatpush1.msra.mxu0 %v1911
        %2463 = vmatprep.subr.mxu0 %v1908
        %2464 = vmatpush1.msra.mxu0 %v1907
        %2465 = vmatprep.subr.mxu0 %v1904
        %2466 = vmatpush1.msra.mxu0 %v1903
        %2467 = vmatprep.subr.mxu0 %v1900
        %2468 = vmatpush1.msra.mxu0 %v1899
        %2469 = vmatprep.subr.mxu0 %v1896
        %2470 = vmatpush1.msra.mxu0 %v1895
        %2471 = vmatprep.subr.mxu0 %v1892
        %2472 = vmatpush1.msra.mxu0 %v1891
        %2473 = vmatprep.subr.mxu0 %v1888
        %2474 = vmatpush1.msra.mxu0 %v1887
        %2475 = vmatprep.subr.mxu0 %v1884
        %2476 = vmatpush1.msra.mxu0 %v1883
        %2477 = vmatprep.subr.mxu0 %v1880
        %2478 = vmatpush1.msra.mxu0 %v1879
        %2479 = vmatprep.subr.mxu0 %v1876
        %2480 = vmatpush1.msra.mxu0 %v1875
        %2481 = vmatprep.subr.mxu0 %v1872
        %2482 = vmatpush1.msra.mxu0 %v1871
        %2483 = vmatprep.subr.mxu0 %v1868
        %2484 = vmatpush1.msra.mxu0 %v1867
        %2485 = vmatprep.subr.mxu0 %v1864
        %2486 = vmatpush1.msra.mxu0 %v1863
        %2487 = vmatprep.subr.mxu0 %v1860
        %2488 = vmatpush1.msra.mxu0 %v1859
        %2489 = vmatprep.subr.mxu0 %v1984
        %2490 = vmatpush2.msra.mxu0 %v1983
        %2491 = vmatprep.subr.mxu0 %v1980
        %2492 = vmatpush2.msra.mxu0 %v1979
        %2493 = vmatprep.subr.mxu0 %v1976
        %2494 = vmatpush2.msra.mxu0 %v1975
        %2495 = vmatprep.subr.mxu0 %v1972
        %2496 = vmatpush2.msra.mxu0 %v1971
        %2497 = vmatprep.subr.mxu0 %v1968
        %2498 = vmatpush2.msra.mxu0 %v1967
        %2499 = vmatprep.subr.mxu0 %v1964
        %2500 = vmatpush2.msra.mxu0 %v1963
        %2501 = vmatprep.subr.mxu0 %v1960
        %2502 = vmatpush2.msra.mxu0 %v1959
        %2503 = vmatprep.subr.mxu0 %v1956
        %2504 = vmatpush2.msra.mxu0 %v1955
        %2505 = vmatprep.subr.mxu0 %v1952
        %2506 = vmatpush2.msra.mxu0 %v1951
        %2507 = vmatprep.subr.mxu0 %v1948
        %2508 = vmatpush2.msra.mxu0 %v1947
        %2509 = vmatprep.subr.mxu0 %v1944
        %2510 = vmatpush2.msra.mxu0 %v1943
        %2511 = vmatprep.subr.mxu0 %v1940
        %2512 = vmatpush2.msra.mxu0 %v1939
        %2513 = vmatprep.subr.mxu0 %v1936
        %2514 = vmatpush2.msra.mxu0 %v1935
        %2515 = vmatprep.subr.mxu0 %v1932
        %2516 = vmatpush2.msra.mxu0 %v1931
        %2517 = vmatprep.subr.mxu0 %v1928
        %2518 = vmatpush2.msra.mxu0 %v1927
        %2519 = vmatprep.subr.mxu0 %v1924
        %2520 = vmatpush2.msra.mxu0 %v1923
        %2521 = vmatprep.mubr.f32.mxu0 %v1794
        %2522 = vmatmul.mubr.f32.gmra.mxu0 %v1793
        %v2523 = vpop.f32.mrf.mxu0
        %v2524 = vadd.f32 %v2126, %v2523
        %v2525 = vpop.f32.mrf.mxu0
        %v2526 = vadd.f32 %v2130, %v2525
        %2527 = vmatprep.mubr.f32.mxu0 %v1798
        %2528 = vmatmul.mubr.f32.gmra.mxu0 %v1797
        %v2529 = vpop.f32.mrf.mxu0
        %v2530 = vadd.f32 %v2126, %v2529
        %v2531 = vpop.f32.mrf.mxu0
        %v2532 = vadd.f32 %v2130, %v2531
        %2533 = vmatprep.mubr.f32.mxu0 %v1802
        %2534 = vmatmul.mubr.f32.gmra.mxu0 %v1801
        %v2535 = vpop.f32.mrf.mxu0
        %v2536 = vadd.f32 %v2126, %v2535
        %v2537 = vpop.f32.mrf.mxu0
        %v2538 = vadd.f32 %v2130, %v2537
        %2539 = vmatprep.mubr.f32.mxu0 %v1806
        %2540 = vmatmul.mubr.f32.gmra.mxu0 %v1805
        %v2541 = vpop.f32.mrf.mxu0
        %v2542 = vadd.f32 %v2126, %v2541
        %v2543 = vpop.f32.mrf.mxu0
        %v2544 = vadd.f32 %v2130, %v2543
        %2545 = vmatprep.mubr.f32.mxu0 %v1810
        %2546 = vmatmul.mubr.f32.gmra.mxu0 %v1809
        %v2547 = vpop.f32.mrf.mxu0
        %v2548 = vadd.f32 %v2126, %v2547
        %v2549 = vpop.f32.mrf.mxu0
        %v2550 = vadd.f32 %v2130, %v2549
        %2551 = vmatprep.mubr.f32.mxu0 %v1814
        %2552 = vmatmul.mubr.f32.gmra.mxu0 %v1813
        %v2553 = vpop.f32.mrf.mxu0
        %v2554 = vadd.f32 %v2126, %v2553
        %v2555 = vpop.f32.mrf.mxu0
        %v2556 = vadd.f32 %v2130, %v2555
        %2557 = vmatprep.mubr.f32.mxu0 %v1818
        %2558 = vmatmul.mubr.f32.gmra.mxu0 %v1817
        %v2559 = vpop.f32.mrf.mxu0
        %v2560 = vadd.f32 %v2126, %v2559
        %v2561 = vpop.f32.mrf.mxu0
        %v2562 = vadd.f32 %v2130, %v2561
        %2563 = vmatprep.mubr.f32.mxu0 %v1822
        %2564 = vmatmul.mubr.f32.gmra.mxu0 %v1821
        %v2565 = vpop.f32.mrf.mxu0
        %v2566 = vadd.f32 %v2126, %v2565
        %v2567 = vpop.f32.mrf.mxu0
        %v2568 = vadd.f32 %v2130, %v2567
        %2569 = vmatprep.mubr.f32.mxu0 %v1826
        %2570 = vmatmul.mubr.f32.gmra.mxu0 %v1825
        %v2571 = vpop.f32.mrf.mxu0
        %v2572 = vadd.f32 %v2126, %v2571
        %v2573 = vpop.f32.mrf.mxu0
        %v2574 = vadd.f32 %v2130, %v2573
        %2575 = vmatprep.mubr.f32.mxu0 %v1830
        %2576 = vmatmul.mubr.f32.gmra.mxu0 %v1829
        %v2577 = vpop.f32.mrf.mxu0
        %v2578 = vadd.f32 %v2126, %v2577
        %v2579 = vpop.f32.mrf.mxu0
        %v2580 = vadd.f32 %v2130, %v2579
        %2581 = vmatprep.mubr.f32.mxu0 %v1834
        %2582 = vmatmul.mubr.f32.gmra.mxu0 %v1833
        %v2583 = vpop.f32.mrf.mxu0
        %v2584 = vadd.f32 %v2126, %v2583
        %v2585 = vpop.f32.mrf.mxu0
        %v2586 = vadd.f32 %v2130, %v2585
        %2587 = vmatprep.mubr.f32.mxu0 %v1838
        %2588 = vmatmul.mubr.f32.gmra.mxu0 %v1837
        %v2589 = vpop.f32.mrf.mxu0
        %v2590 = vadd.f32 %v2126, %v2589
        %v2591 = vpop.f32.mrf.mxu0
        %v2592 = vadd.f32 %v2130, %v2591
        %2593 = vmatprep.mubr.f32.mxu0 %v1842
        %2594 = vmatmul.mubr.f32.gmra.mxu0 %v1841
        %v2595 = vpop.f32.mrf.mxu0
        %v2596 = vadd.f32 %v2126, %v2595
        %v2597 = vpop.f32.mrf.mxu0
        %v2598 = vadd.f32 %v2130, %v2597
        %2599 = vmatprep.mubr.f32.mxu0 %v1846
        %2600 = vmatmul.mubr.f32.gmra.mxu0 %v1845
        %v2601 = vpop.f32.mrf.mxu0
        %v2602 = vadd.f32 %v2126, %v2601
        %v2603 = vpop.f32.mrf.mxu0
        %v2604 = vadd.f32 %v2130, %v2603
        %2605 = vmatprep.mubr.f32.mxu0 %v1850
        %2606 = vmatmul.mubr.f32.gmra.mxu0 %v1849
        %v2607 = vpop.f32.mrf.mxu0
        %v2608 = vadd.f32 %v2126, %v2607
        %v2609 = vpop.f32.mrf.mxu0
        %v2610 = vadd.f32 %v2130, %v2609
        %2611 = vmatprep.mubr.f32.mxu0 %v1854
        %2612 = vmatmul.mubr.f32.gmra.mxu0 %v1853
        %v2613 = vpop.f32.mrf.mxu0
        %v2614 = vadd.f32 %v2126, %v2613
        %v2615 = vpop.f32.mrf.mxu0
        %v2616 = vadd.f32 %v2130, %v2615
        %2617 = vdwg.mxu0
        %2618 = vmatprep.subr.mxu0 %v2048
        %2619 = vmatpush1.msra.mxu0 %v2047
        %2620 = vmatprep.subr.mxu0 %v2044
        %2621 = vmatpush1.msra.mxu0 %v2043
        %2622 = vmatprep.subr.mxu0 %v2040
        %2623 = vmatpush1.msra.mxu0 %v2039
        %2624 = vmatprep.subr.mxu0 %v2036
        %2625 = vmatpush1.msra.mxu0 %v2035
        %2626 = vmatprep.subr.mxu0 %v2032
        %2627 = vmatpush1.msra.mxu0 %v2031
        %2628 = vmatprep.subr.mxu0 %v2028
        %2629 = vmatpush1.msra.mxu0 %v2027
        %2630 = vmatprep.subr.mxu0 %v2024
        %2631 = vmatpush1.msra.mxu0 %v2023
        %2632 = vmatprep.subr.mxu0 %v2020
        %2633 = vmatpush1.msra.mxu0 %v2019
        %2634 = vmatprep.subr.mxu0 %v2016
        %2635 = vmatpush1.msra.mxu0 %v2015
        %2636 = vmatprep.subr.mxu0 %v2012
        %2637 = vmatpush1.msra.mxu0 %v2011
        %2638 = vmatprep.subr.mxu0 %v2008
        %2639 = vmatpush1.msra.mxu0 %v2007
        %2640 = vmatprep.subr.mxu0 %v2004
        %2641 = vmatpush1.msra.mxu0 %v2003
        %2642 = vmatprep.subr.mxu0 %v2000
        %2643 = vmatpush1.msra.mxu0 %v1999
        %2644 = vmatprep.subr.mxu0 %v1996
        %2645 = vmatpush1.msra.mxu0 %v1995
        %2646 = vmatprep.subr.mxu0 %v1992
        %2647 = vmatpush1.msra.mxu0 %v1991
        %2648 = vmatprep.subr.mxu0 %v1988
        %2649 = vmatpush1.msra.mxu0 %v1987
        %2650 = vmatprep.subr.mxu0 %v2112
        %2651 = vmatpush2.msra.mxu0 %v2111
        %2652 = vmatprep.subr.mxu0 %v2108
        %2653 = vmatpush2.msra.mxu0 %v2107
        %2654 = vmatprep.subr.mxu0 %v2104
        %2655 = vmatpush2.msra.mxu0 %v2103
        %2656 = vmatprep.subr.mxu0 %v2100
        %2657 = vmatpush2.msra.mxu0 %v2099
        %2658 = vmatprep.subr.mxu0 %v2096
        %2659 = vmatpush2.msra.mxu0 %v2095
        %2660 = vmatprep.subr.mxu0 %v2092
        %2661 = vmatpush2.msra.mxu0 %v2091
        %2662 = vmatprep.subr.mxu0 %v2088
        %2663 = vmatpush2.msra.mxu0 %v2087
        %2664 = vmatprep.subr.mxu0 %v2084
        %2665 = vmatpush2.msra.mxu0 %v2083
        %2666 = vmatprep.subr.mxu0 %v2080
        %2667 = vmatpush2.msra.mxu0 %v2079
        %2668 = vmatprep.subr.mxu0 %v2076
        %2669 = vmatpush2.msra.mxu0 %v2075
        %2670 = vmatprep.subr.mxu0 %v2072
        %2671 = vmatpush2.msra.mxu0 %v2071
        %2672 = vmatprep.subr.mxu0 %v2068
        %2673 = vmatpush2.msra.mxu0 %v2067
        %2674 = vmatprep.subr.mxu0 %v2064
        %2675 = vmatpush2.msra.mxu0 %v2063
        %2676 = vmatprep.subr.mxu0 %v2060
        %2677 = vmatpush2.msra.mxu0 %v2059
        %2678 = vmatprep.subr.mxu0 %v2056
        %2679 = vmatpush2.msra.mxu0 %v2055
        %2680 = vmatprep.subr.mxu0 %v2052
        %2681 = vmatpush2.msra.mxu0 %v2051
        %2682 = vmatprep.mubr.f32.mxu0 %v1796
        %2683 = vmatmul.mubr.f32.gmra.mxu0 %v1795
        %v2684 = vpop.f32.mrf.mxu0
        %v2685 = vadd.f32 %v2524, %v2684
        %v2686 = vpop.f32.mrf.mxu0
        %v2687 = vadd.f32 %v2526, %v2686
        %2688 = vmatprep.mubr.f32.mxu0 %v1800
        %2689 = vmatmul.mubr.f32.gmra.mxu0 %v1799
        %v2690 = vpop.f32.mrf.mxu0
        %v2691 = vadd.f32 %v2530, %v2690
        %v2692 = vpop.f32.mrf.mxu0
        %v2693 = vadd.f32 %v2532, %v2692
        %2694 = vmatprep.mubr.f32.mxu0 %v1804
        %2695 = vmatmul.mubr.f32.gmra.mxu0 %v1803
        %v2696 = vpop.f32.mrf.mxu0
        %v2697 = vadd.f32 %v2536, %v2696
        %v2698 = vpop.f32.mrf.mxu0
        %v2699 = vadd.f32 %v2538, %v2698
        %2700 = vmatprep.mubr.f32.mxu0 %v1808
        %2701 = vmatmul.mubr.f32.gmra.mxu0 %v1807
        %v2702 = vpop.f32.mrf.mxu0
        %v2703 = vadd.f32 %v2542, %v2702
        %v2704 = vpop.f32.mrf.mxu0
        %v2705 = vadd.f32 %v2544, %v2704
        %2706 = vmatprep.mubr.f32.mxu0 %v1812
        %2707 = vmatmul.mubr.f32.gmra.mxu0 %v1811
        %v2708 = vpop.f32.mrf.mxu0
        %v2709 = vadd.f32 %v2548, %v2708
        %v2710 = vpop.f32.mrf.mxu0
        %v2711 = vadd.f32 %v2550, %v2710
        %2712 = vmatprep.mubr.f32.mxu0 %v1816
        %2713 = vmatmul.mubr.f32.gmra.mxu0 %v1815
        %v2714 = vpop.f32.mrf.mxu0
        %v2715 = vadd.f32 %v2554, %v2714
        %v2716 = vpop.f32.mrf.mxu0
        %v2717 = vadd.f32 %v2556, %v2716
        %2718 = vmatprep.mubr.f32.mxu0 %v1820
        %2719 = vmatmul.mubr.f32.gmra.mxu0 %v1819
        %v2720 = vpop.f32.mrf.mxu0
        %v2721 = vadd.f32 %v2560, %v2720
        %v2722 = vpop.f32.mrf.mxu0
        %v2723 = vadd.f32 %v2562, %v2722
        %2724 = vmatprep.mubr.f32.mxu0 %v1824
        %2725 = vmatmul.mubr.f32.gmra.mxu0 %v1823
        %v2726 = vpop.f32.mrf.mxu0
        %v2727 = vadd.f32 %v2566, %v2726
        %v2728 = vpop.f32.mrf.mxu0
        %v2729 = vadd.f32 %v2568, %v2728
        %2730 = vmatprep.mubr.f32.mxu0 %v1828
        %2731 = vmatmul.mubr.f32.gmra.mxu0 %v1827
        %v2732 = vpop.f32.mrf.mxu0
        %v2733 = vadd.f32 %v2572, %v2732
        %v2734 = vpop.f32.mrf.mxu0
        %v2735 = vadd.f32 %v2574, %v2734
        %2736 = vmatprep.mubr.f32.mxu0 %v1832
        %2737 = vmatmul.mubr.f32.gmra.mxu0 %v1831
        %v2738 = vpop.f32.mrf.mxu0
        %v2739 = vadd.f32 %v2578, %v2738
        %v2740 = vpop.f32.mrf.mxu0
        %v2741 = vadd.f32 %v2580, %v2740
        %2742 = vmatprep.mubr.f32.mxu0 %v1836
        %2743 = vmatmul.mubr.f32.gmra.mxu0 %v1835
        %v2744 = vpop.f32.mrf.mxu0
        %v2745 = vadd.f32 %v2584, %v2744
        %v2746 = vpop.f32.mrf.mxu0
        %v2747 = vadd.f32 %v2586, %v2746
        %2748 = vmatprep.mubr.f32.mxu0 %v1840
        %2749 = vmatmul.mubr.f32.gmra.mxu0 %v1839
        %v2750 = vpop.f32.mrf.mxu0
        %v2751 = vadd.f32 %v2590, %v2750
        %v2752 = vpop.f32.mrf.mxu0
        %v2753 = vadd.f32 %v2592, %v2752
        %2754 = vmatprep.mubr.f32.mxu0 %v1844
        %2755 = vmatmul.mubr.f32.gmra.mxu0 %v1843
        %v2756 = vpop.f32.mrf.mxu0
        %v2757 = vadd.f32 %v2596, %v2756
        %v2758 = vpop.f32.mrf.mxu0
        %v2759 = vadd.f32 %v2598, %v2758
        %2760 = vmatprep.mubr.f32.mxu0 %v1848
        %2761 = vmatmul.mubr.f32.gmra.mxu0 %v1847
        %v2762 = vpop.f32.mrf.mxu0
        %v2763 = vadd.f32 %v2602, %v2762
        %v2764 = vpop.f32.mrf.mxu0
        %v2765 = vadd.f32 %v2604, %v2764
        %2766 = vmatprep.mubr.f32.mxu0 %v1852
        %2767 = vmatmul.mubr.f32.gmra.mxu0 %v1851
        %v2768 = vpop.f32.mrf.mxu0
        %v2769 = vadd.f32 %v2608, %v2768
        %v2770 = vpop.f32.mrf.mxu0
        %v2771 = vadd.f32 %v2610, %v2770
        %2772 = vmatprep.mubr.f32.mxu0 %v1856
        %2773 = vmatmul.mubr.f32.gmra.mxu0 %v1855
        %v2774 = vpop.f32.mrf.mxu0
        %v2775 = vadd.f32 %v2614, %v2774
        %v2776 = vpop.f32.mrf.mxu0
        %v2777 = vadd.f32 %v2616, %v2776
        %2778 = vdwg.mxu0
        %v2779 = vtanh.pop %v2363
        %v2780 = vtanh.pop %v2365
        %v2781 = vtanh.pop %v2685
        %v2782 = vtanh.pop %v2687
        %v2783 = vtanh.pop %v2369
        %v2784 = vtanh.pop %v2371
        %v2785 = vtanh.pop %v2691
        %v2786 = vtanh.pop %v2693
        %v2787 = vtanh.pop %v2375
        %v2788 = vtanh.pop %v2377
        %v2789 = vtanh.pop %v2697
        %v2790 = vtanh.pop %v2699
        %v2791 = vtanh.pop %v2381
        %v2792 = vtanh.pop %v2383
        %v2793 = vtanh.pop %v2703
        %v2794 = vtanh.pop %v2705
        %v2795 = vtanh.pop %v2387
        %v2796 = vtanh.pop %v2389
        %v2797 = vtanh.pop %v2709
        %v2798 = vtanh.pop %v2711
        %v2799 = vtanh.pop %v2393
        %v2800 = vtanh.pop %v2395
        %v2801 = vtanh.pop %v2715
        %v2802 = vtanh.pop %v2717
        %v2803 = vtanh.pop %v2399
        %v2804 = vtanh.pop %v2401
        %v2805 = vtanh.pop %v2721
        %v2806 = vtanh.pop %v2723
        %v2807 = vtanh.pop %v2405
        %v2808 = vtanh.pop %v2407
        %v2809 = vtanh.pop %v2727
        %v2810 = vtanh.pop %v2729
        %v2811 = vtanh.pop %v2411
        %v2812 = vtanh.pop %v2413
        %v2813 = vtanh.pop %v2733
        %v2814 = vtanh.pop %v2735
        %v2815 = vtanh.pop %v2417
        %v2816 = vtanh.pop %v2419
        %v2817 = vtanh.pop %v2739
        %v2818 = vtanh.pop %v2741
        %v2819 = vtanh.pop %v2423
        %v2820 = vtanh.pop %v2425
        %v2821 = vtanh.pop %v2745
        %v2822 = vtanh.pop %v2747
        %v2823 = vtanh.pop %v2429
        %v2824 = vtanh.pop %v2431
        %v2825 = vtanh.pop %v2751
        %v2826 = vtanh.pop %v2753
        %v2827 = vtanh.pop %v2435
        %v2828 = vtanh.pop %v2437
        %v2829 = vtanh.pop %v2757
        %v2830 = vtanh.pop %v2759
        %v2831 = vtanh.pop %v2441
        %v2832 = vtanh.pop %v2443
        %v2833 = vtanh.pop %v2763
        %v2834 = vtanh.pop %v2765
        %v2835 = vtanh.pop %v2447
        %v2836 = vtanh.pop %v2449
        %v2837 = vtanh.pop %v2769
        %v2838 = vtanh.pop %v2771
        %v2839 = vtanh.pop %v2453
        %v2840 = vtanh.pop %v2455
        %v2841 = vtanh.pop %v2775
        %v2842 = vtanh.pop %v2777
        %v2843 = vld [vmem:[#allocation7] sm:$0xff]
        %v2844 = vld [vmem:[#allocation7 + $0x8] sm:$0xff]
        %v2845 = vld [vmem:[#allocation7 + $0x10] sm:$0xff]
        %v2846 = vld [vmem:[#allocation7 + $0x18] sm:$0xff]
        %v2847 = vld [vmem:[#allocation7 + $0x20] sm:$0xff]
        %v2848 = vld [vmem:[#allocation7 + $0x28] sm:$0xff]
        %v2849 = vld [vmem:[#allocation7 + $0x30] sm:$0xff]
        %v2850 = vld [vmem:[#allocation7 + $0x38] sm:$0xff]
        %v2851 = vld [vmem:[#allocation7 + $0x40] sm:$0xff]
        %v2852 = vld [vmem:[#allocation7 + $0x48] sm:$0xff]
        %v2853 = vld [vmem:[#allocation7 + $0x50] sm:$0xff]
        %v2854 = vld [vmem:[#allocation7 + $0x58] sm:$0xff]
        %v2855 = vld [vmem:[#allocation7 + $0x60] sm:$0xff]
        %v2856 = vld [vmem:[#allocation7 + $0x68] sm:$0xff]
        %v2857 = vld [vmem:[#allocation7 + $0x70] sm:$0xff]
        %v2858 = vld [vmem:[#allocation7 + $0x78] sm:$0xff]
        %v2859 = vld [vmem:[#allocation7 + $0x80] sm:$0xff]
        %v2860 = vld [vmem:[#allocation7 + $0x88] sm:$0xff]
        %v2861 = vld [vmem:[#allocation7 + $0x90] sm:$0xff]
        %v2862 = vld [vmem:[#allocation7 + $0x98] sm:$0xff]
        %v2863 = vld [vmem:[#allocation7 + $0xa0] sm:$0xff]
        %v2864 = vld [vmem:[#allocation7 + $0xa8] sm:$0xff]
        %v2865 = vld [vmem:[#allocation7 + $0xb0] sm:$0xff]
        %v2866 = vld [vmem:[#allocation7 + $0xb8] sm:$0xff]
        %v2867 = vld [vmem:[#allocation7 + $0xc0] sm:$0xff]
        %v2868 = vld [vmem:[#allocation7 + $0xc8] sm:$0xff]
        %v2869 = vld [vmem:[#allocation7 + $0xd0] sm:$0xff]
        %v2870 = vld [vmem:[#allocation7 + $0xd8] sm:$0xff]
        %v2871 = vld [vmem:[#allocation7 + $0xe0] sm:$0xff]
        %v2872 = vld [vmem:[#allocation7 + $0xe8] sm:$0xff]
        %v2873 = vld [vmem:[#allocation7 + $0xf0] sm:$0xff]
        %v2874 = vld [vmem:[#allocation7 + $0xf8] sm:$0xff]
        %v2875 = vld [vmem:[#allocation7 + $0x100] sm:$0xff]
        %v2876 = vld [vmem:[#allocation7 + $0x108] sm:$0xff]
        %v2877 = vld [vmem:[#allocation7 + $0x110] sm:$0xff]
        %v2878 = vld [vmem:[#allocation7 + $0x118] sm:$0xff]
        %v2879 = vld [vmem:[#allocation7 + $0x120] sm:$0xff]
        %v2880 = vld [vmem:[#allocation7 + $0x128] sm:$0xff]
        %v2881 = vld [vmem:[#allocation7 + $0x130] sm:$0xff]
        %v2882 = vld [vmem:[#allocation7 + $0x138] sm:$0xff]
        %v2883 = vld [vmem:[#allocation7 + $0x140] sm:$0xff]
        %v2884 = vld [vmem:[#allocation7 + $0x148] sm:$0xff]
        %v2885 = vld [vmem:[#allocation7 + $0x150] sm:$0xff]
        %v2886 = vld [vmem:[#allocation7 + $0x158] sm:$0xff]
        %v2887 = vld [vmem:[#allocation7 + $0x160] sm:$0xff]
        %v2888 = vld [vmem:[#allocation7 + $0x168] sm:$0xff]
        %v2889 = vld [vmem:[#allocation7 + $0x170] sm:$0xff]
        %v2890 = vld [vmem:[#allocation7 + $0x178] sm:$0xff]
        %v2891 = vld [vmem:[#allocation7 + $0x180] sm:$0xff]
        %v2892 = vld [vmem:[#allocation7 + $0x188] sm:$0xff]
        %v2893 = vld [vmem:[#allocation7 + $0x190] sm:$0xff]
        %v2894 = vld [vmem:[#allocation7 + $0x198] sm:$0xff]
        %v2895 = vld [vmem:[#allocation7 + $0x1a0] sm:$0xff]
        %v2896 = vld [vmem:[#allocation7 + $0x1a8] sm:$0xff]
        %v2897 = vld [vmem:[#allocation7 + $0x1b0] sm:$0xff]
        %v2898 = vld [vmem:[#allocation7 + $0x1b8] sm:$0xff]
        %v2899 = vld [vmem:[#allocation7 + $0x1c0] sm:$0xff]
        %v2900 = vld [vmem:[#allocation7 + $0x1c8] sm:$0xff]
        %v2901 = vld [vmem:[#allocation7 + $0x1d0] sm:$0xff]
        %v2902 = vld [vmem:[#allocation7 + $0x1d8] sm:$0xff]
        %v2903 = vld [vmem:[#allocation7 + $0x1e0] sm:$0xff]
        %v2904 = vld [vmem:[#allocation7 + $0x1e8] sm:$0xff]
        %v2905 = vld [vmem:[#allocation7 + $0x1f0] sm:$0xff]
        %v2906 = vld [vmem:[#allocation7 + $0x1f8] sm:$0xff]
        %v2907 = vld [vmem:[%s8] sm:$0x1]
        %v2909 = vlaneseq
        %v2910 = vshrl.u32 %v2909, 7
        %v2911 = vsub.s32 0, %v2910
        %v2912 = vrot.slane %v2907, %v2911
        %2914 = vmatprep.subr.mxu0 0.0
        %2915 = vmatpush1.msra.mxu0 %v2858
        %2916 = vmatprep.subr.mxu0 0.0
        %2917 = vmatpush1.msra.mxu0 %v2857
        %2918 = vmatprep.subr.mxu0 0.0
        %2919 = vmatpush1.msra.mxu0 %v2856
        %2920 = vmatprep.subr.mxu0 0.0
        %2921 = vmatpush1.msra.mxu0 %v2855
        %2922 = vmatprep.subr.mxu0 0.0
        %2923 = vmatpush1.msra.mxu0 %v2854
        %2924 = vmatprep.subr.mxu0 0.0
        %2925 = vmatpush1.msra.mxu0 %v2853
        %2926 = vmatprep.subr.mxu0 0.0
        %2927 = vmatpush1.msra.mxu0 %v2852
        %2928 = vmatprep.subr.mxu0 0.0
        %2929 = vmatpush1.msra.mxu0 %v2851
        %2930 = vmatprep.subr.mxu0 0.0
        %2931 = vmatpush1.msra.mxu0 %v2850
        %2932 = vmatprep.subr.mxu0 0.0
        %2933 = vmatpush1.msra.mxu0 %v2849
        %2934 = vmatprep.subr.mxu0 0.0
        %2935 = vmatpush1.msra.mxu0 %v2848
        %2936 = vmatprep.subr.mxu0 0.0
        %2937 = vmatpush1.msra.mxu0 %v2847
        %2938 = vmatprep.subr.mxu0 0.0
        %2939 = vmatpush1.msra.mxu0 %v2846
        %2940 = vmatprep.subr.mxu0 0.0
        %2941 = vmatpush1.msra.mxu0 %v2845
        %2942 = vmatprep.subr.mxu0 0.0
        %2943 = vmatpush1.msra.mxu0 %v2844
        %2944 = vmatprep.subr.mxu0 0.0
        %2945 = vmatpush1.msra.mxu0 %v2843
        %2946 = vmatprep.subr.mxu0 0.0
        %2947 = vmatpush2.msra.mxu0 %v2874
        %2948 = vmatprep.subr.mxu0 0.0
        %2949 = vmatpush2.msra.mxu0 %v2873
        %2950 = vmatprep.subr.mxu0 0.0
        %2951 = vmatpush2.msra.mxu0 %v2872
        %2952 = vmatprep.subr.mxu0 0.0
        %2953 = vmatpush2.msra.mxu0 %v2871
        %2954 = vmatprep.subr.mxu0 0.0
        %2955 = vmatpush2.msra.mxu0 %v2870
        %2956 = vmatprep.subr.mxu0 0.0
        %2957 = vmatpush2.msra.mxu0 %v2869
        %2958 = vmatprep.subr.mxu0 0.0
        %2959 = vmatpush2.msra.mxu0 %v2868
        %2960 = vmatprep.subr.mxu0 0.0
        %2961 = vmatpush2.msra.mxu0 %v2867
        %2962 = vmatprep.subr.mxu0 0.0
        %2963 = vmatpush2.msra.mxu0 %v2866
        %2964 = vmatprep.subr.mxu0 0.0
        %2965 = vmatpush2.msra.mxu0 %v2865
        %2966 = vmatprep.subr.mxu0 0.0
        %2967 = vmatpush2.msra.mxu0 %v2864
        %2968 = vmatprep.subr.mxu0 0.0
        %2969 = vmatpush2.msra.mxu0 %v2863
        %2970 = vmatprep.subr.mxu0 0.0
        %2971 = vmatpush2.msra.mxu0 %v2862
        %2972 = vmatprep.subr.mxu0 0.0
        %2973 = vmatpush2.msra.mxu0 %v2861
        %2974 = vmatprep.subr.mxu0 0.0
        %2975 = vmatpush2.msra.mxu0 %v2860
        %2976 = vmatprep.subr.mxu0 0.0
        %2977 = vmatpush2.msra.mxu0 %v2859
        %2978 = vmatprep.mubr.f32.mxu0 %v2780
        %2979 = vmatmul.mubr.f32.gmra.mxu0 %v2779
        %v2980 = vpop.f32.mrf.mxu0
        %v2981 = vadd.f32 %v2912, %v2980
        %v2982 = vpop.f32.mrf.mxu0
        %2983 = vmatprep.mubr.f32.mxu0 %v2784
        %2984 = vmatmul.mubr.f32.gmra.mxu0 %v2783
        %v2985 = vpop.f32.mrf.mxu0
        %v2986 = vadd.f32 %v2912, %v2985
        %v2987 = vpop.f32.mrf.mxu0
        %2988 = vmatprep.mubr.f32.mxu0 %v2788
        %2989 = vmatmul.mubr.f32.gmra.mxu0 %v2787
        %v2990 = vpop.f32.mrf.mxu0
        %v2991 = vadd.f32 %v2912, %v2990
        %v2992 = vpop.f32.mrf.mxu0
        %2993 = vmatprep.mubr.f32.mxu0 %v2792
        %2994 = vmatmul.mubr.f32.gmra.mxu0 %v2791
        %v2995 = vpop.f32.mrf.mxu0
        %v2996 = vadd.f32 %v2912, %v2995
        %v2997 = vpop.f32.mrf.mxu0
        %2998 = vmatprep.mubr.f32.mxu0 %v2796
        %2999 = vmatmul.mubr.f32.gmra.mxu0 %v2795
        %v3000 = vpop.f32.mrf.mxu0
        %v3001 = vadd.f32 %v2912, %v3000
        %v3002 = vpop.f32.mrf.mxu0
        %3003 = vmatprep.mubr.f32.mxu0 %v2800
        %3004 = vmatmul.mubr.f32.gmra.mxu0 %v2799
        %v3005 = vpop.f32.mrf.mxu0
        %v3006 = vadd.f32 %v2912, %v3005
        %v3007 = vpop.f32.mrf.mxu0
        %3008 = vmatprep.mubr.f32.mxu0 %v2804
        %3009 = vmatmul.mubr.f32.gmra.mxu0 %v2803
        %v3010 = vpop.f32.mrf.mxu0
        %v3011 = vadd.f32 %v2912, %v3010
        %v3012 = vpop.f32.mrf.mxu0
        %3013 = vmatprep.mubr.f32.mxu0 %v2808
        %3014 = vmatmul.mubr.f32.gmra.mxu0 %v2807
        %v3015 = vpop.f32.mrf.mxu0
        %v3016 = vadd.f32 %v2912, %v3015
        %v3017 = vpop.f32.mrf.mxu0
        %3018 = vmatprep.mubr.f32.mxu0 %v2812
        %3019 = vmatmul.mubr.f32.gmra.mxu0 %v2811
        %v3020 = vpop.f32.mrf.mxu0
        %v3021 = vadd.f32 %v2912, %v3020
        %v3022 = vpop.f32.mrf.mxu0
        %3023 = vmatprep.mubr.f32.mxu0 %v2816
        %3024 = vmatmul.mubr.f32.gmra.mxu0 %v2815
        %v3025 = vpop.f32.mrf.mxu0
        %v3026 = vadd.f32 %v2912, %v3025
        %v3027 = vpop.f32.mrf.mxu0
        %3028 = vmatprep.mubr.f32.mxu0 %v2820
        %3029 = vmatmul.mubr.f32.gmra.mxu0 %v2819
        %v3030 = vpop.f32.mrf.mxu0
        %v3031 = vadd.f32 %v2912, %v3030
        %v3032 = vpop.f32.mrf.mxu0
        %3033 = vmatprep.mubr.f32.mxu0 %v2824
        %3034 = vmatmul.mubr.f32.gmra.mxu0 %v2823
        %v3035 = vpop.f32.mrf.mxu0
        %v3036 = vadd.f32 %v2912, %v3035
        %v3037 = vpop.f32.mrf.mxu0
        %3038 = vmatprep.mubr.f32.mxu0 %v2828
        %3039 = vmatmul.mubr.f32.gmra.mxu0 %v2827
        %v3040 = vpop.f32.mrf.mxu0
        %v3041 = vadd.f32 %v2912, %v3040
        %v3042 = vpop.f32.mrf.mxu0
        %3043 = vmatprep.mubr.f32.mxu0 %v2832
        %3044 = vmatmul.mubr.f32.gmra.mxu0 %v2831
        %v3045 = vpop.f32.mrf.mxu0
        %v3046 = vadd.f32 %v2912, %v3045
        %v3047 = vpop.f32.mrf.mxu0
        %3048 = vmatprep.mubr.f32.mxu0 %v2836
        %3049 = vmatmul.mubr.f32.gmra.mxu0 %v2835
        %v3050 = vpop.f32.mrf.mxu0
        %v3051 = vadd.f32 %v2912, %v3050
        %v3052 = vpop.f32.mrf.mxu0
        %3053 = vmatprep.mubr.f32.mxu0 %v2840
        %3054 = vmatmul.mubr.f32.gmra.mxu0 %v2839
        %v3055 = vpop.f32.mrf.mxu0
        %v3056 = vadd.f32 %v2912, %v3055
        %v3057 = vpop.f32.mrf.mxu0
        %3058 = vdwg.mxu0
        %3059 = vmatprep.subr.mxu0 0.0
        %3060 = vmatpush1.msra.mxu0 %v2890
        %3061 = vmatprep.subr.mxu0 0.0
        %3062 = vmatpush1.msra.mxu0 %v2889
        %3063 = vmatprep.subr.mxu0 0.0
        %3064 = vmatpush1.msra.mxu0 %v2888
        %3065 = vmatprep.subr.mxu0 0.0
        %3066 = vmatpush1.msra.mxu0 %v2887
        %3067 = vmatprep.subr.mxu0 0.0
        %3068 = vmatpush1.msra.mxu0 %v2886
        %3069 = vmatprep.subr.mxu0 0.0
        %3070 = vmatpush1.msra.mxu0 %v2885
        %3071 = vmatprep.subr.mxu0 0.0
        %3072 = vmatpush1.msra.mxu0 %v2884
        %3073 = vmatprep.subr.mxu0 0.0
        %3074 = vmatpush1.msra.mxu0 %v2883
        %3075 = vmatprep.subr.mxu0 0.0
        %3076 = vmatpush1.msra.mxu0 %v2882
        %3077 = vmatprep.subr.mxu0 0.0
        %3078 = vmatpush1.msra.mxu0 %v2881
        %3079 = vmatprep.subr.mxu0 0.0
        %3080 = vmatpush1.msra.mxu0 %v2880
        %3081 = vmatprep.subr.mxu0 0.0
        %3082 = vmatpush1.msra.mxu0 %v2879
        %3083 = vmatprep.subr.mxu0 0.0
        %3084 = vmatpush1.msra.mxu0 %v2878
        %3085 = vmatprep.subr.mxu0 0.0
        %3086 = vmatpush1.msra.mxu0 %v2877
        %3087 = vmatprep.subr.mxu0 0.0
        %3088 = vmatpush1.msra.mxu0 %v2876
        %3089 = vmatprep.subr.mxu0 0.0
        %3090 = vmatpush1.msra.mxu0 %v2875
        %3091 = vmatprep.subr.mxu0 0.0
        %3092 = vmatpush2.msra.mxu0 %v2906
        %3093 = vmatprep.subr.mxu0 0.0
        %3094 = vmatpush2.msra.mxu0 %v2905
        %3095 = vmatprep.subr.mxu0 0.0
        %3096 = vmatpush2.msra.mxu0 %v2904
        %3097 = vmatprep.subr.mxu0 0.0
        %3098 = vmatpush2.msra.mxu0 %v2903
        %3099 = vmatprep.subr.mxu0 0.0
        %3100 = vmatpush2.msra.mxu0 %v2902
        %3101 = vmatprep.subr.mxu0 0.0
        %3102 = vmatpush2.msra.mxu0 %v2901
        %3103 = vmatprep.subr.mxu0 0.0
        %3104 = vmatpush2.msra.mxu0 %v2900
        %3105 = vmatprep.subr.mxu0 0.0
        %3106 = vmatpush2.msra.mxu0 %v2899
        %3107 = vmatprep.subr.mxu0 0.0
        %3108 = vmatpush2.msra.mxu0 %v2898
        %3109 = vmatprep.subr.mxu0 0.0
        %3110 = vmatpush2.msra.mxu0 %v2897
        %3111 = vmatprep.subr.mxu0 0.0
        %3112 = vmatpush2.msra.mxu0 %v2896
        %3113 = vmatprep.subr.mxu0 0.0
        %3114 = vmatpush2.msra.mxu0 %v2895
        %3115 = vmatprep.subr.mxu0 0.0
        %3116 = vmatpush2.msra.mxu0 %v2894
        %3117 = vmatprep.subr.mxu0 0.0
        %3118 = vmatpush2.msra.mxu0 %v2893
        %3119 = vmatprep.subr.mxu0 0.0
        %3120 = vmatpush2.msra.mxu0 %v2892
        %3121 = vmatprep.subr.mxu0 0.0
        %3122 = vmatpush2.msra.mxu0 %v2891
        %3123 = vmatprep.mubr.f32.mxu0 %v2782
        %3124 = vmatmul.mubr.f32.gmra.mxu0 %v2781
        %v3125 = vpop.f32.mrf.mxu0
        %v3126 = vadd.f32 %v2981, %v3125
        %v3127 = vpop.f32.mrf.mxu0
        %3128 = vmatprep.mubr.f32.mxu0 %v2786
        %3129 = vmatmul.mubr.f32.gmra.mxu0 %v2785
        %v3130 = vpop.f32.mrf.mxu0
        %v3131 = vadd.f32 %v2986, %v3130
        %v3132 = vpop.f32.mrf.mxu0
        %3133 = vmatprep.mubr.f32.mxu0 %v2790
        %3134 = vmatmul.mubr.f32.gmra.mxu0 %v2789
        %v3135 = vpop.f32.mrf.mxu0
        %v3136 = vadd.f32 %v2991, %v3135
        %v3137 = vpop.f32.mrf.mxu0
        %3138 = vmatprep.mubr.f32.mxu0 %v2794
        %3139 = vmatmul.mubr.f32.gmra.mxu0 %v2793
        %v3140 = vpop.f32.mrf.mxu0
        %v3141 = vadd.f32 %v2996, %v3140
        %v3142 = vpop.f32.mrf.mxu0
        %3143 = vmatprep.mubr.f32.mxu0 %v2798
        %3144 = vmatmul.mubr.f32.gmra.mxu0 %v2797
        %v3145 = vpop.f32.mrf.mxu0
        %v3146 = vadd.f32 %v3001, %v3145
        %v3147 = vpop.f32.mrf.mxu0
        %3148 = vmatprep.mubr.f32.mxu0 %v2802
        %3149 = vmatmul.mubr.f32.gmra.mxu0 %v2801
        %v3150 = vpop.f32.mrf.mxu0
        %v3151 = vadd.f32 %v3006, %v3150
        %v3152 = vpop.f32.mrf.mxu0
        %3153 = vmatprep.mubr.f32.mxu0 %v2806
        %3154 = vmatmul.mubr.f32.gmra.mxu0 %v2805
        %v3155 = vpop.f32.mrf.mxu0
        %v3156 = vadd.f32 %v3011, %v3155
        %v3157 = vpop.f32.mrf.mxu0
        %3158 = vmatprep.mubr.f32.mxu0 %v2810
        %3159 = vmatmul.mubr.f32.gmra.mxu0 %v2809
        %v3160 = vpop.f32.mrf.mxu0
        %v3161 = vadd.f32 %v3016, %v3160
        %v3162 = vpop.f32.mrf.mxu0
        %3163 = vmatprep.mubr.f32.mxu0 %v2814
        %3164 = vmatmul.mubr.f32.gmra.mxu0 %v2813
        %v3165 = vpop.f32.mrf.mxu0
        %v3166 = vadd.f32 %v3021, %v3165
        %v3167 = vpop.f32.mrf.mxu0
        %3168 = vmatprep.mubr.f32.mxu0 %v2818
        %3169 = vmatmul.mubr.f32.gmra.mxu0 %v2817
        %v3170 = vpop.f32.mrf.mxu0
        %v3171 = vadd.f32 %v3026, %v3170
        %v3172 = vpop.f32.mrf.mxu0
        %3173 = vmatprep.mubr.f32.mxu0 %v2822
        %3174 = vmatmul.mubr.f32.gmra.mxu0 %v2821
        %v3175 = vpop.f32.mrf.mxu0
        %v3176 = vadd.f32 %v3031, %v3175
        %v3177 = vpop.f32.mrf.mxu0
        %3178 = vmatprep.mubr.f32.mxu0 %v2826
        %3179 = vmatmul.mubr.f32.gmra.mxu0 %v2825
        %v3180 = vpop.f32.mrf.mxu0
        %v3181 = vadd.f32 %v3036, %v3180
        %v3182 = vpop.f32.mrf.mxu0
        %3183 = vmatprep.mubr.f32.mxu0 %v2830
        %3184 = vmatmul.mubr.f32.gmra.mxu0 %v2829
        %v3185 = vpop.f32.mrf.mxu0
        %v3186 = vadd.f32 %v3041, %v3185
        %v3187 = vpop.f32.mrf.mxu0
        %3188 = vmatprep.mubr.f32.mxu0 %v2834
        %3189 = vmatmul.mubr.f32.gmra.mxu0 %v2833
        %v3190 = vpop.f32.mrf.mxu0
        %v3191 = vadd.f32 %v3046, %v3190
        %v3192 = vpop.f32.mrf.mxu0
        %3193 = vmatprep.mubr.f32.mxu0 %v2838
        %3194 = vmatmul.mubr.f32.gmra.mxu0 %v2837
        %v3195 = vpop.f32.mrf.mxu0
        %v3196 = vadd.f32 %v3051, %v3195
        %v3197 = vpop.f32.mrf.mxu0
        %3198 = vmatprep.mubr.f32.mxu0 %v2842
        %3199 = vmatmul.mubr.f32.gmra.mxu0 %v2841
        %v3200 = vpop.f32.mrf.mxu0
        %v3201 = vadd.f32 %v3056, %v3200
        %v3202 = vpop.f32.mrf.mxu0
        %3203 = vdwg.mxu0
        %3204 = vst [vmem:[%s370] sm:$0xff] %v3126
        %3205 = vst [vmem:[%s370 + $0x8] sm:$0xff] %v3131
        %3206 = vst [vmem:[%s370 + $0x10] sm:$0xff] %v3136
        %3207 = vst [vmem:[%s370 + $0x18] sm:$0xff] %v3141
        %3208 = vst [vmem:[%s370 + $0x20] sm:$0xff] %v3146
        %3209 = vst [vmem:[%s370 + $0x28] sm:$0xff] %v3151
        %3210 = vst [vmem:[%s370 + $0x30] sm:$0xff] %v3156
        %3211 = vst [vmem:[%s370 + $0x38] sm:$0xff] %v3161
        %3212 = vst [vmem:[%s370 + $0x40] sm:$0xff] %v3166
        %3213 = vst [vmem:[%s370 + $0x48] sm:$0xff] %v3171
        %3214 = vst [vmem:[%s370 + $0x50] sm:$0xff] %v3176
        %3215 = vst [vmem:[%s370 + $0x58] sm:$0xff] %v3181
        %3216 = vst [vmem:[%s370 + $0x60] sm:$0xff] %v3186
        %3217 = vst [vmem:[%s370 + $0x68] sm:$0xff] %v3191
        %3218 = vst [vmem:[%s370 + $0x70] sm:$0xff] %v3196
        %3219 = vst [vmem:[%s370 + $0x78] sm:$0xff] %v3201
        %s3220 = sand.u32 %s227, 1
        %s3221 = scalar_lea.sflag [#allocation4], %s3220
        %s3222 = sand.u32 %s227, 1
        %s3223 = smul.addr %s3222, 128
        %s3224 = scalar_lea.vmem [#allocation8], %s3223
        // Predicated region
        $region69: #{tpu_custom_call.1} parent=55 // pred_check
          %p3225 = pneg %p237
        $region70: #{tpu_custom_call.1} parent=55 // pred_check_branch
          %3227 = sbr.rel (%p3225) target = $region72
        $region71: #{tpu_custom_call.1} parent=55 // pred_region
          %s3228 = smul.u32 16, %s25
          %s3230 = ssub.s32 2048, 2048
          %3231 = vsyncadd %s3221, %s3230
          %s3232 = smul.addr %s3228, 128
          %s3233 = scalar_lea.hbm %s9, %s3232
          %s3234 = sshll.u32 %s3224, 4
          %s3235 = int_to_ptr.vmem [resolvable:$true] %s3234
          %3240 = dma.vmem_to_hbm [thread:$0]  %s3235, 2048, %s3233, %s3221, 128, 128, 8
        $region72: #{tpu_custom_call.1} parent=55 // pred_fallthru
          _
      $region56: #{tpu_custom_call.1} parent=5 // pred_fallthru
        _
      %p3241 = scmp.le.s32.totalorder 2, %s20
      // Predicated region
      $region73: #{tpu_custom_call.1} parent=5 // pred_check
        %p3242 = pneg %p3241
      $region74: #{tpu_custom_call.1} parent=5 // pred_check_branch
        %3244 = sbr.rel (%p3242) target = $region76
      $region75: #{tpu_custom_call.1} parent=5 // pred_region
        %s3245 = ssub.s32 %s20, 2
        // Predicated region
        $region77: #{tpu_custom_call.1} parent=75 // pred_check
          %p3246 = pneg %p243
        $region78: #{tpu_custom_call.1} parent=75 // pred_check_branch
          %3248 = sbr.rel (%p3246) target = $region80
        $region79: #{tpu_custom_call.1} parent=75 // pred_region
          %s3249 = sand.u32 %s228, 1
          %s3250 = scalar_lea.sflag [#allocation4], %s3249
          %s3251 = sand.u32 %s228, 1
          %s3252 = smul.addr %s3251, 128
          %s3253 = scalar_lea.vmem [#allocation8], %s3252
          %3254 = dma.done %s3250, 2048
        $region80: #{tpu_custom_call.1} parent=75 // pred_fallthru
          _
      $region76: #{tpu_custom_call.1} parent=5 // pred_fallthru
        _
    $region6: #{tpu_custom_call.1} parent=1 // loop_footer
      %s24 = sadd.s32 1, %s20
    $region7: #{tpu_custom_call.1} parent=1 // loop_footer_branch
      %19 = sbr.rel target = $region3
    $region8: #{tpu_custom_call.1} parent=1 // loop_exit
      _
    %3255 = vsyncpa [#allocation3], 1
    %s3256 = scalar_lea.sflag [#allocation3], 1
    %3257 = vsyncpa %s3256, 1
    %3258 = vsyncpa [#allocation6], 1
    %3259 = vsyncpa [#allocation4], 1
    %s3260 = scalar_lea.sflag [#allocation4], 1
    %3261 = vsyncpa %s3260, 1

</llo_original>
